<compile_context>
chip_gen: v6e
topology: v6e:2x2x1
jax: 0.10.0
libtpu: 0.0.40
codegen_flags: <defaults>
</compile_context>

<pallas_src>
import jax
import jax.numpy as jnp
from jax.experimental import pallas as pl
from jax.experimental.pallas import tpu as pltpu


def _round_up(x, m):
    return (x + m - 1) // m * m


def _silu(x):
    # x * sigmoid(x) via tanh on the EUP: no divide, no exp overflow.
    return x * (0.5 * jnp.tanh(0.5 * x) + 0.5)


# --------------------------------------------------------------------------
# Fused whole-network kernel (one batch tile per grid step)
# --------------------------------------------------------------------------
def _lenet_kernel(x_ref, w1_ref, b1_ref, w2_ref, b2_ref, w3_ref, b3_ref,
                  w4_ref, b4_ref, w5_ref, b5_ref, o_ref, y1_ref, ft_ref):
    cin = x_ref.shape[1] // 1024          # input is (TB, cin*32*32), row-major

    # conv1(5x5, pad 2) + avgpool(2,2) + SiLU, one pooled output row at a time.
    # Pooled row ph needs padded-input rows 2ph..2ph+5, which are contiguous in
    # the (ci, row, col) flattening -> one 192-wide lane slice per channel,
    # matmul'd against a block-Toeplitz weight (pool scale folded in).
    for ph in range(14):
        acc = None
        for ci in range(cin):
            base = ci * 1024 + 64 * ph
            band = x_ref[:, base:base + 192]                       # (TB, 192)
            part = jnp.dot(band, w1_ref[ci * 192:(ci + 1) * 192, :],
                           preferred_element_type=jnp.float32)     # (TB, 128)
            acc = part if acc is None else acc + part
        y1_ref[:, ph * 128:(ph + 1) * 128] = _silu(acc + b1_ref[...])

    # conv2(5x5) + avgpool(2,2) + SiLU.  Pooled row ph2 reads y1 rows
    # 2ph2..2ph2+5 == a tile-aligned 768-wide slice of the y1 scratch.
    for ph2 in range(5):
        band = y1_ref[:, 256 * ph2:256 * ph2 + 768]                # (TB, 768)
        z = jnp.dot(band, w2_ref[...], preferred_element_type=jnp.float32)
        ft_ref[:, ph2 * 128:(ph2 + 1) * 128] = _silu(z + b2_ref[...])

    # linear1 + SiLU -> linear2 + SiLU -> linear3 (all N dims padded to 128).
    h = _silu(jnp.dot(ft_ref[...], w3_ref[...],
                      preferred_element_type=jnp.float32) + b3_ref[...])
    h = _silu(jnp.dot(h, w4_ref[...],
                      preferred_element_type=jnp.float32) + b4_ref[...])
    o = jnp.dot(h, w5_ref[...], preferred_element_type=jnp.float32) + b5_ref[...]
    o_ref[...] = o.astype(o_ref.dtype)


def lenet_forward(packed, x, out_dim):
    """x: (B, in_dim, 28, 28) float32 NCHW -> (B, out_dim)."""
    B, cin = x.shape[0], x.shape[1]
    xp = jnp.pad(x, ((0, 0), (0, 0), (2, 2), (2, 2)))      # (B, cin, 32, 32)
    x2d = xp.reshape(B, cin * 1024)

    tb = min(128, _round_up(B, 8))
    b_pad = _round_up(B, tb)
    if b_pad != B:
        x2d = jnp.pad(x2d, ((0, b_pad - B), (0, 0)))
    out_pad = packed["w5"].shape[1]

    def _full(a):
        return pl.BlockSpec(a.shape, lambda i: (0,) * a.ndim)

    out = pl.pallas_call(
        _lenet_kernel,
        out_shape=jax.ShapeDtypeStruct((b_pad, out_pad), jnp.float32),
        grid=(b_pad // tb,),
        in_specs=[
            pl.BlockSpec((tb, cin * 1024), lambda i: (i, 0)),
            _full(packed["w1"]), _full(packed["b1"]),
            _full(packed["w2"]), _full(packed["b2"]),
            _full(packed["w3"]), _full(packed["b3"]),
            _full(packed["w4"]), _full(packed["b4"]),
            _full(packed["w5"]), _full(packed["b5"]),
        ],
        out_specs=pl.BlockSpec((tb, out_pad), lambda i: (i, 0)),
        scratch_shapes=[
            pltpu.VMEM((tb, 14 * 128), jnp.float32),   # conv1 pooled row slabs
            pltpu.VMEM((tb, 5 * 128), jnp.float32),    # conv2 pooled rows / FC in
        ],
        compiler_params=pltpu.CompilerParams(
            dimension_semantics=("parallel",),
            vmem_limit_bytes=32 * 1024 * 1024),
    )(x2d, packed["w1"], packed["b1"], packed["w2"], packed["b2"],
      packed["w3"], packed["b3"], packed["w4"], packed["b4"],
      packed["w5"], packed["b5"])
    return out[:B, :out_dim]


# --------------------------------------------------------------------------
# Parameters: PyTorch-style init + one-time packing (pool fold, Toeplitz,
# flatten permutation, 128-lane zero padding).  No per-call layout work.
# --------------------------------------------------------------------------
def init_lenet_params(key, in_dim, out_dim):
    def uniform(key, shape, fan_in):
        bound = 1.0 / jnp.sqrt(float(fan_in))
        return jax.random.uniform(key, shape, minval=-bound, maxval=bound,
                                  dtype=jnp.float32)

    ks = jax.random.split(key, 10)
    p = {}
    p["w1"] = uniform(ks[0], (6, in_dim, 5, 5), in_dim * 25)   # Conv2d(in_dim, 6, 5, p=2)
    p["b1"] = uniform(ks[1], (6,), in_dim * 25)
    p["w2"] = uniform(ks[2], (16, 6, 5, 5), 6 * 25)            # Conv2d(6, 16, 5)
    p["b2"] = uniform(ks[3], (16,), 6 * 25)
    p["w3"] = uniform(ks[4], (120, 400), 400)                  # Linear(400, 120)
    p["b3"] = uniform(ks[5], (120,), 400)
    p["w4"] = uniform(ks[6], (84, 120), 120)                   # Linear(120, 84)
    p["b4"] = uniform(ks[7], (84,), 120)
    p["w5"] = uniform(ks[8], (out_dim, 84), 84)                # Linear(84, out_dim)
    p["b5"] = uniform(ks[9], (out_dim,), 84)
    return p


def pack_lenet_params(params, in_dim, out_dim):
    f32 = jnp.float32
    cin = in_dim

    def pool_fold(w):
        # conv(5x5) + avgpool(2,2) == conv(6x6, stride 2) with a box-blurred,
        # 0.25-scaled kernel.
        co, ci = w.shape[0], w.shape[1]
        we = jnp.zeros((co, ci, 6, 6), f32)
        for dh in (0, 1):
            for dw in (0, 1):
                we = we.at[:, :, dh:dh + 5, dw:dw + 5].add(w)
        return we * 0.25

    # conv1: block-Toeplitz weight (cin*192, 128).  Row index = ci*192 + r*32 +
    # col (position inside the 6x32 input band); column index = pw*6 + co.
    w1e = pool_fold(params["w1"])                       # (6, cin, 6, 6)
    w1t = jnp.zeros((cin * 192, 128), f32)
    for ci in range(cin):
        for r in range(6):
            for pw in range(14):
                rows = ci * 192 + r * 32 + 2 * pw
                w1t = w1t.at[rows:rows + 6, pw * 6:pw * 6 + 6].set(
                    w1e[:, ci, r, :].T)
    b1t = jnp.zeros((1, 128), f32).at[0, :84].set(jnp.tile(params["b1"], 14))

    # conv2: block-Toeplitz weight (768, 128).  Row index = r*128 + col*6 + ci
    # (matching y1's 128-lane row slabs); column index = pw2*16 + co.
    w2e = pool_fold(params["w2"])                       # (16, 6, 6, 6)
    w2t = jnp.zeros((768, 128), f32)
    for r in range(6):
        for pw2 in range(5):
            for c in range(6):
                col = 2 * pw2 + c
                rows = r * 128 + col * 6
                w2t = w2t.at[rows:rows + 6, pw2 * 16:pw2 * 16 + 16].set(
                    w2e[:, :, r, c].T)
    b2t = jnp.zeros((1, 128), f32).at[0, :80].set(jnp.tile(params["b2"], 5))

    # linear1: permute torch's (co, ph2, pw2) flatten order into the kernel's
    # (ph2, pw2, co) lane layout; pad K to 5*128 and N to 128.
    w3r = params["w3"].reshape(120, 16, 5, 5).transpose(2, 3, 1, 0)  # (ph2,pw2,co,j)
    w3t = jnp.zeros((5, 128, 128), f32).at[:, :80, :120].set(
        w3r.reshape(5, 80, 120)).reshape(640, 128)
    b3t = jnp.zeros((1, 128), f32).at[0, :120].set(params["b3"])

    w4t = jnp.zeros((128, 128), f32).at[:120, :84].set(params["w4"].T)
    b4t = jnp.zeros((1, 128), f32).at[0, :84].set(params["b4"])

    n5 = _round_up(out_dim, 128)
    w5t = jnp.zeros((128, n5), f32).at[:84, :out_dim].set(params["w5"].T)
    b5t = jnp.zeros((1, n5), f32).at[0, :out_dim].set(params["b5"])

    return {"w1": w1t, "b1": b1t, "w2": w2t, "b2": b2t, "w3": w3t, "b3": b3t,
            "w4": w4t, "b4": b4t, "w5": w5t, "b5": b5t}


# --------------------------------------------------------------------------
# Pure-JAX reference (for correctness check)
# --------------------------------------------------------------------------
def lenet_reference(params, x):
    def conv(x, w, b, pad):
        y = jax.lax.conv_general_dilated(
            x, w, window_strides=(1, 1), padding=[(pad, pad), (pad, pad)],
            dimension_numbers=("NCHW", "OIHW", "NCHW"),
        )
        return y + b.reshape(1, -1, 1, 1)

    def avgpool(x):
        B, C, H, W = x.shape
        return x.reshape(B, C, H // 2, 2, W // 2, 2).mean(axis=(3, 5))

    y = jax.nn.silu(avgpool(conv(x, params["w1"], params["b1"], 2)))
    y = jax.nn.silu(avgpool(conv(y, params["w2"], params["b2"], 0)))
    y = y.reshape(x.shape[0], -1)
    y = jax.nn.silu(y @ params["w3"].T + params["b3"])
    y = jax.nn.silu(y @ params["w4"].T + params["b4"])
    return y @ params["w5"].T + params["b5"]


if __name__ == "__main__":
    in_dim, out_dim, batch = 1, 10, 2
    key = jax.random.PRNGKey(0)
    k_param, k_x = jax.random.split(key)
    params = init_lenet_params(k_param, in_dim, out_dim)
    packed = pack_lenet_params(params, in_dim, out_dim)
    # LeNet geometry: 28x28 input -> conv(pad 2) 28 -> pool 14 -> conv 10 ->
    # pool 5 -> 16*5*5 = 400 features for linear1.
    x = jax.random.normal(k_x, (batch, in_dim, 28, 28), dtype=jnp.float32)

    fwd = jax.jit(lenet_forward, static_argnames=("out_dim",))
    out = jax.block_until_ready(fwd(packed, x, out_dim=out_dim))
    ref = jax.block_until_ready(lenet_reference(params, x))

    assert out.shape == (batch, out_dim), out.shape
    assert jnp.allclose(out, ref, rtol=1e-3, atol=1e-3), (
        f"max abs err {jnp.max(jnp.abs(out - ref))}"
    )
    print("KERNEL_OK")
</pallas_src>

<mosaic_0001>
module attributes {stable_mosaic.version = 11 : i64} {
  func.func @_lenet_kernel(%arg0: i32, %arg1: memref<8x1024xf32, #tpu.memory_space<vmem>>, %arg2: memref<192x128xf32, #tpu.memory_space<vmem>>, %arg3: memref<1x128xf32, #tpu.memory_space<vmem>>, %arg4: memref<768x128xf32, #tpu.memory_space<vmem>>, %arg5: memref<1x128xf32, #tpu.memory_space<vmem>>, %arg6: memref<640x128xf32, #tpu.memory_space<vmem>>, %arg7: memref<1x128xf32, #tpu.memory_space<vmem>>, %arg8: memref<128x128xf32, #tpu.memory_space<vmem>>, %arg9: memref<1x128xf32, #tpu.memory_space<vmem>>, %arg10: memref<128x128xf32, #tpu.memory_space<vmem>>, %arg11: memref<1x128xf32, #tpu.memory_space<vmem>>, %arg12: memref<8x128xf32, #tpu.memory_space<vmem>>, %arg13: memref<8x1792xf32, #tpu.memory_space<vmem>>, %arg14: memref<8x640xf32, #tpu.memory_space<vmem>>) attributes {dimension_semantics = [#tpu.dimension_semantics<parallel>], iteration_bounds = array<i64: 1>, scalar_prefetch = 0 : i64, scratch_operands = 2 : i64, tpu.core_type = #tpu.core_type<tc>, window_params = [{transform_indices = @transform_0, window_bounds = array<i64: 8, 1024>}, {pipeline_mode = #tpu.pipeline_mode<synchronous>, transform_indices = @transform_1, window_bounds = array<i64: 192, 128>}, {pipeline_mode = #tpu.pipeline_mode<synchronous>, transform_indices = @transform_2, window_bounds = array<i64: 1, 128>}, {pipeline_mode = #tpu.pipeline_mode<synchronous>, transform_indices = @transform_3, window_bounds = array<i64: 768, 128>}, {pipeline_mode = #tpu.pipeline_mode<synchronous>, transform_indices = @transform_4, window_bounds = array<i64: 1, 128>}, {pipeline_mode = #tpu.pipeline_mode<synchronous>, transform_indices = @transform_5, window_bounds = array<i64: 640, 128>}, {pipeline_mode = #tpu.pipeline_mode<synchronous>, transform_indices = @transform_6, window_bounds = array<i64: 1, 128>}, {pipeline_mode = #tpu.pipeline_mode<synchronous>, transform_indices = @transform_7, window_bounds = array<i64: 128, 128>}, {pipeline_mode = #tpu.pipeline_mode<synchronous>, transform_indices = @transform_8, window_bounds = array<i64: 1, 128>}, {pipeline_mode = #tpu.pipeline_mode<synchronous>, transform_indices = @transform_9, window_bounds = array<i64: 128, 128>}, {pipeline_mode = #tpu.pipeline_mode<synchronous>, transform_indices = @transform_10, window_bounds = array<i64: 1, 128>}, {transform_indices = @transform_11, window_bounds = array<i64: 8, 128>}]} {
    %c0 = arith.constant 0 : index
    %c0_0 = arith.constant 0 : index
    %0 = vector.load %arg1[%c0, %c0_0] : memref<8x1024xf32, #tpu.memory_space<vmem>>, vector<8x192xf32>
    %c0_1 = arith.constant 0 : index
    %c0_2 = arith.constant 0 : index
    %1 = vector.load %arg2[%c0_1, %c0_2] : memref<192x128xf32, #tpu.memory_space<vmem>>, vector<192x128xf32>
    %cst = arith.constant dense<0.000000e+00> : vector<8x128xf32>
    %2 = tpu.matmul %0, %1, %cst {dimension_numbers = #tpu.dot_dimension_numbers<[1], [0], [0], [1], [0, 0, 1, 1], [], []>} : vector<8x192xf32>, vector<192x128xf32>, vector<8x128xf32> -> vector<8x128xf32>
    %c0_3 = arith.constant 0 : index
    %c0_4 = arith.constant 0 : index
    %3 = vector.load %arg3[%c0_3, %c0_4] : memref<1x128xf32, #tpu.memory_space<vmem>>, vector<1x128xf32>
    %4 = vector.broadcast %3 : vector<1x128xf32> to vector<8x128xf32>
    %5 = arith.addf %2, %4 : vector<8x128xf32>
    %cst_5 = arith.constant 5.000000e-01 : f32
    %6 = vector.broadcast %cst_5 : f32 to vector<8x128xf32>
    %7 = arith.mulf %6, %5 : vector<8x128xf32>
    %8 = math.tanh %7 : vector<8x128xf32>
    %cst_6 = arith.constant 5.000000e-01 : f32
    %9 = vector.broadcast %cst_6 : f32 to vector<8x128xf32>
    %10 = arith.mulf %9, %8 : vector<8x128xf32>
    %cst_7 = arith.constant 5.000000e-01 : f32
    %11 = vector.broadcast %cst_7 : f32 to vector<8x128xf32>
    %12 = arith.addf %10, %11 : vector<8x128xf32>
    %13 = arith.mulf %5, %12 : vector<8x128xf32>
    %c0_8 = arith.constant 0 : index
    %c0_9 = arith.constant 0 : index
    %14 = vector.load %arg13[%c0_8, %c0_9] : memref<8x1792xf32, #tpu.memory_space<vmem>>, vector<8x128xf32>
    tpu.vector_store %arg13[%c0_8, %c0_9], %13 {strides = array<i32>} : memref<8x1792xf32, #tpu.memory_space<vmem>>, vector<8x128xf32>,
    %c0_10 = arith.constant 0 : index
    %c64 = arith.constant 64 : index
    %15 = vector.load %arg1[%c0_10, %c64] : memref<8x1024xf32, #tpu.memory_space<vmem>>, vector<8x192xf32>
    %c0_11 = arith.constant 0 : index
    %c0_12 = arith.constant 0 : index
    %16 = vector.load %arg2[%c0_11, %c0_12] : memref<192x128xf32, #tpu.memory_space<vmem>>, vector<192x128xf32>
    %cst_13 = arith.constant dense<0.000000e+00> : vector<8x128xf32>
    %17 = tpu.matmul %15, %16, %cst_13 {dimension_numbers = #tpu.dot_dimension_numbers<[1], [0], [0], [1], [0, 0, 1, 1], [], []>} : vector<8x192xf32>, vector<192x128xf32>, vector<8x128xf32> -> vector<8x128xf32>
    %c0_14 = arith.constant 0 : index
    %c0_15 = arith.constant 0 : index
    %18 = vector.load %arg3[%c0_14, %c0_15] : memref<1x128xf32, #tpu.memory_space<vmem>>, vector<1x128xf32>
    %19 = vector.broadcast %18 : vector<1x128xf32> to vector<8x128xf32>
    %20 = arith.addf %17, %19 : vector<8x128xf32>
    %cst_16 = arith.constant 5.000000e-01 : f32
    %21 = vector.broadcast %cst_16 : f32 to vector<8x128xf32>
    %22 = arith.mulf %21, %20 : vector<8x128xf32>
    %23 = math.tanh %22 : vector<8x128xf32>
    %cst_17 = arith.constant 5.000000e-01 : f32
    %24 = vector.broadcast %cst_17 : f32 to vector<8x128xf32>
    %25 = arith.mulf %24, %23 : vector<8x128xf32>
    %cst_18 = arith.constant 5.000000e-01 : f32
    %26 = vector.broadcast %cst_18 : f32 to vector<8x128xf32>
    %27 = arith.addf %25, %26 : vector<8x128xf32>
    %28 = arith.mulf %20, %27 : vector<8x128xf32>
    %c0_19 = arith.constant 0 : index
    %c128 = arith.constant 128 : index
    %29 = vector.load %arg13[%c0_19, %c128] : memref<8x1792xf32, #tpu.memory_space<vmem>>, vector<8x128xf32>
    tpu.vector_store %arg13[%c0_19, %c128], %28 {strides = array<i32>} : memref<8x1792xf32, #tpu.memory_space<vmem>>, vector<8x128xf32>,
    %c0_20 = arith.constant 0 : index
    %c128_21 = arith.constant 128 : index
    %30 = vector.load %arg1[%c0_20, %c128_21] : memref<8x1024xf32, #tpu.memory_space<vmem>>, vector<8x192xf32>
    %c0_22 = arith.constant 0 : index
    %c0_23 = arith.constant 0 : index
    %31 = vector.load %arg2[%c0_22, %c0_23] : memref<192x128xf32, #tpu.memory_space<vmem>>, vector<192x128xf32>
    %cst_24 = arith.constant dense<0.000000e+00> : vector<8x128xf32>
    %32 = tpu.matmul %30, %31, %cst_24 {dimension_numbers = #tpu.dot_dimension_numbers<[1], [0], [0], [1], [0, 0, 1, 1], [], []>} : vector<8x192xf32>, vector<192x128xf32>, vector<8x128xf32> -> vector<8x128xf32>
    %c0_25 = arith.constant 0 : index
    %c0_26 = arith.constant 0 : index
    %33 = vector.load %arg3[%c0_25, %c0_26] : memref<1x128xf32, #tpu.memory_space<vmem>>, vector<1x128xf32>
    %34 = vector.broadcast %33 : vector<1x128xf32> to vector<8x128xf32>
    %35 = arith.addf %32, %34 : vector<8x128xf32>
    %cst_27 = arith.constant 5.000000e-01 : f32
    %36 = vector.broadcast %cst_27 : f32 to vector<8x128xf32>
    %37 = arith.mulf %36, %35 : vector<8x128xf32>
    %38 = math.tanh %37 : vector<8x128xf32>
    %cst_28 = arith.constant 5.000000e-01 : f32
    %39 = vector.broadcast %cst_28 : f32 to vector<8x128xf32>
    %40 = arith.mulf %39, %38 : vector<8x128xf32>
    %cst_29 = arith.constant 5.000000e-01 : f32
    %41 = vector.broadcast %cst_29 : f32 to vector<8x128xf32>
    %42 = arith.addf %40, %41 : vector<8x128xf32>
    %43 = arith.mulf %35, %42 : vector<8x128xf32>
    %c0_30 = arith.constant 0 : index
    %c256 = arith.constant 256 : index
    %44 = vector.load %arg13[%c0_30, %c256] : memref<8x1792xf32, #tpu.memory_space<vmem>>, vector<8x128xf32>
    tpu.vector_store %arg13[%c0_30, %c256], %43 {strides = array<i32>} : memref<8x1792xf32, #tpu.memory_space<vmem>>, vector<8x128xf32>,
    %c0_31 = arith.constant 0 : index
    %c192 = arith.constant 192 : index
    %45 = vector.load %arg1[%c0_31, %c192] : memref<8x1024xf32, #tpu.memory_space<vmem>>, vector<8x192xf32>
    %c0_32 = arith.constant 0 : index
    %c0_33 = arith.constant 0 : index
    %46 = vector.load %arg2[%c0_32, %c0_33] : memref<192x128xf32, #tpu.memory_space<vmem>>, vector<192x128xf32>
    %cst_34 = arith.constant dense<0.000000e+00> : vector<8x128xf32>
    %47 = tpu.matmul %45, %46, %cst_34 {dimension_numbers = #tpu.dot_dimension_numbers<[1], [0], [0], [1], [0, 0, 1, 1], [], []>} : vector<8x192xf32>, vector<192x128xf32>, vector<8x128xf32> -> vector<8x128xf32>
    %c0_35 = arith.constant 0 : index
    %c0_36 = arith.constant 0 : index
    %48 = vector.load %arg3[%c0_35, %c0_36] : memref<1x128xf32, #tpu.memory_space<vmem>>, vector<1x128xf32>
    %49 = vector.broadcast %48 : vector<1x128xf32> to vector<8x128xf32>
    %50 = arith.addf %47, %49 : vector<8x128xf32>
    %cst_37 = arith.constant 5.000000e-01 : f32
    %51 = vector.broadcast %cst_37 : f32 to vector<8x128xf32>
    %52 = arith.mulf %51, %50 : vector<8x128xf32>
    %53 = math.tanh %52 : vector<8x128xf32>
    %cst_38 = arith.constant 5.000000e-01 : f32
    %54 = vector.broadcast %cst_38 : f32 to vector<8x128xf32>
    %55 = arith.mulf %54, %53 : vector<8x128xf32>
    %cst_39 = arith.constant 5.000000e-01 : f32
    %56 = vector.broadcast %cst_39 : f32 to vector<8x128xf32>
    %57 = arith.addf %55, %56 : vector<8x128xf32>
    %58 = arith.mulf %50, %57 : vector<8x128xf32>
    %c0_40 = arith.constant 0 : index
    %c384 = arith.constant 384 : index
    %59 = vector.load %arg13[%c0_40, %c384] : memref<8x1792xf32, #tpu.memory_space<vmem>>, vector<8x128xf32>
    tpu.vector_store %arg13[%c0_40, %c384], %58 {strides = array<i32>} : memref<8x1792xf32, #tpu.memory_space<vmem>>, vector<8x128xf32>,
    %c0_41 = arith.constant 0 : index
    %c256_42 = arith.constant 256 : index
    %60 = vector.load %arg1[%c0_41, %c256_42] : memref<8x1024xf32, #tpu.memory_space<vmem>>, vector<8x192xf32>
    %c0_43 = arith.constant 0 : index
    %c0_44 = arith.constant 0 : index
    %61 = vector.load %arg2[%c0_43, %c0_44] : memref<192x128xf32, #tpu.memory_space<vmem>>, vector<192x128xf32>
    %cst_45 = arith.constant dense<0.000000e+00> : vector<8x128xf32>
    %62 = tpu.matmul %60, %61, %cst_45 {dimension_numbers = #tpu.dot_dimension_numbers<[1], [0], [0], [1], [0, 0, 1, 1], [], []>} : vector<8x192xf32>, vector<192x128xf32>, vector<8x128xf32> -> vector<8x128xf32>
    %c0_46 = arith.constant 0 : index
    %c0_47 = arith.constant 0 : index
    %63 = vector.load %arg3[%c0_46, %c0_47] : memref<1x128xf32, #tpu.memory_space<vmem>>, vector<1x128xf32>
    %64 = vector.broadcast %63 : vector<1x128xf32> to vector<8x128xf32>
    %65 = arith.addf %62, %64 : vector<8x128xf32>
    %cst_48 = arith.constant 5.000000e-01 : f32
    %66 = vector.broadcast %cst_48 : f32 to vector<8x128xf32>
    %67 = arith.mulf %66, %65 : vector<8x128xf32>
    %68 = math.tanh %67 : vector<8x128xf32>
    %cst_49 = arith.constant 5.000000e-01 : f32
    %69 = vector.broadcast %cst_49 : f32 to vector<8x128xf32>
    %70 = arith.mulf %69, %68 : vector<8x128xf32>
    %cst_50 = arith.constant 5.000000e-01 : f32
    %71 = vector.broadcast %cst_50 : f32 to vector<8x128xf32>
    %72 = arith.addf %70, %71 : vector<8x128xf32>
    %73 = arith.mulf %65, %72 : vector<8x128xf32>
    %c0_51 = arith.constant 0 : index
    %c512 = arith.constant 512 : index
    %74 = vector.load %arg13[%c0_51, %c512] : memref<8x1792xf32, #tpu.memory_space<vmem>>, vector<8x128xf32>
    tpu.vector_store %arg13[%c0_51, %c512], %73 {strides = array<i32>} : memref<8x1792xf32, #tpu.memory_space<vmem>>, vector<8x128xf32>,
    %c0_52 = arith.constant 0 : index
    %c320 = arith.constant 320 : index
    %75 = vector.load %arg1[%c0_52, %c320] : memref<8x1024xf32, #tpu.memory_space<vmem>>, vector<8x192xf32>
    %c0_53 = arith.constant 0 : index
    %c0_54 = arith.constant 0 : index
    %76 = vector.load %arg2[%c0_53, %c0_54] : memref<192x128xf32, #tpu.memory_space<vmem>>, vector<192x128xf32>
    %cst_55 = arith.constant dense<0.000000e+00> : vector<8x128xf32>
    %77 = tpu.matmul %75, %76, %cst_55 {dimension_numbers = #tpu.dot_dimension_numbers<[1], [0], [0], [1], [0, 0, 1, 1], [], []>} : vector<8x192xf32>, vector<192x128xf32>, vector<8x128xf32> -> vector<8x128xf32>
    %c0_56 = arith.constant 0 : index
    %c0_57 = arith.constant 0 : index
    %78 = vector.load %arg3[%c0_56, %c0_57] : memref<1x128xf32, #tpu.memory_space<vmem>>, vector<1x128xf32>
    %79 = vector.broadcast %78 : vector<1x128xf32> to vector<8x128xf32>
    %80 = arith.addf %77, %79 : vector<8x128xf32>
    %cst_58 = arith.constant 5.000000e-01 : f32
    %81 = vector.broadcast %cst_58 : f32 to vector<8x128xf32>
    %82 = arith.mulf %81, %80 : vector<8x128xf32>
    %83 = math.tanh %82 : vector<8x128xf32>
    %cst_59 = arith.constant 5.000000e-01 : f32
    %84 = vector.broadcast %cst_59 : f32 to vector<8x128xf32>
    %85 = arith.mulf %84, %83 : vector<8x128xf32>
    %cst_60 = arith.constant 5.000000e-01 : f32
    %86 = vector.broadcast %cst_60 : f32 to vector<8x128xf32>
    %87 = arith.addf %85, %86 : vector<8x128xf32>
    %88 = arith.mulf %80, %87 : vector<8x128xf32>
    %c0_61 = arith.constant 0 : index
    %c640 = arith.constant 640 : index
    %89 = vector.load %arg13[%c0_61, %c640] : memref<8x1792xf32, #tpu.memory_space<vmem>>, vector<8x128xf32>
    tpu.vector_store %arg13[%c0_61, %c640], %88 {strides = array<i32>} : memref<8x1792xf32, #tpu.memory_space<vmem>>, vector<8x128xf32>,
    %c0_62 = arith.constant 0 : index
    %c384_63 = arith.constant 384 : index
    %90 = vector.load %arg1[%c0_62, %c384_63] : memref<8x1024xf32, #tpu.memory_space<vmem>>, vector<8x192xf32>
    %c0_64 = arith.constant 0 : index
    %c0_65 = arith.constant 0 : index
    %91 = vector.load %arg2[%c0_64, %c0_65] : memref<192x128xf32, #tpu.memory_space<vmem>>, vector<192x128xf32>
    %cst_66 = arith.constant dense<0.000000e+00> : vector<8x128xf32>
    %92 = tpu.matmul %90, %91, %cst_66 {dimension_numbers = #tpu.dot_dimension_numbers<[1], [0], [0], [1], [0, 0, 1, 1], [], []>} : vector<8x192xf32>, vector<192x128xf32>, vector<8x128xf32> -> vector<8x128xf32>
    %c0_67 = arith.constant 0 : index
    %c0_68 = arith.constant 0 : index
    %93 = vector.load %arg3[%c0_67, %c0_68] : memref<1x128xf32, #tpu.memory_space<vmem>>, vector<1x128xf32>
    %94 = vector.broadcast %93 : vector<1x128xf32> to vector<8x128xf32>
    %95 = arith.addf %92, %94 : vector<8x128xf32>
    %cst_69 = arith.constant 5.000000e-01 : f32
    %96 = vector.broadcast %cst_69 : f32 to vector<8x128xf32>
    %97 = arith.mulf %96, %95 : vector<8x128xf32>
    %98 = math.tanh %97 : vector<8x128xf32>
    %cst_70 = arith.constant 5.000000e-01 : f32
    %99 = vector.broadcast %cst_70 : f32 to vector<8x128xf32>
    %100 = arith.mulf %99, %98 : vector<8x128xf32>
    %cst_71 = arith.constant 5.000000e-01 : f32
    %101 = vector.broadcast %cst_71 : f32 to vector<8x128xf32>
    %102 = arith.addf %100, %101 : vector<8x128xf32>
    %103 = arith.mulf %95, %102 : vector<8x128xf32>
    %c0_72 = arith.constant 0 : index
    %c768 = arith.constant 768 : index
    %104 = vector.load %arg13[%c0_72, %c768] : memref<8x1792xf32, #tpu.memory_space<vmem>>, vector<8x128xf32>
    tpu.vector_store %arg13[%c0_72, %c768], %103 {strides = array<i32>} : memref<8x1792xf32, #tpu.memory_space<vmem>>, vector<8x128xf32>,
    %c0_73 = arith.constant 0 : index
    %c448 = arith.constant 448 : index
    %105 = vector.load %arg1[%c0_73, %c448] : memref<8x1024xf32, #tpu.memory_space<vmem>>, vector<8x192xf32>
    %c0_74 = arith.constant 0 : index
    %c0_75 = arith.constant 0 : index
    %106 = vector.load %arg2[%c0_74, %c0_75] : memref<192x128xf32, #tpu.memory_space<vmem>>, vector<192x128xf32>
    %cst_76 = arith.constant dense<0.000000e+00> : vector<8x128xf32>
    %107 = tpu.matmul %105, %106, %cst_76 {dimension_numbers = #tpu.dot_dimension_numbers<[1], [0], [0], [1], [0, 0, 1, 1], [], []>} : vector<8x192xf32>, vector<192x128xf32>, vector<8x128xf32> -> vector<8x128xf32>
    %c0_77 = arith.constant 0 : index
    %c0_78 = arith.constant 0 : index
    %108 = vector.load %arg3[%c0_77, %c0_78] : memref<1x128xf32, #tpu.memory_space<vmem>>, vector<1x128xf32>
    %109 = vector.broadcast %108 : vector<1x128xf32> to vector<8x128xf32>
    %110 = arith.addf %107, %109 : vector<8x128xf32>
    %cst_79 = arith.constant 5.000000e-01 : f32
    %111 = vector.broadcast %cst_79 : f32 to vector<8x128xf32>
    %112 = arith.mulf %111, %110 : vector<8x128xf32>
    %113 = math.tanh %112 : vector<8x128xf32>
    %cst_80 = arith.constant 5.000000e-01 : f32
    %114 = vector.broadcast %cst_80 : f32 to vector<8x128xf32>
    %115 = arith.mulf %114, %113 : vector<8x128xf32>
    %cst_81 = arith.constant 5.000000e-01 : f32
    %116 = vector.broadcast %cst_81 : f32 to vector<8x128xf32>
    %117 = arith.addf %115, %116 : vector<8x128xf32>
    %118 = arith.mulf %110, %117 : vector<8x128xf32>
    %c0_82 = arith.constant 0 : index
    %c896 = arith.constant 896 : index
    %119 = vector.load %arg13[%c0_82, %c896] : memref<8x1792xf32, #tpu.memory_space<vmem>>, vector<8x128xf32>
    tpu.vector_store %arg13[%c0_82, %c896], %118 {strides = array<i32>} : memref<8x1792xf32, #tpu.memory_space<vmem>>, vector<8x128xf32>,
    %c0_83 = arith.constant 0 : index
    %c512_84 = arith.constant 512 : index
    %120 = vector.load %arg1[%c0_83, %c512_84] : memref<8x1024xf32, #tpu.memory_space<vmem>>, vector<8x192xf32>
    %c0_85 = arith.constant 0 : index
    %c0_86 = arith.constant 0 : index
    %121 = vector.load %arg2[%c0_85, %c0_86] : memref<192x128xf32, #tpu.memory_space<vmem>>, vector<192x128xf32>
    %cst_87 = arith.constant dense<0.000000e+00> : vector<8x128xf32>
    %122 = tpu.matmul %120, %121, %cst_87 {dimension_numbers = #tpu.dot_dimension_numbers<[1], [0], [0], [1], [0, 0, 1, 1], [], []>} : vector<8x192xf32>, vector<192x128xf32>, vector<8x128xf32> -> vector<8x128xf32>
    %c0_88 = arith.constant 0 : index
    %c0_89 = arith.constant 0 : index
    %123 = vector.load %arg3[%c0_88, %c0_89] : memref<1x128xf32, #tpu.memory_space<vmem>>, vector<1x128xf32>
    %124 = vector.broadcast %123 : vector<1x128xf32> to vector<8x128xf32>
    %125 = arith.addf %122, %124 : vector<8x128xf32>
    %cst_90 = arith.constant 5.000000e-01 : f32
    %126 = vector.broadcast %cst_90 : f32 to vector<8x128xf32>
    %127 = arith.mulf %126, %125 : vector<8x128xf32>
    %128 = math.tanh %127 : vector<8x128xf32>
    %cst_91 = arith.constant 5.000000e-01 : f32
    %129 = vector.broadcast %cst_91 : f32 to vector<8x128xf32>
    %130 = arith.mulf %129, %128 : vector<8x128xf32>
    %cst_92 = arith.constant 5.000000e-01 : f32
    %131 = vector.broadcast %cst_92 : f32 to vector<8x128xf32>
    %132 = arith.addf %130, %131 : vector<8x128xf32>
    %133 = arith.mulf %125, %132 : vector<8x128xf32>
    %c0_93 = arith.constant 0 : index
    %c1024 = arith.constant 1024 : index
    %134 = vector.load %arg13[%c0_93, %c1024] : memref<8x1792xf32, #tpu.memory_space<vmem>>, vector<8x128xf32>
    tpu.vector_store %arg13[%c0_93, %c1024], %133 {strides = array<i32>} : memref<8x1792xf32, #tpu.memory_space<vmem>>, vector<8x128xf32>,
    %c0_94 = arith.constant 0 : index
    %c576 = arith.constant 576 : index
    %135 = vector.load %arg1[%c0_94, %c576] : memref<8x1024xf32, #tpu.memory_space<vmem>>, vector<8x192xf32>
    %c0_95 = arith.constant 0 : index
    %c0_96 = arith.constant 0 : index
    %136 = vector.load %arg2[%c0_95, %c0_96] : memref<192x128xf32, #tpu.memory_space<vmem>>, vector<192x128xf32>
    %cst_97 = arith.constant dense<0.000000e+00> : vector<8x128xf32>
    %137 = tpu.matmul %135, %136, %cst_97 {dimension_numbers = #tpu.dot_dimension_numbers<[1], [0], [0], [1], [0, 0, 1, 1], [], []>} : vector<8x192xf32>, vector<192x128xf32>, vector<8x128xf32> -> vector<8x128xf32>
    %c0_98 = arith.constant 0 : index
    %c0_99 = arith.constant 0 : index
    %138 = vector.load %arg3[%c0_98, %c0_99] : memref<1x128xf32, #tpu.memory_space<vmem>>, vector<1x128xf32>
    %139 = vector.broadcast %138 : vector<1x128xf32> to vector<8x128xf32>
    %140 = arith.addf %137, %139 : vector<8x128xf32>
    %cst_100 = arith.constant 5.000000e-01 : f32
    %141 = vector.broadcast %cst_100 : f32 to vector<8x128xf32>
    %142 = arith.mulf %141, %140 : vector<8x128xf32>
    %143 = math.tanh %142 : vector<8x128xf32>
    %cst_101 = arith.constant 5.000000e-01 : f32
    %144 = vector.broadcast %cst_101 : f32 to vector<8x128xf32>
    %145 = arith.mulf %144, %143 : vector<8x128xf32>
    %cst_102 = arith.constant 5.000000e-01 : f32
    %146 = vector.broadcast %cst_102 : f32 to vector<8x128xf32>
    %147 = arith.addf %145, %146 : vector<8x128xf32>
    %148 = arith.mulf %140, %147 : vector<8x128xf32>
    %c0_103 = arith.constant 0 : index
    %c1152 = arith.constant 1152 : index
    %149 = vector.load %arg13[%c0_103, %c1152] : memref<8x1792xf32, #tpu.memory_space<vmem>>, vector<8x128xf32>
    tpu.vector_store %arg13[%c0_103, %c1152], %148 {strides = array<i32>} : memref<8x1792xf32, #tpu.memory_space<vmem>>, vector<8x128xf32>,
    %c0_104 = arith.constant 0 : index
    %c640_105 = arith.constant 640 : index
    %150 = vector.load %arg1[%c0_104, %c640_105] : memref<8x1024xf32, #tpu.memory_space<vmem>>, vector<8x192xf32>
    %c0_106 = arith.constant 0 : index
    %c0_107 = arith.constant 0 : index
    %151 = vector.load %arg2[%c0_106, %c0_107] : memref<192x128xf32, #tpu.memory_space<vmem>>, vector<192x128xf32>
    %cst_108 = arith.constant dense<0.000000e+00> : vector<8x128xf32>
    %152 = tpu.matmul %150, %151, %cst_108 {dimension_numbers = #tpu.dot_dimension_numbers<[1], [0], [0], [1], [0, 0, 1, 1], [], []>} : vector<8x192xf32>, vector<192x128xf32>, vector<8x128xf32> -> vector<8x128xf32>
    %c0_109 = arith.constant 0 : index
    %c0_110 = arith.constant 0 : index
    %153 = vector.load %arg3[%c0_109, %c0_110] : memref<1x128xf32, #tpu.memory_space<vmem>>, vector<1x128xf32>
    %154 = vector.broadcast %153 : vector<1x128xf32> to vector<8x128xf32>
    %155 = arith.addf %152, %154 : vector<8x128xf32>
    %cst_111 = arith.constant 5.000000e-01 : f32
    %156 = vector.broadcast %cst_111 : f32 to vector<8x128xf32>
    %157 = arith.mulf %156, %155 : vector<8x128xf32>
    %158 = math.tanh %157 : vector<8x128xf32>
    %cst_112 = arith.constant 5.000000e-01 : f32
    %159 = vector.broadcast %cst_112 : f32 to vector<8x128xf32>
    %160 = arith.mulf %159, %158 : vector<8x128xf32>
    %cst_113 = arith.constant 5.000000e-01 : f32
    %161 = vector.broadcast %cst_113 : f32 to vector<8x128xf32>
    %162 = arith.addf %160, %161 : vector<8x128xf32>
    %163 = arith.mulf %155, %162 : vector<8x128xf32>
    %c0_114 = arith.constant 0 : index
    %c1280 = arith.constant 1280 : index
    %164 = vector.load %arg13[%c0_114, %c1280] : memref<8x1792xf32, #tpu.memory_space<vmem>>, vector<8x128xf32>
    tpu.vector_store %arg13[%c0_114, %c1280], %163 {strides = array<i32>} : memref<8x1792xf32, #tpu.memory_space<vmem>>, vector<8x128xf32>,
    %c0_115 = arith.constant 0 : index
    %c704 = arith.constant 704 : index
    %165 = vector.load %arg1[%c0_115, %c704] : memref<8x1024xf32, #tpu.memory_space<vmem>>, vector<8x192xf32>
    %c0_116 = arith.constant 0 : index
    %c0_117 = arith.constant 0 : index
    %166 = vector.load %arg2[%c0_116, %c0_117] : memref<192x128xf32, #tpu.memory_space<vmem>>, vector<192x128xf32>
    %cst_118 = arith.constant dense<0.000000e+00> : vector<8x128xf32>
    %167 = tpu.matmul %165, %166, %cst_118 {dimension_numbers = #tpu.dot_dimension_numbers<[1], [0], [0], [1], [0, 0, 1, 1], [], []>} : vector<8x192xf32>, vector<192x128xf32>, vector<8x128xf32> -> vector<8x128xf32>
    %c0_119 = arith.constant 0 : index
    %c0_120 = arith.constant 0 : index
    %168 = vector.load %arg3[%c0_119, %c0_120] : memref<1x128xf32, #tpu.memory_space<vmem>>, vector<1x128xf32>
    %169 = vector.broadcast %168 : vector<1x128xf32> to vector<8x128xf32>
    %170 = arith.addf %167, %169 : vector<8x128xf32>
    %cst_121 = arith.constant 5.000000e-01 : f32
    %171 = vector.broadcast %cst_121 : f32 to vector<8x128xf32>
    %172 = arith.mulf %171, %170 : vector<8x128xf32>
    %173 = math.tanh %172 : vector<8x128xf32>
    %cst_122 = arith.constant 5.000000e-01 : f32
    %174 = vector.broadcast %cst_122 : f32 to vector<8x128xf32>
    %175 = arith.mulf %174, %173 : vector<8x128xf32>
    %cst_123 = arith.constant 5.000000e-01 : f32
    %176 = vector.broadcast %cst_123 : f32 to vector<8x128xf32>
    %177 = arith.addf %175, %176 : vector<8x128xf32>
    %178 = arith.mulf %170, %177 : vector<8x128xf32>
    %c0_124 = arith.constant 0 : index
    %c1408 = arith.constant 1408 : index
    %179 = vector.load %arg13[%c0_124, %c1408] : memref<8x1792xf32, #tpu.memory_space<vmem>>, vector<8x128xf32>
    tpu.vector_store %arg13[%c0_124, %c1408], %178 {strides = array<i32>} : memref<8x1792xf32, #tpu.memory_space<vmem>>, vector<8x128xf32>,
    %c0_125 = arith.constant 0 : index
    %c768_126 = arith.constant 768 : index
    %180 = vector.load %arg1[%c0_125, %c768_126] : memref<8x1024xf32, #tpu.memory_space<vmem>>, vector<8x192xf32>
    %c0_127 = arith.constant 0 : index
    %c0_128 = arith.constant 0 : index
    %181 = vector.load %arg2[%c0_127, %c0_128] : memref<192x128xf32, #tpu.memory_space<vmem>>, vector<192x128xf32>
    %cst_129 = arith.constant dense<0.000000e+00> : vector<8x128xf32>
    %182 = tpu.matmul %180, %181, %cst_129 {dimension_numbers = #tpu.dot_dimension_numbers<[1], [0], [0], [1], [0, 0, 1, 1], [], []>} : vector<8x192xf32>, vector<192x128xf32>, vector<8x128xf32> -> vector<8x128xf32>
    %c0_130 = arith.constant 0 : index
    %c0_131 = arith.constant 0 : index
    %183 = vector.load %arg3[%c0_130, %c0_131] : memref<1x128xf32, #tpu.memory_space<vmem>>, vector<1x128xf32>
    %184 = vector.broadcast %183 : vector<1x128xf32> to vector<8x128xf32>
    %185 = arith.addf %182, %184 : vector<8x128xf32>
    %cst_132 = arith.constant 5.000000e-01 : f32
    %186 = vector.broadcast %cst_132 : f32 to vector<8x128xf32>
    %187 = arith.mulf %186, %185 : vector<8x128xf32>
    %188 = math.tanh %187 : vector<8x128xf32>
    %cst_133 = arith.constant 5.000000e-01 : f32
    %189 = vector.broadcast %cst_133 : f32 to vector<8x128xf32>
    %190 = arith.mulf %189, %188 : vector<8x128xf32>
    %cst_134 = arith.constant 5.000000e-01 : f32
    %191 = vector.broadcast %cst_134 : f32 to vector<8x128xf32>
    %192 = arith.addf %190, %191 : vector<8x128xf32>
    %193 = arith.mulf %185, %192 : vector<8x128xf32>
    %c0_135 = arith.constant 0 : index
    %c1536 = arith.constant 1536 : index
    %194 = vector.load %arg13[%c0_135, %c1536] : memref<8x1792xf32, #tpu.memory_space<vmem>>, vector<8x128xf32>
    tpu.vector_store %arg13[%c0_135, %c1536], %193 {strides = array<i32>} : memref<8x1792xf32, #tpu.memory_space<vmem>>, vector<8x128xf32>,
    %c0_136 = arith.constant 0 : index
    %c832 = arith.constant 832 : index
    %195 = vector.load %arg1[%c0_136, %c832] : memref<8x1024xf32, #tpu.memory_space<vmem>>, vector<8x192xf32>
    %c0_137 = arith.constant 0 : index
    %c0_138 = arith.constant 0 : index
    %196 = vector.load %arg2[%c0_137, %c0_138] : memref<192x128xf32, #tpu.memory_space<vmem>>, vector<192x128xf32>
    %cst_139 = arith.constant dense<0.000000e+00> : vector<8x128xf32>
    %197 = tpu.matmul %195, %196, %cst_139 {dimension_numbers = #tpu.dot_dimension_numbers<[1], [0], [0], [1], [0, 0, 1, 1], [], []>} : vector<8x192xf32>, vector<192x128xf32>, vector<8x128xf32> -> vector<8x128xf32>
    %c0_140 = arith.constant 0 : index
    %c0_141 = arith.constant 0 : index
    %198 = vector.load %arg3[%c0_140, %c0_141] : memref<1x128xf32, #tpu.memory_space<vmem>>, vector<1x128xf32>
    %199 = vector.broadcast %198 : vector<1x128xf32> to vector<8x128xf32>
    %200 = arith.addf %197, %199 : vector<8x128xf32>
    %cst_142 = arith.constant 5.000000e-01 : f32
    %201 = vector.broadcast %cst_142 : f32 to vector<8x128xf32>
    %202 = arith.mulf %201, %200 : vector<8x128xf32>
    %203 = math.tanh %202 : vector<8x128xf32>
    %cst_143 = arith.constant 5.000000e-01 : f32
    %204 = vector.broadcast %cst_143 : f32 to vector<8x128xf32>
    %205 = arith.mulf %204, %203 : vector<8x128xf32>
    %cst_144 = arith.constant 5.000000e-01 : f32
    %206 = vector.broadcast %cst_144 : f32 to vector<8x128xf32>
    %207 = arith.addf %205, %206 : vector<8x128xf32>
    %208 = arith.mulf %200, %207 : vector<8x128xf32>
    %c0_145 = arith.constant 0 : index
    %c1664 = arith.constant 1664 : index
    %209 = vector.load %arg13[%c0_145, %c1664] : memref<8x1792xf32, #tpu.memory_space<vmem>>, vector<8x128xf32>
    tpu.vector_store %arg13[%c0_145, %c1664], %208 {strides = array<i32>} : memref<8x1792xf32, #tpu.memory_space<vmem>>, vector<8x128xf32>,
    %c0_146 = arith.constant 0 : index
    %c0_147 = arith.constant 0 : index
    %210 = vector.load %arg13[%c0_146, %c0_147] : memref<8x1792xf32, #tpu.memory_space<vmem>>, vector<8x768xf32>
    %c0_148 = arith.constant 0 : index
    %c0_149 = arith.constant 0 : index
    %211 = vector.load %arg4[%c0_148, %c0_149] : memref<768x128xf32, #tpu.memory_space<vmem>>, vector<768x128xf32>
    %cst_150 = arith.constant dense<0.000000e+00> : vector<8x128xf32>
    %212 = tpu.matmul %210, %211, %cst_150 {dimension_numbers = #tpu.dot_dimension_numbers<[1], [0], [0], [1], [0, 0, 1, 1], [], []>} : vector<8x768xf32>, vector<768x128xf32>, vector<8x128xf32> -> vector<8x128xf32>
    %c0_151 = arith.constant 0 : index
    %c0_152 = arith.constant 0 : index
    %213 = vector.load %arg5[%c0_151, %c0_152] : memref<1x128xf32, #tpu.memory_space<vmem>>, vector<1x128xf32>
    %214 = vector.broadcast %213 : vector<1x128xf32> to vector<8x128xf32>
    %215 = arith.addf %212, %214 : vector<8x128xf32>
    %cst_153 = arith.constant 5.000000e-01 : f32
    %216 = vector.broadcast %cst_153 : f32 to vector<8x128xf32>
    %217 = arith.mulf %216, %215 : vector<8x128xf32>
    %218 = math.tanh %217 : vector<8x128xf32>
    %cst_154 = arith.constant 5.000000e-01 : f32
    %219 = vector.broadcast %cst_154 : f32 to vector<8x128xf32>
    %220 = arith.mulf %219, %218 : vector<8x128xf32>
    %cst_155 = arith.constant 5.000000e-01 : f32
    %221 = vector.broadcast %cst_155 : f32 to vector<8x128xf32>
    %222 = arith.addf %220, %221 : vector<8x128xf32>
    %223 = arith.mulf %215, %222 : vector<8x128xf32>
    %c0_156 = arith.constant 0 : index
    %c0_157 = arith.constant 0 : index
    %224 = vector.load %arg14[%c0_156, %c0_157] : memref<8x640xf32, #tpu.memory_space<vmem>>, vector<8x128xf32>
    tpu.vector_store %arg14[%c0_156, %c0_157], %223 {strides = array<i32>} : memref<8x640xf32, #tpu.memory_space<vmem>>, vector<8x128xf32>,
    %c0_158 = arith.constant 0 : index
    %c256_159 = arith.constant 256 : index
    %225 = vector.load %arg13[%c0_158, %c256_159] : memref<8x1792xf32, #tpu.memory_space<vmem>>, vector<8x768xf32>
    %c0_160 = arith.constant 0 : index
    %c0_161 = arith.constant 0 : index
    %226 = vector.load %arg4[%c0_160, %c0_161] : memref<768x128xf32, #tpu.memory_space<vmem>>, vector<768x128xf32>
    %cst_162 = arith.constant dense<0.000000e+00> : vector<8x128xf32>
    %227 = tpu.matmul %225, %226, %cst_162 {dimension_numbers = #tpu.dot_dimension_numbers<[1], [0], [0], [1], [0, 0, 1, 1], [], []>} : vector<8x768xf32>, vector<768x128xf32>, vector<8x128xf32> -> vector<8x128xf32>
    %c0_163 = arith.constant 0 : index
    %c0_164 = arith.constant 0 : index
    %228 = vector.load %arg5[%c0_163, %c0_164] : memref<1x128xf32, #tpu.memory_space<vmem>>, vector<1x128xf32>
    %229 = vector.broadcast %228 : vector<1x128xf32> to vector<8x128xf32>
    %230 = arith.addf %227, %229 : vector<8x128xf32>
    %cst_165 = arith.constant 5.000000e-01 : f32
    %231 = vector.broadcast %cst_165 : f32 to vector<8x128xf32>
    %232 = arith.mulf %231, %230 : vector<8x128xf32>
    %233 = math.tanh %232 : vector<8x128xf32>
    %cst_166 = arith.constant 5.000000e-01 : f32
    %234 = vector.broadcast %cst_166 : f32 to vector<8x128xf32>
    %235 = arith.mulf %234, %233 : vector<8x128xf32>
    %cst_167 = arith.constant 5.000000e-01 : f32
    %236 = vector.broadcast %cst_167 : f32 to vector<8x128xf32>
    %237 = arith.addf %235, %236 : vector<8x128xf32>
    %238 = arith.mulf %230, %237 : vector<8x128xf32>
    %c0_168 = arith.constant 0 : index
    %c128_169 = arith.constant 128 : index
    %239 = vector.load %arg14[%c0_168, %c128_169] : memref<8x640xf32, #tpu.memory_space<vmem>>, vector<8x128xf32>
    tpu.vector_store %arg14[%c0_168, %c128_169], %238 {strides = array<i32>} : memref<8x640xf32, #tpu.memory_space<vmem>>, vector<8x128xf32>,
    %c0_170 = arith.constant 0 : index
    %c512_171 = arith.constant 512 : index
    %240 = vector.load %arg13[%c0_170, %c512_171] : memref<8x1792xf32, #tpu.memory_space<vmem>>, vector<8x768xf32>
    %c0_172 = arith.constant 0 : index
    %c0_173 = arith.constant 0 : index
    %241 = vector.load %arg4[%c0_172, %c0_173] : memref<768x128xf32, #tpu.memory_space<vmem>>, vector<768x128xf32>
    %cst_174 = arith.constant dense<0.000000e+00> : vector<8x128xf32>
    %242 = tpu.matmul %240, %241, %cst_174 {dimension_numbers = #tpu.dot_dimension_numbers<[1], [0], [0], [1], [0, 0, 1, 1], [], []>} : vector<8x768xf32>, vector<768x128xf32>, vector<8x128xf32> -> vector<8x128xf32>
    %c0_175 = arith.constant 0 : index
    %c0_176 = arith.constant 0 : index
    %243 = vector.load %arg5[%c0_175, %c0_176] : memref<1x128xf32, #tpu.memory_space<vmem>>, vector<1x128xf32>
    %244 = vector.broadcast %243 : vector<1x128xf32> to vector<8x128xf32>
    %245 = arith.addf %242, %244 : vector<8x128xf32>
    %cst_177 = arith.constant 5.000000e-01 : f32
    %246 = vector.broadcast %cst_177 : f32 to vector<8x128xf32>
    %247 = arith.mulf %246, %245 : vector<8x128xf32>
    %248 = math.tanh %247 : vector<8x128xf32>
    %cst_178 = arith.constant 5.000000e-01 : f32
    %249 = vector.broadcast %cst_178 : f32 to vector<8x128xf32>
    %250 = arith.mulf %249, %248 : vector<8x128xf32>
    %cst_179 = arith.constant 5.000000e-01 : f32
    %251 = vector.broadcast %cst_179 : f32 to vector<8x128xf32>
    %252 = arith.addf %250, %251 : vector<8x128xf32>
    %253 = arith.mulf %245, %252 : vector<8x128xf32>
    %c0_180 = arith.constant 0 : index
    %c256_181 = arith.constant 256 : index
    %254 = vector.load %arg14[%c0_180, %c256_181] : memref<8x640xf32, #tpu.memory_space<vmem>>, vector<8x128xf32>
    tpu.vector_store %arg14[%c0_180, %c256_181], %253 {strides = array<i32>} : memref<8x640xf32, #tpu.memory_space<vmem>>, vector<8x128xf32>,
    %c0_182 = arith.constant 0 : index
    %c768_183 = arith.constant 768 : index
    %255 = vector.load %arg13[%c0_182, %c768_183] : memref<8x1792xf32, #tpu.memory_space<vmem>>, vector<8x768xf32>
    %c0_184 = arith.constant 0 : index
    %c0_185 = arith.constant 0 : index
    %256 = vector.load %arg4[%c0_184, %c0_185] : memref<768x128xf32, #tpu.memory_space<vmem>>, vector<768x128xf32>
    %cst_186 = arith.constant dense<0.000000e+00> : vector<8x128xf32>
    %257 = tpu.matmul %255, %256, %cst_186 {dimension_numbers = #tpu.dot_dimension_numbers<[1], [0], [0], [1], [0, 0, 1, 1], [], []>} : vector<8x768xf32>, vector<768x128xf32>, vector<8x128xf32> -> vector<8x128xf32>
    %c0_187 = arith.constant 0 : index
    %c0_188 = arith.constant 0 : index
    %258 = vector.load %arg5[%c0_187, %c0_188] : memref<1x128xf32, #tpu.memory_space<vmem>>, vector<1x128xf32>
    %259 = vector.broadcast %258 : vector<1x128xf32> to vector<8x128xf32>
    %260 = arith.addf %257, %259 : vector<8x128xf32>
    %cst_189 = arith.constant 5.000000e-01 : f32
    %261 = vector.broadcast %cst_189 : f32 to vector<8x128xf32>
    %262 = arith.mulf %261, %260 : vector<8x128xf32>
    %263 = math.tanh %262 : vector<8x128xf32>
    %cst_190 = arith.constant 5.000000e-01 : f32
    %264 = vector.broadcast %cst_190 : f32 to vector<8x128xf32>
    %265 = arith.mulf %264, %263 : vector<8x128xf32>
    %cst_191 = arith.constant 5.000000e-01 : f32
    %266 = vector.broadcast %cst_191 : f32 to vector<8x128xf32>
    %267 = arith.addf %265, %266 : vector<8x128xf32>
    %268 = arith.mulf %260, %267 : vector<8x128xf32>
    %c0_192 = arith.constant 0 : index
    %c384_193 = arith.constant 384 : index
    %269 = vector.load %arg14[%c0_192, %c384_193] : memref<8x640xf32, #tpu.memory_space<vmem>>, vector<8x128xf32>
    tpu.vector_store %arg14[%c0_192, %c384_193], %268 {strides = array<i32>} : memref<8x640xf32, #tpu.memory_space<vmem>>, vector<8x128xf32>,
    %c0_194 = arith.constant 0 : index
    %c1024_195 = arith.constant 1024 : index
    %270 = vector.load %arg13[%c0_194, %c1024_195] : memref<8x1792xf32, #tpu.memory_space<vmem>>, vector<8x768xf32>
    %c0_196 = arith.constant 0 : index
    %c0_197 = arith.constant 0 : index
    %271 = vector.load %arg4[%c0_196, %c0_197] : memref<768x128xf32, #tpu.memory_space<vmem>>, vector<768x128xf32>
    %cst_198 = arith.constant dense<0.000000e+00> : vector<8x128xf32>
    %272 = tpu.matmul %270, %271, %cst_198 {dimension_numbers = #tpu.dot_dimension_numbers<[1], [0], [0], [1], [0, 0, 1, 1], [], []>} : vector<8x768xf32>, vector<768x128xf32>, vector<8x128xf32> -> vector<8x128xf32>
    %c0_199 = arith.constant 0 : index
    %c0_200 = arith.constant 0 : index
    %273 = vector.load %arg5[%c0_199, %c0_200] : memref<1x128xf32, #tpu.memory_space<vmem>>, vector<1x128xf32>
    %274 = vector.broadcast %273 : vector<1x128xf32> to vector<8x128xf32>
    %275 = arith.addf %272, %274 : vector<8x128xf32>
    %cst_201 = arith.constant 5.000000e-01 : f32
    %276 = vector.broadcast %cst_201 : f32 to vector<8x128xf32>
    %277 = arith.mulf %276, %275 : vector<8x128xf32>
    %278 = math.tanh %277 : vector<8x128xf32>
    %cst_202 = arith.constant 5.000000e-01 : f32
    %279 = vector.broadcast %cst_202 : f32 to vector<8x128xf32>
    %280 = arith.mulf %279, %278 : vector<8x128xf32>
    %cst_203 = arith.constant 5.000000e-01 : f32
    %281 = vector.broadcast %cst_203 : f32 to vector<8x128xf32>
    %282 = arith.addf %280, %281 : vector<8x128xf32>
    %283 = arith.mulf %275, %282 : vector<8x128xf32>
    %c0_204 = arith.constant 0 : index
    %c512_205 = arith.constant 512 : index
    %284 = vector.load %arg14[%c0_204, %c512_205] : memref<8x640xf32, #tpu.memory_space<vmem>>, vector<8x128xf32>
    tpu.vector_store %arg14[%c0_204, %c512_205], %283 {strides = array<i32>} : memref<8x640xf32, #tpu.memory_space<vmem>>, vector<8x128xf32>,
    %c0_206 = arith.constant 0 : index
    %c0_207 = arith.constant 0 : index
    %285 = vector.load %arg14[%c0_206, %c0_207] : memref<8x640xf32, #tpu.memory_space<vmem>>, vector<8x640xf32>
    %c0_208 = arith.constant 0 : index
    %c0_209 = arith.constant 0 : index
    %286 = vector.load %arg6[%c0_208, %c0_209] : memref<640x128xf32, #tpu.memory_space<vmem>>, vector<640x128xf32>
    %cst_210 = arith.constant dense<0.000000e+00> : vector<8x128xf32>
    %287 = tpu.matmul %285, %286, %cst_210 {dimension_numbers = #tpu.dot_dimension_numbers<[1], [0], [0], [1], [0, 0, 1, 1], [], []>} : vector<8x640xf32>, vector<640x128xf32>, vector<8x128xf32> -> vector<8x128xf32>
    %c0_211 = arith.constant 0 : index
    %c0_212 = arith.constant 0 : index
    %288 = vector.load %arg7[%c0_211, %c0_212] : memref<1x128xf32, #tpu.memory_space<vmem>>, vector<1x128xf32>
    %289 = vector.broadcast %288 : vector<1x128xf32> to vector<8x128xf32>
    %290 = arith.addf %287, %289 : vector<8x128xf32>
    %cst_213 = arith.constant 5.000000e-01 : f32
    %291 = vector.broadcast %cst_213 : f32 to vector<8x128xf32>
    %292 = arith.mulf %291, %290 : vector<8x128xf32>
    %293 = math.tanh %292 : vector<8x128xf32>
    %cst_214 = arith.constant 5.000000e-01 : f32
    %294 = vector.broadcast %cst_214 : f32 to vector<8x128xf32>
    %295 = arith.mulf %294, %293 : vector<8x128xf32>
    %cst_215 = arith.constant 5.000000e-01 : f32
    %296 = vector.broadcast %cst_215 : f32 to vector<8x128xf32>
    %297 = arith.addf %295, %296 : vector<8x128xf32>
    %298 = arith.mulf %290, %297 : vector<8x128xf32>
    %c0_216 = arith.constant 0 : index
    %c0_217 = arith.constant 0 : index
    %299 = vector.load %arg8[%c0_216, %c0_217] : memref<128x128xf32, #tpu.memory_space<vmem>>, vector<128x128xf32>
    %cst_218 = arith.constant dense<0.000000e+00> : vector<8x128xf32>
    %300 = tpu.matmul %298, %299, %cst_218 {dimension_numbers = #tpu.dot_dimension_numbers<[1], [0], [0], [1], [0, 0, 1, 1], [], []>} : vector<8x128xf32>, vector<128x128xf32>, vector<8x128xf32> -> vector<8x128xf32>
    %c0_219 = arith.constant 0 : index
    %c0_220 = arith.constant 0 : index
    %301 = vector.load %arg9[%c0_219, %c0_220] : memref<1x128xf32, #tpu.memory_space<vmem>>, vector<1x128xf32>
    %302 = vector.broadcast %301 : vector<1x128xf32> to vector<8x128xf32>
    %303 = arith.addf %300, %302 : vector<8x128xf32>
    %cst_221 = arith.constant 5.000000e-01 : f32
    %304 = vector.broadcast %cst_221 : f32 to vector<8x128xf32>
    %305 = arith.mulf %304, %303 : vector<8x128xf32>
    %306 = math.tanh %305 : vector<8x128xf32>
    %cst_222 = arith.constant 5.000000e-01 : f32
    %307 = vector.broadcast %cst_222 : f32 to vector<8x128xf32>
    %308 = arith.mulf %307, %306 : vector<8x128xf32>
    %cst_223 = arith.constant 5.000000e-01 : f32
    %309 = vector.broadcast %cst_223 : f32 to vector<8x128xf32>
    %310 = arith.addf %308, %309 : vector<8x128xf32>
    %311 = arith.mulf %303, %310 : vector<8x128xf32>
    %c0_224 = arith.constant 0 : index
    %c0_225 = arith.constant 0 : index
    %312 = vector.load %arg10[%c0_224, %c0_225] : memref<128x128xf32, #tpu.memory_space<vmem>>, vector<128x128xf32>
    %cst_226 = arith.constant dense<0.000000e+00> : vector<8x128xf32>
    %313 = tpu.matmul %311, %312, %cst_226 {dimension_numbers = #tpu.dot_dimension_numbers<[1], [0], [0], [1], [0, 0, 1, 1], [], []>} : vector<8x128xf32>, vector<128x128xf32>, vector<8x128xf32> -> vector<8x128xf32>
    %c0_227 = arith.constant 0 : index
    %c0_228 = arith.constant 0 : index
    %314 = vector.load %arg11[%c0_227, %c0_228] : memref<1x128xf32, #tpu.memory_space<vmem>>, vector<1x128xf32>
    %315 = vector.broadcast %314 : vector<1x128xf32> to vector<8x128xf32>
    %316 = arith.addf %313, %315 : vector<8x128xf32>
    %c0_229 = arith.constant 0 : index
    %c0_230 = arith.constant 0 : index
    %317 = vector.load %arg12[%c0_229, %c0_230] : memref<8x128xf32, #tpu.memory_space<vmem>>, vector<8x128xf32>
    tpu.vector_store %arg12[%c0_229, %c0_230], %316 {strides = array<i32>} : memref<8x128xf32, #tpu.memory_space<vmem>>, vector<8x128xf32>,
    return
  }
  func.func @transform_0(%arg0: i32) -> (i32, i32) {
    %c0_i32 = arith.constant 0 : i32
    %c0_i32_0 = arith.constant 0 : i32
    return %arg0, %c0_i32 : i32, i32
  }
  func.func @transform_1(%arg0: i32) -> (i32, i32) {
    %c0_i32 = arith.constant 0 : i32
    %c0_i32_0 = arith.constant 0 : i32
    %c0_i32_1 = arith.constant 0 : i32
    return %c0_i32, %c0_i32_0 : i32, i32
  }
  func.func @transform_2(%arg0: i32) -> (i32, i32) {
    %c0_i32 = arith.constant 0 : i32
    %c0_i32_0 = arith.constant 0 : i32
    %c0_i32_1 = arith.constant 0 : i32
    return %c0_i32, %c0_i32_0 : i32, i32
  }
  func.func @transform_3(%arg0: i32) -> (i32, i32) {
    %c0_i32 = arith.constant 0 : i32
    %c0_i32_0 = arith.constant 0 : i32
    %c0_i32_1 = arith.constant 0 : i32
    return %c0_i32, %c0_i32_0 : i32, i32
  }
  func.func @transform_4(%arg0: i32) -> (i32, i32) {
    %c0_i32 = arith.constant 0 : i32
    %c0_i32_0 = arith.constant 0 : i32
    %c0_i32_1 = arith.constant 0 : i32
    return %c0_i32, %c0_i32_0 : i32, i32
  }
  func.func @transform_5(%arg0: i32) -> (i32, i32) {
    %c0_i32 = arith.constant 0 : i32
    %c0_i32_0 = arith.constant 0 : i32
    %c0_i32_1 = arith.constant 0 : i32
    return %c0_i32, %c0_i32_0 : i32, i32
  }
  func.func @transform_6(%arg0: i32) -> (i32, i32) {
    %c0_i32 = arith.constant 0 : i32
    %c0_i32_0 = arith.constant 0 : i32
    %c0_i32_1 = arith.constant 0 : i32
    return %c0_i32, %c0_i32_0 : i32, i32
  }
  func.func @transform_7(%arg0: i32) -> (i32, i32) {
    %c0_i32 = arith.constant 0 : i32
    %c0_i32_0 = arith.constant 0 : i32
    %c0_i32_1 = arith.constant 0 : i32
    return %c0_i32, %c0_i32_0 : i32, i32
  }
  func.func @transform_8(%arg0: i32) -> (i32, i32) {
    %c0_i32 = arith.constant 0 : i32
    %c0_i32_0 = arith.constant 0 : i32
    %c0_i32_1 = arith.constant 0 : i32
    return %c0_i32, %c0_i32_0 : i32, i32
  }
  func.func @transform_9(%arg0: i32) -> (i32, i32) {
    %c0_i32 = arith.constant 0 : i32
    %c0_i32_0 = arith.constant 0 : i32
    %c0_i32_1 = arith.constant 0 : i32
    return %c0_i32, %c0_i32_0 : i32, i32
  }
  func.func @transform_10(%arg0: i32) -> (i32, i32) {
    %c0_i32 = arith.constant 0 : i32
    %c0_i32_0 = arith.constant 0 : i32
    %c0_i32_1 = arith.constant 0 : i32
    return %c0_i32, %c0_i32_0 : i32, i32
  }
  func.func @transform_11(%arg0: i32) -> (i32, i32) {
    %c0_i32 = arith.constant 0 : i32
    %c0_i32_0 = arith.constant 0 : i32
    return %arg0, %c0_i32 : i32, i32
  }
}

</mosaic_0001>

<llo_original>
// kernel: lenet_forward.1
$region0: #{lenet_forward.1}
  #allocation0 [shape = 'u32[]', space=smem, size = 0x4, offset = 0x4, fixed_abs, tag = 'smem constant byte address 0x4 - core index']
  #allocation1 [shape = 'u32[144,128]{1,0:T(1,128)}', space=vmem, size = 0x12000, scoped, tag = 'internal scratch']
  #allocation2 [shape = 'f32[8,1792]{1,0:T(8,128)}', space=vmem, size = 0xe000, scoped, tag = 'scratch operand']
  #allocation3 [shape = 'f32[8,640]{1,0:T(8,128)}', space=vmem, size = 0x5000, scoped, tag = 'scratch operand']
  %s0 = inlined_call_operand.vmem [shape: f32[8,1024], index: 0, kind: input, shape index: {}]
  %s1 = inlined_call_operand.vmem [shape: f32[192,128], index: 1, kind: input, shape index: {}]
  %s2 = inlined_call_operand.vmem [shape: f32[1,128], index: 2, kind: input, shape index: {}]
  %s3 = inlined_call_operand.hbm [shape: f32[768,128], index: 3, kind: input, shape index: {}]
  %s4 = inlined_call_operand.vmem [shape: f32[1,128], index: 4, kind: input, shape index: {}]
  %s5 = inlined_call_operand.hbm [shape: f32[640,128], index: 5, kind: input, shape index: {}]
  %s6 = inlined_call_operand.vmem [shape: f32[1,128], index: 6, kind: input, shape index: {}]
  %s7 = inlined_call_operand.hbm [shape: f32[128,128], index: 7, kind: input, shape index: {}]
  %s8 = inlined_call_operand.vmem [shape: f32[1,128], index: 8, kind: input, shape index: {}]
  %s9 = inlined_call_operand.hbm [shape: f32[128,128], index: 9, kind: input, shape index: {}]
  %s10 = inlined_call_operand.vmem [shape: f32[1,128], index: 10, kind: input, shape index: {}]
  %s11 = inlined_call_operand.vmem [shape: f32[8,128], index: 11, kind: output, shape index: {}]
  %s12 = sld [smem:[#allocation0]]
  $region70: #{lenet_forward.1} parent=0
    _
  %s14 = ssub.s32 1, %s12
  %s15 = scalar_select 0, %s14, %s12
  $region1: #{lenet_forward.1} parent=0
    #allocation4 [shape = 'u8[393216]{0}', space=vmem, size = 0x60000, scoped, tag = 'input window, operand 3, single buffered']
    #allocation5 [shape = 's32[1]{0}', space=sflag, size = 0x4, scoped, tag = 'scoped memory for lenet_forward.1']
    #allocation6 [shape = 'u8[327680]{0}', space=vmem, size = 0x50000, scoped, tag = 'input window, operand 5, single buffered']
    #allocation7 [shape = 's32[1]{0}', space=sflag, size = 0x4, scoped, tag = 'scoped memory for lenet_forward.1']
    #allocation8 [shape = 'u8[65536]{0}', space=vmem, size = 0x10000, scoped, tag = 'input window, operand 7, single buffered']
    #allocation9 [shape = 'u8[65536]{0}', space=vmem, size = 0x10000, scoped, tag = 'input window, operand 9, single buffered']
    #allocation10 [shape = 's32[1]{0}', space=sflag, size = 0x4, scoped, tag = 'scoped memory for lenet_forward.1']
    %16 = vsyncpa [#allocation5], 0
    %17 = vsyncpa [#allocation7], 0
    %18 = vsyncpa [#allocation10], 0
    // Predicated region
    $region2: #{lenet_forward.1} parent=1 // pred_check
      _
    $region3: #{lenet_forward.1} parent=1 // pred_check_branch
      %20 = sbr.rel (0) target = $region5
    $region4: #{lenet_forward.1} parent=1 // pred_region
      _
    $region5: #{lenet_forward.1} parent=1 // pred_fallthru
      _
    // Predicated region
    $region6: #{lenet_forward.1} parent=1 // pred_check
      _
    $region7: #{lenet_forward.1} parent=1 // pred_check_branch
      %22 = sbr.rel (0) target = $region9
    $region8: #{lenet_forward.1} parent=1 // pred_region
      _
    $region9: #{lenet_forward.1} parent=1 // pred_fallthru
      _
    // Predicated region
    $region10: #{lenet_forward.1} parent=1 // pred_check
      _
    $region11: #{lenet_forward.1} parent=1 // pred_check_branch
      %24 = sbr.rel (0) target = $region13
    $region12: #{lenet_forward.1} parent=1 // pred_region
      _
    $region13: #{lenet_forward.1} parent=1 // pred_fallthru
      _
    // Predicated region
    $region14: #{lenet_forward.1} parent=1 // pred_check
      _
    $region15: #{lenet_forward.1} parent=1 // pred_check_branch
      %26 = sbr.rel (0) target = $region17
    $region16: #{lenet_forward.1} parent=1 // pred_region
      %s28 = ssub.s32 12288, 12288
      %29 = vsyncadd [#allocation5], %s28
      %s30 = sshll.u32 [#allocation4], 4
      %s31 = int_to_ptr.vmem [resolvable:$true] %s30
      %36 = dma.hbm_to_vmem [thread:$0]  %s3, 12288, %s31, [#allocation5], 128, 128, 8
    $region17: #{lenet_forward.1} parent=1 // pred_fallthru
      _
    // Predicated region
    $region18: #{lenet_forward.1} parent=1 // pred_check
      _
    $region19: #{lenet_forward.1} parent=1 // pred_check_branch
      %38 = sbr.rel (0) target = $region21
    $region20: #{lenet_forward.1} parent=1 // pred_region
      _
    $region21: #{lenet_forward.1} parent=1 // pred_fallthru
      _
    // Predicated region
    $region22: #{lenet_forward.1} parent=1 // pred_check
      _
    $region23: #{lenet_forward.1} parent=1 // pred_check_branch
      %40 = sbr.rel (0) target = $region25
    $region24: #{lenet_forward.1} parent=1 // pred_region
      %s42 = ssub.s32 10240, 10240
      %43 = vsyncadd [#allocation7], %s42
      %s44 = sshll.u32 [#allocation6], 4
      %s45 = int_to_ptr.vmem [resolvable:$true] %s44
      %50 = dma.hbm_to_vmem [thread:$0]  %s5, 10240, %s45, [#allocation7], 128, 128, 8
    $region25: #{lenet_forward.1} parent=1 // pred_fallthru
      _
    // Predicated region
    $region26: #{lenet_forward.1} parent=1 // pred_check
      _
    $region27: #{lenet_forward.1} parent=1 // pred_check_branch
      %52 = sbr.rel (0) target = $region29
    $region28: #{lenet_forward.1} parent=1 // pred_region
      _
    $region29: #{lenet_forward.1} parent=1 // pred_fallthru
      _
    // Predicated region
    $region30: #{lenet_forward.1} parent=1 // pred_check
      _
    $region31: #{lenet_forward.1} parent=1 // pred_check_branch
      %54 = sbr.rel (0) target = $region33
    $region32: #{lenet_forward.1} parent=1 // pred_region
      %s56 = ssub.s32 2048, 2048
      %57 = vsyncadd [#allocation7], %s56
      %s58 = sshll.u32 [#allocation8], 4
      %s59 = int_to_ptr.vmem [resolvable:$true] %s58
      %64 = dma.hbm_to_vmem [thread:$0]  %s7, 2048, %s59, [#allocation7], 128, 128, 8
    $region33: #{lenet_forward.1} parent=1 // pred_fallthru
      _
    // Predicated region
    $region34: #{lenet_forward.1} parent=1 // pred_check
      _
    $region35: #{lenet_forward.1} parent=1 // pred_check_branch
      %66 = sbr.rel (0) target = $region37
    $region36: #{lenet_forward.1} parent=1 // pred_region
      _
    $region37: #{lenet_forward.1} parent=1 // pred_fallthru
      _
    // Predicated region
    $region38: #{lenet_forward.1} parent=1 // pred_check
      _
    $region39: #{lenet_forward.1} parent=1 // pred_check_branch
      %68 = sbr.rel (0) target = $region41
    $region40: #{lenet_forward.1} parent=1 // pred_region
      %s70 = ssub.s32 2048, 2048
      %71 = vsyncadd [#allocation10], %s70
      %s72 = sshll.u32 [#allocation9], 4
      %s73 = int_to_ptr.vmem [resolvable:$true] %s72
      %78 = dma.hbm_to_vmem [thread:$0]  %s9, 2048, %s73, [#allocation10], 128, 128, 8
    $region41: #{lenet_forward.1} parent=1 // pred_fallthru
      _
    // Predicated region
    $region42: #{lenet_forward.1} parent=1 // pred_check
      _
    $region43: #{lenet_forward.1} parent=1 // pred_check_branch
      %80 = sbr.rel (0) target = $region45
    $region44: #{lenet_forward.1} parent=1 // pred_region
      _
    $region45: #{lenet_forward.1} parent=1 // pred_fallthru
      _
    // Predicated region
    $region46: #{lenet_forward.1} parent=1 // pred_check
      _
    $region47: #{lenet_forward.1} parent=1 // pred_check_branch
      %82 = sbr.rel (0) target = $region49
    $region48: #{lenet_forward.1} parent=1 // pred_region
      %83 = dma.done [#allocation5], 12288
    $region49: #{lenet_forward.1} parent=1 // pred_fallthru
      _
    // Predicated region
    $region50: #{lenet_forward.1} parent=1 // pred_check
      _
    $region51: #{lenet_forward.1} parent=1 // pred_check_branch
      %85 = sbr.rel (0) target = $region53
    $region52: #{lenet_forward.1} parent=1 // pred_region
      %86 = dma.done [#allocation7], 10240
    $region53: #{lenet_forward.1} parent=1 // pred_fallthru
      _
    // Predicated region
    $region54: #{lenet_forward.1} parent=1 // pred_check
      _
    $region55: #{lenet_forward.1} parent=1 // pred_check_branch
      %88 = sbr.rel (0) target = $region57
    $region56: #{lenet_forward.1} parent=1 // pred_region
      %89 = dma.done [#allocation7], 2048
    $region57: #{lenet_forward.1} parent=1 // pred_fallthru
      _
    // Predicated region
    $region58: #{lenet_forward.1} parent=1 // pred_check
      _
    $region59: #{lenet_forward.1} parent=1 // pred_check_branch
      %91 = sbr.rel (0) target = $region61
    $region60: #{lenet_forward.1} parent=1 // pred_region
      %92 = dma.done [#allocation10], 2048
    $region61: #{lenet_forward.1} parent=1 // pred_fallthru
      _
    %v93 = vld [vmem:[%s0] sm:$0xff]
    %v94 = vld [vmem:[%s0 + $0x8] sm:$0xff]
    %v95 = vld [vmem:[%s1] sm:$0xff]
    %v96 = vld [vmem:[%s1 + $0x8] sm:$0xff]
    %v97 = vld [vmem:[%s1 + $0x10] sm:$0xff]
    %v98 = vld [vmem:[%s1 + $0x18] sm:$0xff]
    %v99 = vld [vmem:[%s1 + $0x20] sm:$0xff]
    %v100 = vld [vmem:[%s1 + $0x28] sm:$0xff]
    %v101 = vld [vmem:[%s1 + $0x30] sm:$0xff]
    %v102 = vld [vmem:[%s1 + $0x38] sm:$0xff]
    %v103 = vld [vmem:[%s1 + $0x40] sm:$0xff]
    %v104 = vld [vmem:[%s1 + $0x48] sm:$0xff]
    %v105 = vld [vmem:[%s1 + $0x50] sm:$0xff]
    %v106 = vld [vmem:[%s1 + $0x58] sm:$0xff]
    %v107 = vld [vmem:[%s1 + $0x60] sm:$0xff]
    %v108 = vld [vmem:[%s1 + $0x68] sm:$0xff]
    %v109 = vld [vmem:[%s1 + $0x70] sm:$0xff]
    %v110 = vld [vmem:[%s1 + $0x78] sm:$0xff]
    %v111 = vld [vmem:[%s1 + $0x80] sm:$0xff]
    %v112 = vld [vmem:[%s1 + $0x88] sm:$0xff]
    %v113 = vld [vmem:[%s1 + $0x90] sm:$0xff]
    %v114 = vld [vmem:[%s1 + $0x98] sm:$0xff]
    %v115 = vld [vmem:[%s1 + $0xa0] sm:$0xff]
    %v116 = vld [vmem:[%s1 + $0xa8] sm:$0xff]
    %v117 = vld [vmem:[%s1 + $0xb0] sm:$0xff]
    %v118 = vld [vmem:[%s1 + $0xb8] sm:$0xff]
    %v119 = vld [vmem:[%s2] sm:$0x1]
    %v121 = vlaneseq
    %v122 = vshrl.u32 %v121, 7
    %v123 = vsub.s32 0, %v122
    %v124 = vrot.slane %v119, %v123
    %vm126 = vcmask 523264
    %v128 = vsel %vm126, %v94, 0
    %130 = vmatprep.subr.mxu0 0.0
    %131 = vmatpush1.msra.mxu0 %v110
    %132 = vmatprep.subr.mxu0 0.0
    %133 = vmatpush1.msra.mxu0 %v109
    %134 = vmatprep.subr.mxu0 0.0
    %135 = vmatpush1.msra.mxu0 %v108
    %136 = vmatprep.subr.mxu0 0.0
    %137 = vmatpush1.msra.mxu0 %v107
    %138 = vmatprep.subr.mxu0 0.0
    %139 = vmatpush1.msra.mxu0 %v106
    %140 = vmatprep.subr.mxu0 0.0
    %141 = vmatpush1.msra.mxu0 %v105
    %142 = vmatprep.subr.mxu0 0.0
    %143 = vmatpush1.msra.mxu0 %v104
    %144 = vmatprep.subr.mxu0 0.0
    %145 = vmatpush1.msra.mxu0 %v103
    %146 = vmatprep.subr.mxu0 0.0
    %147 = vmatpush1.msra.mxu0 %v102
    %148 = vmatprep.subr.mxu0 0.0
    %149 = vmatpush1.msra.mxu0 %v101
    %150 = vmatprep.subr.mxu0 0.0
    %151 = vmatpush1.msra.mxu0 %v100
    %152 = vmatprep.subr.mxu0 0.0
    %153 = vmatpush1.msra.mxu0 %v99
    %154 = vmatprep.subr.mxu0 0.0
    %155 = vmatpush1.msra.mxu0 %v98
    %156 = vmatprep.subr.mxu0 0.0
    %157 = vmatpush1.msra.mxu0 %v97
    %158 = vmatprep.subr.mxu0 0.0
    %159 = vmatpush1.msra.mxu0 %v96
    %160 = vmatprep.subr.mxu0 0.0
    %161 = vmatpush1.msra.mxu0 %v95
    %162 = vmatprep.subr.mxu0 0.0
    %163 = vmatpush2.msra.mxu0 0.0
    %164 = vmatprep.subr.mxu0 0.0
    %165 = vmatpush2.msra.mxu0 0.0
    %166 = vmatprep.subr.mxu0 0.0
    %167 = vmatpush2.msra.mxu0 0.0
    %168 = vmatprep.subr.mxu0 0.0
    %169 = vmatpush2.msra.mxu0 0.0
    %170 = vmatprep.subr.mxu0 0.0
    %171 = vmatpush2.msra.mxu0 0.0
    %172 = vmatprep.subr.mxu0 0.0
    %173 = vmatpush2.msra.mxu0 0.0
    %174 = vmatprep.subr.mxu0 0.0
    %175 = vmatpush2.msra.mxu0 0.0
    %176 = vmatprep.subr.mxu0 0.0
    %177 = vmatpush2.msra.mxu0 0.0
    %178 = vmatprep.subr.mxu0 0.0
    %179 = vmatpush2.msra.mxu0 %v118
    %180 = vmatprep.subr.mxu0 0.0
    %181 = vmatpush2.msra.mxu0 %v117
    %182 = vmatprep.subr.mxu0 0.0
    %183 = vmatpush2.msra.mxu0 %v116
    %184 = vmatprep.subr.mxu0 0.0
    %185 = vmatpush2.msra.mxu0 %v115
    %186 = vmatprep.subr.mxu0 0.0
    %187 = vmatpush2.msra.mxu0 %v114
    %188 = vmatprep.subr.mxu0 0.0
    %189 = vmatpush2.msra.mxu0 %v113
    %190 = vmatprep.subr.mxu0 0.0
    %191 = vmatpush2.msra.mxu0 %v112
    %192 = vmatprep.subr.mxu0 0.0
    %193 = vmatpush2.msra.mxu0 %v111
    %194 = vmatprep.mubr.f32.mxu0 %v128
    %195 = vmatmul.mubr.f32.gmra.mxu0 %v93
    %v196 = vpop.f32.mrf.mxu0
    %v197 = vadd.f32 %v124, %v196
    %v198 = vpop.f32.mrf.mxu0
    %199 = vdwg.mxu0
    %v200 = vmul.f32 %v197, 0.5
    %v201 = vtanh.pop %v200
    %v202 = vmul.f32 %v201, 0.5
    %v203 = vadd.f32 %v202, 0.5
    %v204 = vmul.f32 %v197, %v203
    %205 = vst [vmem:[#allocation2] sm:$0xff] %v204
    %v206 = vld [vmem:[%s0] sm:$0xff]
    %v207 = vld [vmem:[%s0 + $0x8] sm:$0xff]
    %v208 = vld [vmem:[%s1] sm:$0xff]
    %v209 = vld [vmem:[%s1 + $0x8] sm:$0xff]
    %v210 = vld [vmem:[%s1 + $0x10] sm:$0xff]
    %v211 = vld [vmem:[%s1 + $0x18] sm:$0xff]
    %v212 = vld [vmem:[%s1 + $0x20] sm:$0xff]
    %v213 = vld [vmem:[%s1 + $0x28] sm:$0xff]
    %v214 = vld [vmem:[%s1 + $0x30] sm:$0xff]
    %v215 = vld [vmem:[%s1 + $0x38] sm:$0xff]
    %v216 = vld [vmem:[%s1 + $0x40] sm:$0xff]
    %v217 = vld [vmem:[%s1 + $0x48] sm:$0xff]
    %v218 = vld [vmem:[%s1 + $0x50] sm:$0xff]
    %v219 = vld [vmem:[%s1 + $0x58] sm:$0xff]
    %v220 = vld [vmem:[%s1 + $0x60] sm:$0xff]
    %v221 = vld [vmem:[%s1 + $0x68] sm:$0xff]
    %v222 = vld [vmem:[%s1 + $0x70] sm:$0xff]
    %v223 = vld [vmem:[%s1 + $0x78] sm:$0xff]
    %v224 = vld [vmem:[%s1 + $0x80] sm:$0xff]
    %v225 = vld [vmem:[%s1 + $0x88] sm:$0xff]
    %v226 = vld [vmem:[%s1 + $0x90] sm:$0xff]
    %v227 = vld [vmem:[%s1 + $0x98] sm:$0xff]
    %v228 = vld [vmem:[%s1 + $0xa0] sm:$0xff]
    %v229 = vld [vmem:[%s1 + $0xa8] sm:$0xff]
    %v230 = vld [vmem:[%s1 + $0xb0] sm:$0xff]
    %v231 = vld [vmem:[%s1 + $0xb8] sm:$0xff]
    %v232 = vld [vmem:[%s2] sm:$0x1]
    %v234 = vlaneseq
    %v235 = vshrl.u32 %v234, 7
    %v236 = vsub.s32 0, %v235
    %v237 = vrot.slane %v232, %v236
    %241 = vrot.lane.b32.xlu0 %v206, 64
    %v242 = vpop.permute.xlu0 %241
    %243 = vrot.lane.b32.xlu0 %v207, 64
    %v244 = vpop.permute.xlu0 %243
    %v245 = vsel %vm126, %v242, %v244
    %v247 = vsel %vm126, %v244, 0
    %249 = vmatprep.subr.mxu0 0.0
    %250 = vmatpush1.msra.mxu0 %v223
    %251 = vmatprep.subr.mxu0 0.0
    %252 = vmatpush1.msra.mxu0 %v222
    %253 = vmatprep.subr.mxu0 0.0
    %254 = vmatpush1.msra.mxu0 %v221
    %255 = vmatprep.subr.mxu0 0.0
    %256 = vmatpush1.msra.mxu0 %v220
    %257 = vmatprep.subr.mxu0 0.0
    %258 = vmatpush1.msra.mxu0 %v219
    %259 = vmatprep.subr.mxu0 0.0
    %260 = vmatpush1.msra.mxu0 %v218
    %261 = vmatprep.subr.mxu0 0.0
    %262 = vmatpush1.msra.mxu0 %v217
    %263 = vmatprep.subr.mxu0 0.0
    %264 = vmatpush1.msra.mxu0 %v216
    %265 = vmatprep.subr.mxu0 0.0
    %266 = vmatpush1.msra.mxu0 %v215
    %267 = vmatprep.subr.mxu0 0.0
    %268 = vmatpush1.msra.mxu0 %v214
    %269 = vmatprep.subr.mxu0 0.0
    %270 = vmatpush1.msra.mxu0 %v213
    %271 = vmatprep.subr.mxu0 0.0
    %272 = vmatpush1.msra.mxu0 %v212
    %273 = vmatprep.subr.mxu0 0.0
    %274 = vmatpush1.msra.mxu0 %v211
    %275 = vmatprep.subr.mxu0 0.0
    %276 = vmatpush1.msra.mxu0 %v210
    %277 = vmatprep.subr.mxu0 0.0
    %278 = vmatpush1.msra.mxu0 %v209
    %279 = vmatprep.subr.mxu0 0.0
    %280 = vmatpush1.msra.mxu0 %v208
    %281 = vmatprep.subr.mxu0 0.0
    %282 = vmatpush2.msra.mxu0 0.0
    %283 = vmatprep.subr.mxu0 0.0
    %284 = vmatpush2.msra.mxu0 0.0
    %285 = vmatprep.subr.mxu0 0.0
    %286 = vmatpush2.msra.mxu0 0.0
    %287 = vmatprep.subr.mxu0 0.0
    %288 = vmatpush2.msra.mxu0 0.0
    %289 = vmatprep.subr.mxu0 0.0
    %290 = vmatpush2.msra.mxu0 0.0
    %291 = vmatprep.subr.mxu0 0.0
    %292 = vmatpush2.msra.mxu0 0.0
    %293 = vmatprep.subr.mxu0 0.0
    %294 = vmatpush2.msra.mxu0 0.0
    %295 = vmatprep.subr.mxu0 0.0
    %296 = vmatpush2.msra.mxu0 0.0
    %297 = vmatprep.subr.mxu0 0.0
    %298 = vmatpush2.msra.mxu0 %v231
    %299 = vmatprep.subr.mxu0 0.0
    %300 = vmatpush2.msra.mxu0 %v230
    %301 = vmatprep.subr.mxu0 0.0
    %302 = vmatpush2.msra.mxu0 %v229
    %303 = vmatprep.subr.mxu0 0.0
    %304 = vmatpush2.msra.mxu0 %v228
    %305 = vmatprep.subr.mxu0 0.0
    %306 = vmatpush2.msra.mxu0 %v227
    %307 = vmatprep.subr.mxu0 0.0
    %308 = vmatpush2.msra.mxu0 %v226
    %309 = vmatprep.subr.mxu0 0.0
    %310 = vmatpush2.msra.mxu0 %v225
    %311 = vmatprep.subr.mxu0 0.0
    %312 = vmatpush2.msra.mxu0 %v224
    %313 = vmatprep.mubr.f32.mxu0 %v247
    %314 = vmatmul.mubr.f32.gmra.mxu0 %v245
    %v315 = vpop.f32.mrf.mxu0
    %v316 = vadd.f32 %v237, %v315
    %v317 = vpop.f32.mrf.mxu0
    %318 = vdwg.mxu0
    %v319 = vmul.f32 %v316, 0.5
    %v320 = vtanh.pop %v319
    %v321 = vmul.f32 %v320, 0.5
    %v322 = vadd.f32 %v321, 0.5
    %v323 = vmul.f32 %v316, %v322
    %324 = vst [vmem:[#allocation2 + $0x8] sm:$0xff] %v323
    %v325 = vld [vmem:[%s0 + $0x8] sm:$0xff]
    %v326 = vld [vmem:[%s0 + $0x10] sm:$0xff]
    %v327 = vld [vmem:[%s1] sm:$0xff]
    %v328 = vld [vmem:[%s1 + $0x8] sm:$0xff]
    %v329 = vld [vmem:[%s1 + $0x10] sm:$0xff]
    %v330 = vld [vmem:[%s1 + $0x18] sm:$0xff]
    %v331 = vld [vmem:[%s1 + $0x20] sm:$0xff]
    %v332 = vld [vmem:[%s1 + $0x28] sm:$0xff]
    %v333 = vld [vmem:[%s1 + $0x30] sm:$0xff]
    %v334 = vld [vmem:[%s1 + $0x38] sm:$0xff]
    %v335 = vld [vmem:[%s1 + $0x40] sm:$0xff]
    %v336 = vld [vmem:[%s1 + $0x48] sm:$0xff]
    %v337 = vld [vmem:[%s1 + $0x50] sm:$0xff]
    %v338 = vld [vmem:[%s1 + $0x58] sm:$0xff]
    %v339 = vld [vmem:[%s1 + $0x60] sm:$0xff]
    %v340 = vld [vmem:[%s1 + $0x68] sm:$0xff]
    %v341 = vld [vmem:[%s1 + $0x70] sm:$0xff]
    %v342 = vld [vmem:[%s1 + $0x78] sm:$0xff]
    %v343 = vld [vmem:[%s1 + $0x80] sm:$0xff]
    %v344 = vld [vmem:[%s1 + $0x88] sm:$0xff]
    %v345 = vld [vmem:[%s1 + $0x90] sm:$0xff]
    %v346 = vld [vmem:[%s1 + $0x98] sm:$0xff]
    %v347 = vld [vmem:[%s1 + $0xa0] sm:$0xff]
    %v348 = vld [vmem:[%s1 + $0xa8] sm:$0xff]
    %v349 = vld [vmem:[%s1 + $0xb0] sm:$0xff]
    %v350 = vld [vmem:[%s1 + $0xb8] sm:$0xff]
    %v351 = vld [vmem:[%s2] sm:$0x1]
    %v353 = vlaneseq
    %v354 = vshrl.u32 %v353, 7
    %v355 = vsub.s32 0, %v354
    %v356 = vrot.slane %v351, %v355
    %v359 = vsel %vm126, %v326, 0
    %361 = vmatprep.subr.mxu0 0.0
    %362 = vmatpush1.msra.mxu0 %v342
    %363 = vmatprep.subr.mxu0 0.0
    %364 = vmatpush1.msra.mxu0 %v341
    %365 = vmatprep.subr.mxu0 0.0
    %366 = vmatpush1.msra.mxu0 %v340
    %367 = vmatprep.subr.mxu0 0.0
    %368 = vmatpush1.msra.mxu0 %v339
    %369 = vmatprep.subr.mxu0 0.0
    %370 = vmatpush1.msra.mxu0 %v338
    %371 = vmatprep.subr.mxu0 0.0
    %372 = vmatpush1.msra.mxu0 %v337
    %373 = vmatprep.subr.mxu0 0.0
    %374 = vmatpush1.msra.mxu0 %v336
    %375 = vmatprep.subr.mxu0 0.0
    %376 = vmatpush1.msra.mxu0 %v335
    %377 = vmatprep.subr.mxu0 0.0
    %378 = vmatpush1.msra.mxu0 %v334
    %379 = vmatprep.subr.mxu0 0.0
    %380 = vmatpush1.msra.mxu0 %v333
    %381 = vmatprep.subr.mxu0 0.0
    %382 = vmatpush1.msra.mxu0 %v332
    %383 = vmatprep.subr.mxu0 0.0
    %384 = vmatpush1.msra.mxu0 %v331
    %385 = vmatprep.subr.mxu0 0.0
    %386 = vmatpush1.msra.mxu0 %v330
    %387 = vmatprep.subr.mxu0 0.0
    %388 = vmatpush1.msra.mxu0 %v329
    %389 = vmatprep.subr.mxu0 0.0
    %390 = vmatpush1.msra.mxu0 %v328
    %391 = vmatprep.subr.mxu0 0.0
    %392 = vmatpush1.msra.mxu0 %v327
    %393 = vmatprep.subr.mxu0 0.0
    %394 = vmatpush2.msra.mxu0 0.0
    %395 = vmatprep.subr.mxu0 0.0
    %396 = vmatpush2.msra.mxu0 0.0
    %397 = vmatprep.subr.mxu0 0.0
    %398 = vmatpush2.msra.mxu0 0.0
    %399 = vmatprep.subr.mxu0 0.0
    %400 = vmatpush2.msra.mxu0 0.0
    %401 = vmatprep.subr.mxu0 0.0
    %402 = vmatpush2.msra.mxu0 0.0
    %403 = vmatprep.subr.mxu0 0.0
    %404 = vmatpush2.msra.mxu0 0.0
    %405 = vmatprep.subr.mxu0 0.0
    %406 = vmatpush2.msra.mxu0 0.0
    %407 = vmatprep.subr.mxu0 0.0
    %408 = vmatpush2.msra.mxu0 0.0
    %409 = vmatprep.subr.mxu0 0.0
    %410 = vmatpush2.msra.mxu0 %v350
    %411 = vmatprep.subr.mxu0 0.0
    %412 = vmatpush2.msra.mxu0 %v349
    %413 = vmatprep.subr.mxu0 0.0
    %414 = vmatpush2.msra.mxu0 %v348
    %415 = vmatprep.subr.mxu0 0.0
    %416 = vmatpush2.msra.mxu0 %v347
    %417 = vmatprep.subr.mxu0 0.0
    %418 = vmatpush2.msra.mxu0 %v346
    %419 = vmatprep.subr.mxu0 0.0
    %420 = vmatpush2.msra.mxu0 %v345
    %421 = vmatprep.subr.mxu0 0.0
    %422 = vmatpush2.msra.mxu0 %v344
    %423 = vmatprep.subr.mxu0 0.0
    %424 = vmatpush2.msra.mxu0 %v343
    %425 = vmatprep.mubr.f32.mxu0 %v359
    %426 = vmatmul.mubr.f32.gmra.mxu0 %v325
    %v427 = vpop.f32.mrf.mxu0
    %v428 = vadd.f32 %v356, %v427
    %v429 = vpop.f32.mrf.mxu0
    %430 = vdwg.mxu0
    %v431 = vmul.f32 %v428, 0.5
    %v432 = vtanh.pop %v431
    %v433 = vmul.f32 %v432, 0.5
    %v434 = vadd.f32 %v433, 0.5
    %v435 = vmul.f32 %v428, %v434
    %436 = vst [vmem:[#allocation2 + $0x10] sm:$0xff] %v435
    %v437 = vld [vmem:[%s0 + $0x8] sm:$0xff]
    %v438 = vld [vmem:[%s0 + $0x10] sm:$0xff]
    %v439 = vld [vmem:[%s1] sm:$0xff]
    %v440 = vld [vmem:[%s1 + $0x8] sm:$0xff]
    %v441 = vld [vmem:[%s1 + $0x10] sm:$0xff]
    %v442 = vld [vmem:[%s1 + $0x18] sm:$0xff]
    %v443 = vld [vmem:[%s1 + $0x20] sm:$0xff]
    %v444 = vld [vmem:[%s1 + $0x28] sm:$0xff]
    %v445 = vld [vmem:[%s1 + $0x30] sm:$0xff]
    %v446 = vld [vmem:[%s1 + $0x38] sm:$0xff]
    %v447 = vld [vmem:[%s1 + $0x40] sm:$0xff]
    %v448 = vld [vmem:[%s1 + $0x48] sm:$0xff]
    %v449 = vld [vmem:[%s1 + $0x50] sm:$0xff]
    %v450 = vld [vmem:[%s1 + $0x58] sm:$0xff]
    %v451 = vld [vmem:[%s1 + $0x60] sm:$0xff]
    %v452 = vld [vmem:[%s1 + $0x68] sm:$0xff]
    %v453 = vld [vmem:[%s1 + $0x70] sm:$0xff]
    %v454 = vld [vmem:[%s1 + $0x78] sm:$0xff]
    %v455 = vld [vmem:[%s1 + $0x80] sm:$0xff]
    %v456 = vld [vmem:[%s1 + $0x88] sm:$0xff]
    %v457 = vld [vmem:[%s1 + $0x90] sm:$0xff]
    %v458 = vld [vmem:[%s1 + $0x98] sm:$0xff]
    %v459 = vld [vmem:[%s1 + $0xa0] sm:$0xff]
    %v460 = vld [vmem:[%s1 + $0xa8] sm:$0xff]
    %v461 = vld [vmem:[%s1 + $0xb0] sm:$0xff]
    %v462 = vld [vmem:[%s1 + $0xb8] sm:$0xff]
    %v463 = vld [vmem:[%s2] sm:$0x1]
    %v465 = vlaneseq
    %v466 = vshrl.u32 %v465, 7
    %v467 = vsub.s32 0, %v466
    %v468 = vrot.slane %v463, %v467
    %472 = vrot.lane.b32.xlu0 %v437, 64
    %v473 = vpop.permute.xlu0 %472
    %474 = vrot.lane.b32.xlu0 %v438, 64
    %v475 = vpop.permute.xlu0 %474
    %v476 = vsel %vm126, %v473, %v475
    %v478 = vsel %vm126, %v475, 0
    %480 = vmatprep.subr.mxu0 0.0
    %481 = vmatpush1.msra.mxu0 %v454
    %482 = vmatprep.subr.mxu0 0.0
    %483 = vmatpush1.msra.mxu0 %v453
    %484 = vmatprep.subr.mxu0 0.0
    %485 = vmatpush1.msra.mxu0 %v452
    %486 = vmatprep.subr.mxu0 0.0
    %487 = vmatpush1.msra.mxu0 %v451
    %488 = vmatprep.subr.mxu0 0.0
    %489 = vmatpush1.msra.mxu0 %v450
    %490 = vmatprep.subr.mxu0 0.0
    %491 = vmatpush1.msra.mxu0 %v449
    %492 = vmatprep.subr.mxu0 0.0
    %493 = vmatpush1.msra.mxu0 %v448
    %494 = vmatprep.subr.mxu0 0.0
    %495 = vmatpush1.msra.mxu0 %v447
    %496 = vmatprep.subr.mxu0 0.0
    %497 = vmatpush1.msra.mxu0 %v446
    %498 = vmatprep.subr.mxu0 0.0
    %499 = vmatpush1.msra.mxu0 %v445
    %500 = vmatprep.subr.mxu0 0.0
    %501 = vmatpush1.msra.mxu0 %v444
    %502 = vmatprep.subr.mxu0 0.0
    %503 = vmatpush1.msra.mxu0 %v443
    %504 = vmatprep.subr.mxu0 0.0
    %505 = vmatpush1.msra.mxu0 %v442
    %506 = vmatprep.subr.mxu0 0.0
    %507 = vmatpush1.msra.mxu0 %v441
    %508 = vmatprep.subr.mxu0 0.0
    %509 = vmatpush1.msra.mxu0 %v440
    %510 = vmatprep.subr.mxu0 0.0
    %511 = vmatpush1.msra.mxu0 %v439
    %512 = vmatprep.subr.mxu0 0.0
    %513 = vmatpush2.msra.mxu0 0.0
    %514 = vmatprep.subr.mxu0 0.0
    %515 = vmatpush2.msra.mxu0 0.0
    %516 = vmatprep.subr.mxu0 0.0
    %517 = vmatpush2.msra.mxu0 0.0
    %518 = vmatprep.subr.mxu0 0.0
    %519 = vmatpush2.msra.mxu0 0.0
    %520 = vmatprep.subr.mxu0 0.0
    %521 = vmatpush2.msra.mxu0 0.0
    %522 = vmatprep.subr.mxu0 0.0
    %523 = vmatpush2.msra.mxu0 0.0
    %524 = vmatprep.subr.mxu0 0.0
    %525 = vmatpush2.msra.mxu0 0.0
    %526 = vmatprep.subr.mxu0 0.0
    %527 = vmatpush2.msra.mxu0 0.0
    %528 = vmatprep.subr.mxu0 0.0
    %529 = vmatpush2.msra.mxu0 %v462
    %530 = vmatprep.subr.mxu0 0.0
    %531 = vmatpush2.msra.mxu0 %v461
    %532 = vmatprep.subr.mxu0 0.0
    %533 = vmatpush2.msra.mxu0 %v460
    %534 = vmatprep.subr.mxu0 0.0
    %535 = vmatpush2.msra.mxu0 %v459
    %536 = vmatprep.subr.mxu0 0.0
    %537 = vmatpush2.msra.mxu0 %v458
    %538 = vmatprep.subr.mxu0 0.0
    %539 = vmatpush2.msra.mxu0 %v457
    %540 = vmatprep.subr.mxu0 0.0
    %541 = vmatpush2.msra.mxu0 %v456
    %542 = vmatprep.subr.mxu0 0.0
    %543 = vmatpush2.msra.mxu0 %v455
    %544 = vmatprep.mubr.f32.mxu0 %v478
    %545 = vmatmul.mubr.f32.gmra.mxu0 %v476
    %v546 = vpop.f32.mrf.mxu0
    %v547 = vadd.f32 %v468, %v546
    %v548 = vpop.f32.mrf.mxu0
    %549 = vdwg.mxu0
    %v550 = vmul.f32 %v547, 0.5
    %v551 = vtanh.pop %v550
    %v552 = vmul.f32 %v551, 0.5
    %v553 = vadd.f32 %v552, 0.5
    %v554 = vmul.f32 %v547, %v553
    %555 = vst [vmem:[#allocation2 + $0x18] sm:$0xff] %v554
    %v556 = vld [vmem:[%s0 + $0x10] sm:$0xff]
    %v557 = vld [vmem:[%s0 + $0x18] sm:$0xff]
    %v558 = vld [vmem:[%s1] sm:$0xff]
    %v559 = vld [vmem:[%s1 + $0x8] sm:$0xff]
    %v560 = vld [vmem:[%s1 + $0x10] sm:$0xff]
    %v561 = vld [vmem:[%s1 + $0x18] sm:$0xff]
    %v562 = vld [vmem:[%s1 + $0x20] sm:$0xff]
    %v563 = vld [vmem:[%s1 + $0x28] sm:$0xff]
    %v564 = vld [vmem:[%s1 + $0x30] sm:$0xff]
    %v565 = vld [vmem:[%s1 + $0x38] sm:$0xff]
    %v566 = vld [vmem:[%s1 + $0x40] sm:$0xff]
    %v567 = vld [vmem:[%s1 + $0x48] sm:$0xff]
    %v568 = vld [vmem:[%s1 + $0x50] sm:$0xff]
    %v569 = vld [vmem:[%s1 + $0x58] sm:$0xff]
    %v570 = vld [vmem:[%s1 + $0x60] sm:$0xff]
    %v571 = vld [vmem:[%s1 + $0x68] sm:$0xff]
    %v572 = vld [vmem:[%s1 + $0x70] sm:$0xff]
    %v573 = vld [vmem:[%s1 + $0x78] sm:$0xff]
    %v574 = vld [vmem:[%s1 + $0x80] sm:$0xff]
    %v575 = vld [vmem:[%s1 + $0x88] sm:$0xff]
    %v576 = vld [vmem:[%s1 + $0x90] sm:$0xff]
    %v577 = vld [vmem:[%s1 + $0x98] sm:$0xff]
    %v578 = vld [vmem:[%s1 + $0xa0] sm:$0xff]
    %v579 = vld [vmem:[%s1 + $0xa8] sm:$0xff]
    %v580 = vld [vmem:[%s1 + $0xb0] sm:$0xff]
    %v581 = vld [vmem:[%s1 + $0xb8] sm:$0xff]
    %v582 = vld [vmem:[%s2] sm:$0x1]
    %v584 = vlaneseq
    %v585 = vshrl.u32 %v584, 7
    %v586 = vsub.s32 0, %v585
    %v587 = vrot.slane %v582, %v586
    %v590 = vsel %vm126, %v557, 0
    %592 = vmatprep.subr.mxu0 0.0
    %593 = vmatpush1.msra.mxu0 %v573
    %594 = vmatprep.subr.mxu0 0.0
    %595 = vmatpush1.msra.mxu0 %v572
    %596 = vmatprep.subr.mxu0 0.0
    %597 = vmatpush1.msra.mxu0 %v571
    %598 = vmatprep.subr.mxu0 0.0
    %599 = vmatpush1.msra.mxu0 %v570
    %600 = vmatprep.subr.mxu0 0.0
    %601 = vmatpush1.msra.mxu0 %v569
    %602 = vmatprep.subr.mxu0 0.0
    %603 = vmatpush1.msra.mxu0 %v568
    %604 = vmatprep.subr.mxu0 0.0
    %605 = vmatpush1.msra.mxu0 %v567
    %606 = vmatprep.subr.mxu0 0.0
    %607 = vmatpush1.msra.mxu0 %v566
    %608 = vmatprep.subr.mxu0 0.0
    %609 = vmatpush1.msra.mxu0 %v565
    %610 = vmatprep.subr.mxu0 0.0
    %611 = vmatpush1.msra.mxu0 %v564
    %612 = vmatprep.subr.mxu0 0.0
    %613 = vmatpush1.msra.mxu0 %v563
    %614 = vmatprep.subr.mxu0 0.0
    %615 = vmatpush1.msra.mxu0 %v562
    %616 = vmatprep.subr.mxu0 0.0
    %617 = vmatpush1.msra.mxu0 %v561
    %618 = vmatprep.subr.mxu0 0.0
    %619 = vmatpush1.msra.mxu0 %v560
    %620 = vmatprep.subr.mxu0 0.0
    %621 = vmatpush1.msra.mxu0 %v559
    %622 = vmatprep.subr.mxu0 0.0
    %623 = vmatpush1.msra.mxu0 %v558
    %624 = vmatprep.subr.mxu0 0.0
    %625 = vmatpush2.msra.mxu0 0.0
    %626 = vmatprep.subr.mxu0 0.0
    %627 = vmatpush2.msra.mxu0 0.0
    %628 = vmatprep.subr.mxu0 0.0
    %629 = vmatpush2.msra.mxu0 0.0
    %630 = vmatprep.subr.mxu0 0.0
    %631 = vmatpush2.msra.mxu0 0.0
    %632 = vmatprep.subr.mxu0 0.0
    %633 = vmatpush2.msra.mxu0 0.0
    %634 = vmatprep.subr.mxu0 0.0
    %635 = vmatpush2.msra.mxu0 0.0
    %636 = vmatprep.subr.mxu0 0.0
    %637 = vmatpush2.msra.mxu0 0.0
    %638 = vmatprep.subr.mxu0 0.0
    %639 = vmatpush2.msra.mxu0 0.0
    %640 = vmatprep.subr.mxu0 0.0
    %641 = vmatpush2.msra.mxu0 %v581
    %642 = vmatprep.subr.mxu0 0.0
    %643 = vmatpush2.msra.mxu0 %v580
    %644 = vmatprep.subr.mxu0 0.0
    %645 = vmatpush2.msra.mxu0 %v579
    %646 = vmatprep.subr.mxu0 0.0
    %647 = vmatpush2.msra.mxu0 %v578
    %648 = vmatprep.subr.mxu0 0.0
    %649 = vmatpush2.msra.mxu0 %v577
    %650 = vmatprep.subr.mxu0 0.0
    %651 = vmatpush2.msra.mxu0 %v576
    %652 = vmatprep.subr.mxu0 0.0
    %653 = vmatpush2.msra.mxu0 %v575
    %654 = vmatprep.subr.mxu0 0.0
    %655 = vmatpush2.msra.mxu0 %v574
    %656 = vmatprep.mubr.f32.mxu0 %v590
    %657 = vmatmul.mubr.f32.gmra.mxu0 %v556
    %v658 = vpop.f32.mrf.mxu0
    %v659 = vadd.f32 %v587, %v658
    %v660 = vpop.f32.mrf.mxu0
    %661 = vdwg.mxu0
    %v662 = vmul.f32 %v659, 0.5
    %v663 = vtanh.pop %v662
    %v664 = vmul.f32 %v663, 0.5
    %v665 = vadd.f32 %v664, 0.5
    %v666 = vmul.f32 %v659, %v665
    %667 = vst [vmem:[#allocation2 + $0x20] sm:$0xff] %v666
    %v668 = vld [vmem:[%s0 + $0x10] sm:$0xff]
    %v669 = vld [vmem:[%s0 + $0x18] sm:$0xff]
    %v670 = vld [vmem:[%s1] sm:$0xff]
    %v671 = vld [vmem:[%s1 + $0x8] sm:$0xff]
    %v672 = vld [vmem:[%s1 + $0x10] sm:$0xff]
    %v673 = vld [vmem:[%s1 + $0x18] sm:$0xff]
    %v674 = vld [vmem:[%s1 + $0x20] sm:$0xff]
    %v675 = vld [vmem:[%s1 + $0x28] sm:$0xff]
    %v676 = vld [vmem:[%s1 + $0x30] sm:$0xff]
    %v677 = vld [vmem:[%s1 + $0x38] sm:$0xff]
    %v678 = vld [vmem:[%s1 + $0x40] sm:$0xff]
    %v679 = vld [vmem:[%s1 + $0x48] sm:$0xff]
    %v680 = vld [vmem:[%s1 + $0x50] sm:$0xff]
    %v681 = vld [vmem:[%s1 + $0x58] sm:$0xff]
    %v682 = vld [vmem:[%s1 + $0x60] sm:$0xff]
    %v683 = vld [vmem:[%s1 + $0x68] sm:$0xff]
    %v684 = vld [vmem:[%s1 + $0x70] sm:$0xff]
    %v685 = vld [vmem:[%s1 + $0x78] sm:$0xff]
    %v686 = vld [vmem:[%s1 + $0x80] sm:$0xff]
    %v687 = vld [vmem:[%s1 + $0x88] sm:$0xff]
    %v688 = vld [vmem:[%s1 + $0x90] sm:$0xff]
    %v689 = vld [vmem:[%s1 + $0x98] sm:$0xff]
    %v690 = vld [vmem:[%s1 + $0xa0] sm:$0xff]
    %v691 = vld [vmem:[%s1 + $0xa8] sm:$0xff]
    %v692 = vld [vmem:[%s1 + $0xb0] sm:$0xff]
    %v693 = vld [vmem:[%s1 + $0xb8] sm:$0xff]
    %v694 = vld [vmem:[%s2] sm:$0x1]
    %v696 = vlaneseq
    %v697 = vshrl.u32 %v696, 7
    %v698 = vsub.s32 0, %v697
    %v699 = vrot.slane %v694, %v698
    %703 = vrot.lane.b32.xlu0 %v668, 64
    %v704 = vpop.permute.xlu0 %703
    %705 = vrot.lane.b32.xlu0 %v669, 64
    %v706 = vpop.permute.xlu0 %705
    %v707 = vsel %vm126, %v704, %v706
    %v709 = vsel %vm126, %v706, 0
    %711 = vmatprep.subr.mxu0 0.0
    %712 = vmatpush1.msra.mxu0 %v685
    %713 = vmatprep.subr.mxu0 0.0
    %714 = vmatpush1.msra.mxu0 %v684
    %715 = vmatprep.subr.mxu0 0.0
    %716 = vmatpush1.msra.mxu0 %v683
    %717 = vmatprep.subr.mxu0 0.0
    %718 = vmatpush1.msra.mxu0 %v682
    %719 = vmatprep.subr.mxu0 0.0
    %720 = vmatpush1.msra.mxu0 %v681
    %721 = vmatprep.subr.mxu0 0.0
    %722 = vmatpush1.msra.mxu0 %v680
    %723 = vmatprep.subr.mxu0 0.0
    %724 = vmatpush1.msra.mxu0 %v679
    %725 = vmatprep.subr.mxu0 0.0
    %726 = vmatpush1.msra.mxu0 %v678
    %727 = vmatprep.subr.mxu0 0.0
    %728 = vmatpush1.msra.mxu0 %v677
    %729 = vmatprep.subr.mxu0 0.0
    %730 = vmatpush1.msra.mxu0 %v676
    %731 = vmatprep.subr.mxu0 0.0
    %732 = vmatpush1.msra.mxu0 %v675
    %733 = vmatprep.subr.mxu0 0.0
    %734 = vmatpush1.msra.mxu0 %v674
    %735 = vmatprep.subr.mxu0 0.0
    %736 = vmatpush1.msra.mxu0 %v673
    %737 = vmatprep.subr.mxu0 0.0
    %738 = vmatpush1.msra.mxu0 %v672
    %739 = vmatprep.subr.mxu0 0.0
    %740 = vmatpush1.msra.mxu0 %v671
    %741 = vmatprep.subr.mxu0 0.0
    %742 = vmatpush1.msra.mxu0 %v670
    %743 = vmatprep.subr.mxu0 0.0
    %744 = vmatpush2.msra.mxu0 0.0
    %745 = vmatprep.subr.mxu0 0.0
    %746 = vmatpush2.msra.mxu0 0.0
    %747 = vmatprep.subr.mxu0 0.0
    %748 = vmatpush2.msra.mxu0 0.0
    %749 = vmatprep.subr.mxu0 0.0
    %750 = vmatpush2.msra.mxu0 0.0
    %751 = vmatprep.subr.mxu0 0.0
    %752 = vmatpush2.msra.mxu0 0.0
    %753 = vmatprep.subr.mxu0 0.0
    %754 = vmatpush2.msra.mxu0 0.0
    %755 = vmatprep.subr.mxu0 0.0
    %756 = vmatpush2.msra.mxu0 0.0
    %757 = vmatprep.subr.mxu0 0.0
    %758 = vmatpush2.msra.mxu0 0.0
    %759 = vmatprep.subr.mxu0 0.0
    %760 = vmatpush2.msra.mxu0 %v693
    %761 = vmatprep.subr.mxu0 0.0
    %762 = vmatpush2.msra.mxu0 %v692
    %763 = vmatprep.subr.mxu0 0.0
    %764 = vmatpush2.msra.mxu0 %v691
    %765 = vmatprep.subr.mxu0 0.0
    %766 = vmatpush2.msra.mxu0 %v690
    %767 = vmatprep.subr.mxu0 0.0
    %768 = vmatpush2.msra.mxu0 %v689
    %769 = vmatprep.subr.mxu0 0.0
    %770 = vmatpush2.msra.mxu0 %v688
    %771 = vmatprep.subr.mxu0 0.0
    %772 = vmatpush2.msra.mxu0 %v687
    %773 = vmatprep.subr.mxu0 0.0
    %774 = vmatpush2.msra.mxu0 %v686
    %775 = vmatprep.mubr.f32.mxu0 %v709
    %776 = vmatmul.mubr.f32.gmra.mxu0 %v707
    %v777 = vpop.f32.mrf.mxu0
    %v778 = vadd.f32 %v699, %v777
    %v779 = vpop.f32.mrf.mxu0
    %780 = vdwg.mxu0
    %v781 = vmul.f32 %v778, 0.5
    %v782 = vtanh.pop %v781
    %v783 = vmul.f32 %v782, 0.5
    %v784 = vadd.f32 %v783, 0.5
    %v785 = vmul.f32 %v778, %v784
    %786 = vst [vmem:[#allocation2 + $0x28] sm:$0xff] %v785
    %v787 = vld [vmem:[%s0 + $0x18] sm:$0xff]
    %v788 = vld [vmem:[%s0 + $0x20] sm:$0xff]
    %v789 = vld [vmem:[%s1] sm:$0xff]
    %v790 = vld [vmem:[%s1 + $0x8] sm:$0xff]
    %v791 = vld [vmem:[%s1 + $0x10] sm:$0xff]
    %v792 = vld [vmem:[%s1 + $0x18] sm:$0xff]
    %v793 = vld [vmem:[%s1 + $0x20] sm:$0xff]
    %v794 = vld [vmem:[%s1 + $0x28] sm:$0xff]
    %v795 = vld [vmem:[%s1 + $0x30] sm:$0xff]
    %v796 = vld [vmem:[%s1 + $0x38] sm:$0xff]
    %v797 = vld [vmem:[%s1 + $0x40] sm:$0xff]
    %v798 = vld [vmem:[%s1 + $0x48] sm:$0xff]
    %v799 = vld [vmem:[%s1 + $0x50] sm:$0xff]
    %v800 = vld [vmem:[%s1 + $0x58] sm:$0xff]
    %v801 = vld [vmem:[%s1 + $0x60] sm:$0xff]
    %v802 = vld [vmem:[%s1 + $0x68] sm:$0xff]
    %v803 = vld [vmem:[%s1 + $0x70] sm:$0xff]
    %v804 = vld [vmem:[%s1 + $0x78] sm:$0xff]
    %v805 = vld [vmem:[%s1 + $0x80] sm:$0xff]
    %v806 = vld [vmem:[%s1 + $0x88] sm:$0xff]
    %v807 = vld [vmem:[%s1 + $0x90] sm:$0xff]
    %v808 = vld [vmem:[%s1 + $0x98] sm:$0xff]
    %v809 = vld [vmem:[%s1 + $0xa0] sm:$0xff]
    %v810 = vld [vmem:[%s1 + $0xa8] sm:$0xff]
    %v811 = vld [vmem:[%s1 + $0xb0] sm:$0xff]
    %v812 = vld [vmem:[%s1 + $0xb8] sm:$0xff]
    %v813 = vld [vmem:[%s2] sm:$0x1]
    %v815 = vlaneseq
    %v816 = vshrl.u32 %v815, 7
    %v817 = vsub.s32 0, %v816
    %v818 = vrot.slane %v813, %v817
    %v821 = vsel %vm126, %v788, 0
    %823 = vmatprep.subr.mxu0 0.0
    %824 = vmatpush1.msra.mxu0 %v804
    %825 = vmatprep.subr.mxu0 0.0
    %826 = vmatpush1.msra.mxu0 %v803
    %827 = vmatprep.subr.mxu0 0.0
    %828 = vmatpush1.msra.mxu0 %v802
    %829 = vmatprep.subr.mxu0 0.0
    %830 = vmatpush1.msra.mxu0 %v801
    %831 = vmatprep.subr.mxu0 0.0
    %832 = vmatpush1.msra.mxu0 %v800
    %833 = vmatprep.subr.mxu0 0.0
    %834 = vmatpush1.msra.mxu0 %v799
    %835 = vmatprep.subr.mxu0 0.0
    %836 = vmatpush1.msra.mxu0 %v798
    %837 = vmatprep.subr.mxu0 0.0
    %838 = vmatpush1.msra.mxu0 %v797
    %839 = vmatprep.subr.mxu0 0.0
    %840 = vmatpush1.msra.mxu0 %v796
    %841 = vmatprep.subr.mxu0 0.0
    %842 = vmatpush1.msra.mxu0 %v795
    %843 = vmatprep.subr.mxu0 0.0
    %844 = vmatpush1.msra.mxu0 %v794
    %845 = vmatprep.subr.mxu0 0.0
    %846 = vmatpush1.msra.mxu0 %v793
    %847 = vmatprep.subr.mxu0 0.0
    %848 = vmatpush1.msra.mxu0 %v792
    %849 = vmatprep.subr.mxu0 0.0
    %850 = vmatpush1.msra.mxu0 %v791
    %851 = vmatprep.subr.mxu0 0.0
    %852 = vmatpush1.msra.mxu0 %v790
    %853 = vmatprep.subr.mxu0 0.0
    %854 = vmatpush1.msra.mxu0 %v789
    %855 = vmatprep.subr.mxu0 0.0
    %856 = vmatpush2.msra.mxu0 0.0
    %857 = vmatprep.subr.mxu0 0.0
    %858 = vmatpush2.msra.mxu0 0.0
    %859 = vmatprep.subr.mxu0 0.0
    %860 = vmatpush2.msra.mxu0 0.0
    %861 = vmatprep.subr.mxu0 0.0
    %862 = vmatpush2.msra.mxu0 0.0
    %863 = vmatprep.subr.mxu0 0.0
    %864 = vmatpush2.msra.mxu0 0.0
    %865 = vmatprep.subr.mxu0 0.0
    %866 = vmatpush2.msra.mxu0 0.0
    %867 = vmatprep.subr.mxu0 0.0
    %868 = vmatpush2.msra.mxu0 0.0
    %869 = vmatprep.subr.mxu0 0.0
    %870 = vmatpush2.msra.mxu0 0.0
    %871 = vmatprep.subr.mxu0 0.0
    %872 = vmatpush2.msra.mxu0 %v812
    %873 = vmatprep.subr.mxu0 0.0
    %874 = vmatpush2.msra.mxu0 %v811
    %875 = vmatprep.subr.mxu0 0.0
    %876 = vmatpush2.msra.mxu0 %v810
    %877 = vmatprep.subr.mxu0 0.0
    %878 = vmatpush2.msra.mxu0 %v809
    %879 = vmatprep.subr.mxu0 0.0
    %880 = vmatpush2.msra.mxu0 %v808
    %881 = vmatprep.subr.mxu0 0.0
    %882 = vmatpush2.msra.mxu0 %v807
    %883 = vmatprep.subr.mxu0 0.0
    %884 = vmatpush2.msra.mxu0 %v806
    %885 = vmatprep.subr.mxu0 0.0
    %886 = vmatpush2.msra.mxu0 %v805
    %887 = vmatprep.mubr.f32.mxu0 %v821
    %888 = vmatmul.mubr.f32.gmra.mxu0 %v787
    %v889 = vpop.f32.mrf.mxu0
    %v890 = vadd.f32 %v818, %v889
    %v891 = vpop.f32.mrf.mxu0
    %892 = vdwg.mxu0
    %v893 = vmul.f32 %v890, 0.5
    %v894 = vtanh.pop %v893
    %v895 = vmul.f32 %v894, 0.5
    %v896 = vadd.f32 %v895, 0.5
    %v897 = vmul.f32 %v890, %v896
    %898 = vst [vmem:[#allocation2 + $0x30] sm:$0xff] %v897
    %v899 = vld [vmem:[%s0 + $0x18] sm:$0xff]
    %v900 = vld [vmem:[%s0 + $0x20] sm:$0xff]
    %v901 = vld [vmem:[%s1] sm:$0xff]
    %v902 = vld [vmem:[%s1 + $0x8] sm:$0xff]
    %v903 = vld [vmem:[%s1 + $0x10] sm:$0xff]
    %v904 = vld [vmem:[%s1 + $0x18] sm:$0xff]
    %v905 = vld [vmem:[%s1 + $0x20] sm:$0xff]
    %v906 = vld [vmem:[%s1 + $0x28] sm:$0xff]
    %v907 = vld [vmem:[%s1 + $0x30] sm:$0xff]
    %v908 = vld [vmem:[%s1 + $0x38] sm:$0xff]
    %v909 = vld [vmem:[%s1 + $0x40] sm:$0xff]
    %v910 = vld [vmem:[%s1 + $0x48] sm:$0xff]
    %v911 = vld [vmem:[%s1 + $0x50] sm:$0xff]
    %v912 = vld [vmem:[%s1 + $0x58] sm:$0xff]
    %v913 = vld [vmem:[%s1 + $0x60] sm:$0xff]
    %v914 = vld [vmem:[%s1 + $0x68] sm:$0xff]
    %v915 = vld [vmem:[%s1 + $0x70] sm:$0xff]
    %v916 = vld [vmem:[%s1 + $0x78] sm:$0xff]
    %v917 = vld [vmem:[%s1 + $0x80] sm:$0xff]
    %v918 = vld [vmem:[%s1 + $0x88] sm:$0xff]
    %v919 = vld [vmem:[%s1 + $0x90] sm:$0xff]
    %v920 = vld [vmem:[%s1 + $0x98] sm:$0xff]
    %v921 = vld [vmem:[%s1 + $0xa0] sm:$0xff]
    %v922 = vld [vmem:[%s1 + $0xa8] sm:$0xff]
    %v923 = vld [vmem:[%s1 + $0xb0] sm:$0xff]
    %v924 = vld [vmem:[%s1 + $0xb8] sm:$0xff]
    %v925 = vld [vmem:[%s2] sm:$0x1]
    %v927 = vlaneseq
    %v928 = vshrl.u32 %v927, 7
    %v929 = vsub.s32 0, %v928
    %v930 = vrot.slane %v925, %v929
    %934 = vrot.lane.b32.xlu0 %v899, 64
    %v935 = vpop.permute.xlu0 %934
    %936 = vrot.lane.b32.xlu0 %v900, 64
    %v937 = vpop.permute.xlu0 %936
    %v938 = vsel %vm126, %v935, %v937
    %v940 = vsel %vm126, %v937, 0
    %942 = vmatprep.subr.mxu0 0.0
    %943 = vmatpush1.msra.mxu0 %v916
    %944 = vmatprep.subr.mxu0 0.0
    %945 = vmatpush1.msra.mxu0 %v915
    %946 = vmatprep.subr.mxu0 0.0
    %947 = vmatpush1.msra.mxu0 %v914
    %948 = vmatprep.subr.mxu0 0.0
    %949 = vmatpush1.msra.mxu0 %v913
    %950 = vmatprep.subr.mxu0 0.0
    %951 = vmatpush1.msra.mxu0 %v912
    %952 = vmatprep.subr.mxu0 0.0
    %953 = vmatpush1.msra.mxu0 %v911
    %954 = vmatprep.subr.mxu0 0.0
    %955 = vmatpush1.msra.mxu0 %v910
    %956 = vmatprep.subr.mxu0 0.0
    %957 = vmatpush1.msra.mxu0 %v909
    %958 = vmatprep.subr.mxu0 0.0
    %959 = vmatpush1.msra.mxu0 %v908
    %960 = vmatprep.subr.mxu0 0.0
    %961 = vmatpush1.msra.mxu0 %v907
    %962 = vmatprep.subr.mxu0 0.0
    %963 = vmatpush1.msra.mxu0 %v906
    %964 = vmatprep.subr.mxu0 0.0
    %965 = vmatpush1.msra.mxu0 %v905
    %966 = vmatprep.subr.mxu0 0.0
    %967 = vmatpush1.msra.mxu0 %v904
    %968 = vmatprep.subr.mxu0 0.0
    %969 = vmatpush1.msra.mxu0 %v903
    %970 = vmatprep.subr.mxu0 0.0
    %971 = vmatpush1.msra.mxu0 %v902
    %972 = vmatprep.subr.mxu0 0.0
    %973 = vmatpush1.msra.mxu0 %v901
    %974 = vmatprep.subr.mxu0 0.0
    %975 = vmatpush2.msra.mxu0 0.0
    %976 = vmatprep.subr.mxu0 0.0
    %977 = vmatpush2.msra.mxu0 0.0
    %978 = vmatprep.subr.mxu0 0.0
    %979 = vmatpush2.msra.mxu0 0.0
    %980 = vmatprep.subr.mxu0 0.0
    %981 = vmatpush2.msra.mxu0 0.0
    %982 = vmatprep.subr.mxu0 0.0
    %983 = vmatpush2.msra.mxu0 0.0
    %984 = vmatprep.subr.mxu0 0.0
    %985 = vmatpush2.msra.mxu0 0.0
    %986 = vmatprep.subr.mxu0 0.0
    %987 = vmatpush2.msra.mxu0 0.0
    %988 = vmatprep.subr.mxu0 0.0
    %989 = vmatpush2.msra.mxu0 0.0
    %990 = vmatprep.subr.mxu0 0.0
    %991 = vmatpush2.msra.mxu0 %v924
    %992 = vmatprep.subr.mxu0 0.0
    %993 = vmatpush2.msra.mxu0 %v923
    %994 = vmatprep.subr.mxu0 0.0
    %995 = vmatpush2.msra.mxu0 %v922
    %996 = vmatprep.subr.mxu0 0.0
    %997 = vmatpush2.msra.mxu0 %v921
    %998 = vmatprep.subr.mxu0 0.0
    %999 = vmatpush2.msra.mxu0 %v920
    %1000 = vmatprep.subr.mxu0 0.0
    %1001 = vmatpush2.msra.mxu0 %v919
    %1002 = vmatprep.subr.mxu0 0.0
    %1003 = vmatpush2.msra.mxu0 %v918
    %1004 = vmatprep.subr.mxu0 0.0
    %1005 = vmatpush2.msra.mxu0 %v917
    %1006 = vmatprep.mubr.f32.mxu0 %v940
    %1007 = vmatmul.mubr.f32.gmra.mxu0 %v938
    %v1008 = vpop.f32.mrf.mxu0
    %v1009 = vadd.f32 %v930, %v1008
    %v1010 = vpop.f32.mrf.mxu0
    %1011 = vdwg.mxu0
    %v1012 = vmul.f32 %v1009, 0.5
    %v1013 = vtanh.pop %v1012
    %v1014 = vmul.f32 %v1013, 0.5
    %v1015 = vadd.f32 %v1014, 0.5
    %v1016 = vmul.f32 %v1009, %v1015
    %1017 = vst [vmem:[#allocation2 + $0x38] sm:$0xff] %v1016
    %v1018 = vld [vmem:[%s0 + $0x20] sm:$0xff]
    %v1019 = vld [vmem:[%s0 + $0x28] sm:$0xff]
    %v1020 = vld [vmem:[%s1] sm:$0xff]
    %v1021 = vld [vmem:[%s1 + $0x8] sm:$0xff]
    %v1022 = vld [vmem:[%s1 + $0x10] sm:$0xff]
    %v1023 = vld [vmem:[%s1 + $0x18] sm:$0xff]
    %v1024 = vld [vmem:[%s1 + $0x20] sm:$0xff]
    %v1025 = vld [vmem:[%s1 + $0x28] sm:$0xff]
    %v1026 = vld [vmem:[%s1 + $0x30] sm:$0xff]
    %v1027 = vld [vmem:[%s1 + $0x38] sm:$0xff]
    %v1028 = vld [vmem:[%s1 + $0x40] sm:$0xff]
    %v1029 = vld [vmem:[%s1 + $0x48] sm:$0xff]
    %v1030 = vld [vmem:[%s1 + $0x50] sm:$0xff]
    %v1031 = vld [vmem:[%s1 + $0x58] sm:$0xff]
    %v1032 = vld [vmem:[%s1 + $0x60] sm:$0xff]
    %v1033 = vld [vmem:[%s1 + $0x68] sm:$0xff]
    %v1034 = vld [vmem:[%s1 + $0x70] sm:$0xff]
    %v1035 = vld [vmem:[%s1 + $0x78] sm:$0xff]
    %v1036 = vld [vmem:[%s1 + $0x80] sm:$0xff]
    %v1037 = vld [vmem:[%s1 + $0x88] sm:$0xff]
    %v1038 = vld [vmem:[%s1 + $0x90] sm:$0xff]
    %v1039 = vld [vmem:[%s1 + $0x98] sm:$0xff]
    %v1040 = vld [vmem:[%s1 + $0xa0] sm:$0xff]
    %v1041 = vld [vmem:[%s1 + $0xa8] sm:$0xff]
    %v1042 = vld [vmem:[%s1 + $0xb0] sm:$0xff]
    %v1043 = vld [vmem:[%s1 + $0xb8] sm:$0xff]
    %v1044 = vld [vmem:[%s2] sm:$0x1]
    %v1046 = vlaneseq
    %v1047 = vshrl.u32 %v1046, 7
    %v1048 = vsub.s32 0, %v1047
    %v1049 = vrot.slane %v1044, %v1048
    %v1052 = vsel %vm126, %v1019, 0
    %1054 = vmatprep.subr.mxu0 0.0
    %1055 = vmatpush1.msra.mxu0 %v1035
    %1056 = vmatprep.subr.mxu0 0.0
    %1057 = vmatpush1.msra.mxu0 %v1034
    %1058 = vmatprep.subr.mxu0 0.0
    %1059 = vmatpush1.msra.mxu0 %v1033
    %1060 = vmatprep.subr.mxu0 0.0
    %1061 = vmatpush1.msra.mxu0 %v1032
    %1062 = vmatprep.subr.mxu0 0.0
    %1063 = vmatpush1.msra.mxu0 %v1031
    %1064 = vmatprep.subr.mxu0 0.0
    %1065 = vmatpush1.msra.mxu0 %v1030
    %1066 = vmatprep.subr.mxu0 0.0
    %1067 = vmatpush1.msra.mxu0 %v1029
    %1068 = vmatprep.subr.mxu0 0.0
    %1069 = vmatpush1.msra.mxu0 %v1028
    %1070 = vmatprep.subr.mxu0 0.0
    %1071 = vmatpush1.msra.mxu0 %v1027
    %1072 = vmatprep.subr.mxu0 0.0
    %1073 = vmatpush1.msra.mxu0 %v1026
    %1074 = vmatprep.subr.mxu0 0.0
    %1075 = vmatpush1.msra.mxu0 %v1025
    %1076 = vmatprep.subr.mxu0 0.0
    %1077 = vmatpush1.msra.mxu0 %v1024
    %1078 = vmatprep.subr.mxu0 0.0
    %1079 = vmatpush1.msra.mxu0 %v1023
    %1080 = vmatprep.subr.mxu0 0.0
    %1081 = vmatpush1.msra.mxu0 %v1022
    %1082 = vmatprep.subr.mxu0 0.0
    %1083 = vmatpush1.msra.mxu0 %v1021
    %1084 = vmatprep.subr.mxu0 0.0
    %1085 = vmatpush1.msra.mxu0 %v1020
    %1086 = vmatprep.subr.mxu0 0.0
    %1087 = vmatpush2.msra.mxu0 0.0
    %1088 = vmatprep.subr.mxu0 0.0
    %1089 = vmatpush2.msra.mxu0 0.0
    %1090 = vmatprep.subr.mxu0 0.0
    %1091 = vmatpush2.msra.mxu0 0.0
    %1092 = vmatprep.subr.mxu0 0.0
    %1093 = vmatpush2.msra.mxu0 0.0
    %1094 = vmatprep.subr.mxu0 0.0
    %1095 = vmatpush2.msra.mxu0 0.0
    %1096 = vmatprep.subr.mxu0 0.0
    %1097 = vmatpush2.msra.mxu0 0.0
    %1098 = vmatprep.subr.mxu0 0.0
    %1099 = vmatpush2.msra.mxu0 0.0
    %1100 = vmatprep.subr.mxu0 0.0
    %1101 = vmatpush2.msra.mxu0 0.0
    %1102 = vmatprep.subr.mxu0 0.0
    %1103 = vmatpush2.msra.mxu0 %v1043
    %1104 = vmatprep.subr.mxu0 0.0
    %1105 = vmatpush2.msra.mxu0 %v1042
    %1106 = vmatprep.subr.mxu0 0.0
    %1107 = vmatpush2.msra.mxu0 %v1041
    %1108 = vmatprep.subr.mxu0 0.0
    %1109 = vmatpush2.msra.mxu0 %v1040
    %1110 = vmatprep.subr.mxu0 0.0
    %1111 = vmatpush2.msra.mxu0 %v1039
    %1112 = vmatprep.subr.mxu0 0.0
    %1113 = vmatpush2.msra.mxu0 %v1038
    %1114 = vmatprep.subr.mxu0 0.0
    %1115 = vmatpush2.msra.mxu0 %v1037
    %1116 = vmatprep.subr.mxu0 0.0
    %1117 = vmatpush2.msra.mxu0 %v1036
    %1118 = vmatprep.mubr.f32.mxu0 %v1052
    %1119 = vmatmul.mubr.f32.gmra.mxu0 %v1018
    %v1120 = vpop.f32.mrf.mxu0
    %v1121 = vadd.f32 %v1049, %v1120
    %v1122 = vpop.f32.mrf.mxu0
    %1123 = vdwg.mxu0
    %v1124 = vmul.f32 %v1121, 0.5
    %v1125 = vtanh.pop %v1124
    %v1126 = vmul.f32 %v1125, 0.5
    %v1127 = vadd.f32 %v1126, 0.5
    %v1128 = vmul.f32 %v1121, %v1127
    %1129 = vst [vmem:[#allocation2 + $0x40] sm:$0xff] %v1128
    %v1130 = vld [vmem:[%s0 + $0x20] sm:$0xff]
    %v1131 = vld [vmem:[%s0 + $0x28] sm:$0xff]
    %v1132 = vld [vmem:[%s1] sm:$0xff]
    %v1133 = vld [vmem:[%s1 + $0x8] sm:$0xff]
    %v1134 = vld [vmem:[%s1 + $0x10] sm:$0xff]
    %v1135 = vld [vmem:[%s1 + $0x18] sm:$0xff]
    %v1136 = vld [vmem:[%s1 + $0x20] sm:$0xff]
    %v1137 = vld [vmem:[%s1 + $0x28] sm:$0xff]
    %v1138 = vld [vmem:[%s1 + $0x30] sm:$0xff]
    %v1139 = vld [vmem:[%s1 + $0x38] sm:$0xff]
    %v1140 = vld [vmem:[%s1 + $0x40] sm:$0xff]
    %v1141 = vld [vmem:[%s1 + $0x48] sm:$0xff]
    %v1142 = vld [vmem:[%s1 + $0x50] sm:$0xff]
    %v1143 = vld [vmem:[%s1 + $0x58] sm:$0xff]
    %v1144 = vld [vmem:[%s1 + $0x60] sm:$0xff]
    %v1145 = vld [vmem:[%s1 + $0x68] sm:$0xff]
    %v1146 = vld [vmem:[%s1 + $0x70] sm:$0xff]
    %v1147 = vld [vmem:[%s1 + $0x78] sm:$0xff]
    %v1148 = vld [vmem:[%s1 + $0x80] sm:$0xff]
    %v1149 = vld [vmem:[%s1 + $0x88] sm:$0xff]
    %v1150 = vld [vmem:[%s1 + $0x90] sm:$0xff]
    %v1151 = vld [vmem:[%s1 + $0x98] sm:$0xff]
    %v1152 = vld [vmem:[%s1 + $0xa0] sm:$0xff]
    %v1153 = vld [vmem:[%s1 + $0xa8] sm:$0xff]
    %v1154 = vld [vmem:[%s1 + $0xb0] sm:$0xff]
    %v1155 = vld [vmem:[%s1 + $0xb8] sm:$0xff]
    %v1156 = vld [vmem:[%s2] sm:$0x1]
    %v1158 = vlaneseq
    %v1159 = vshrl.u32 %v1158, 7
    %v1160 = vsub.s32 0, %v1159
    %v1161 = vrot.slane %v1156, %v1160
    %1165 = vrot.lane.b32.xlu0 %v1130, 64
    %v1166 = vpop.permute.xlu0 %1165
    %1167 = vrot.lane.b32.xlu0 %v1131, 64
    %v1168 = vpop.permute.xlu0 %1167
    %v1169 = vsel %vm126, %v1166, %v1168
    %v1171 = vsel %vm126, %v1168, 0
    %1173 = vmatprep.subr.mxu0 0.0
    %1174 = vmatpush1.msra.mxu0 %v1147
    %1175 = vmatprep.subr.mxu0 0.0
    %1176 = vmatpush1.msra.mxu0 %v1146
    %1177 = vmatprep.subr.mxu0 0.0
    %1178 = vmatpush1.msra.mxu0 %v1145
    %1179 = vmatprep.subr.mxu0 0.0
    %1180 = vmatpush1.msra.mxu0 %v1144
    %1181 = vmatprep.subr.mxu0 0.0
    %1182 = vmatpush1.msra.mxu0 %v1143
    %1183 = vmatprep.subr.mxu0 0.0
    %1184 = vmatpush1.msra.mxu0 %v1142
    %1185 = vmatprep.subr.mxu0 0.0
    %1186 = vmatpush1.msra.mxu0 %v1141
    %1187 = vmatprep.subr.mxu0 0.0
    %1188 = vmatpush1.msra.mxu0 %v1140
    %1189 = vmatprep.subr.mxu0 0.0
    %1190 = vmatpush1.msra.mxu0 %v1139
    %1191 = vmatprep.subr.mxu0 0.0
    %1192 = vmatpush1.msra.mxu0 %v1138
    %1193 = vmatprep.subr.mxu0 0.0
    %1194 = vmatpush1.msra.mxu0 %v1137
    %1195 = vmatprep.subr.mxu0 0.0
    %1196 = vmatpush1.msra.mxu0 %v1136
    %1197 = vmatprep.subr.mxu0 0.0
    %1198 = vmatpush1.msra.mxu0 %v1135
    %1199 = vmatprep.subr.mxu0 0.0
    %1200 = vmatpush1.msra.mxu0 %v1134
    %1201 = vmatprep.subr.mxu0 0.0
    %1202 = vmatpush1.msra.mxu0 %v1133
    %1203 = vmatprep.subr.mxu0 0.0
    %1204 = vmatpush1.msra.mxu0 %v1132
    %1205 = vmatprep.subr.mxu0 0.0
    %1206 = vmatpush2.msra.mxu0 0.0
    %1207 = vmatprep.subr.mxu0 0.0
    %1208 = vmatpush2.msra.mxu0 0.0
    %1209 = vmatprep.subr.mxu0 0.0
    %1210 = vmatpush2.msra.mxu0 0.0
    %1211 = vmatprep.subr.mxu0 0.0
    %1212 = vmatpush2.msra.mxu0 0.0
    %1213 = vmatprep.subr.mxu0 0.0
    %1214 = vmatpush2.msra.mxu0 0.0
    %1215 = vmatprep.subr.mxu0 0.0
    %1216 = vmatpush2.msra.mxu0 0.0
    %1217 = vmatprep.subr.mxu0 0.0
    %1218 = vmatpush2.msra.mxu0 0.0
    %1219 = vmatprep.subr.mxu0 0.0
    %1220 = vmatpush2.msra.mxu0 0.0
    %1221 = vmatprep.subr.mxu0 0.0
    %1222 = vmatpush2.msra.mxu0 %v1155
    %1223 = vmatprep.subr.mxu0 0.0
    %1224 = vmatpush2.msra.mxu0 %v1154
    %1225 = vmatprep.subr.mxu0 0.0
    %1226 = vmatpush2.msra.mxu0 %v1153
    %1227 = vmatprep.subr.mxu0 0.0
    %1228 = vmatpush2.msra.mxu0 %v1152
    %1229 = vmatprep.subr.mxu0 0.0
    %1230 = vmatpush2.msra.mxu0 %v1151
    %1231 = vmatprep.subr.mxu0 0.0
    %1232 = vmatpush2.msra.mxu0 %v1150
    %1233 = vmatprep.subr.mxu0 0.0
    %1234 = vmatpush2.msra.mxu0 %v1149
    %1235 = vmatprep.subr.mxu0 0.0
    %1236 = vmatpush2.msra.mxu0 %v1148
    %1237 = vmatprep.mubr.f32.mxu0 %v1171
    %1238 = vmatmul.mubr.f32.gmra.mxu0 %v1169
    %v1239 = vpop.f32.mrf.mxu0
    %v1240 = vadd.f32 %v1161, %v1239
    %v1241 = vpop.f32.mrf.mxu0
    %1242 = vdwg.mxu0
    %v1243 = vmul.f32 %v1240, 0.5
    %v1244 = vtanh.pop %v1243
    %v1245 = vmul.f32 %v1244, 0.5
    %v1246 = vadd.f32 %v1245, 0.5
    %v1247 = vmul.f32 %v1240, %v1246
    %1248 = vst [vmem:[#allocation2 + $0x48] sm:$0xff] %v1247
    %v1249 = vld [vmem:[%s0 + $0x28] sm:$0xff]
    %v1250 = vld [vmem:[%s0 + $0x30] sm:$0xff]
    %v1251 = vld [vmem:[%s1] sm:$0xff]
    %v1252 = vld [vmem:[%s1 + $0x8] sm:$0xff]
    %v1253 = vld [vmem:[%s1 + $0x10] sm:$0xff]
    %v1254 = vld [vmem:[%s1 + $0x18] sm:$0xff]
    %v1255 = vld [vmem:[%s1 + $0x20] sm:$0xff]
    %v1256 = vld [vmem:[%s1 + $0x28] sm:$0xff]
    %v1257 = vld [vmem:[%s1 + $0x30] sm:$0xff]
    %v1258 = vld [vmem:[%s1 + $0x38] sm:$0xff]
    %v1259 = vld [vmem:[%s1 + $0x40] sm:$0xff]
    %v1260 = vld [vmem:[%s1 + $0x48] sm:$0xff]
    %v1261 = vld [vmem:[%s1 + $0x50] sm:$0xff]
    %v1262 = vld [vmem:[%s1 + $0x58] sm:$0xff]
    %v1263 = vld [vmem:[%s1 + $0x60] sm:$0xff]
    %v1264 = vld [vmem:[%s1 + $0x68] sm:$0xff]
    %v1265 = vld [vmem:[%s1 + $0x70] sm:$0xff]
    %v1266 = vld [vmem:[%s1 + $0x78] sm:$0xff]
    %v1267 = vld [vmem:[%s1 + $0x80] sm:$0xff]
    %v1268 = vld [vmem:[%s1 + $0x88] sm:$0xff]
    %v1269 = vld [vmem:[%s1 + $0x90] sm:$0xff]
    %v1270 = vld [vmem:[%s1 + $0x98] sm:$0xff]
    %v1271 = vld [vmem:[%s1 + $0xa0] sm:$0xff]
    %v1272 = vld [vmem:[%s1 + $0xa8] sm:$0xff]
    %v1273 = vld [vmem:[%s1 + $0xb0] sm:$0xff]
    %v1274 = vld [vmem:[%s1 + $0xb8] sm:$0xff]
    %v1275 = vld [vmem:[%s2] sm:$0x1]
    %v1277 = vlaneseq
    %v1278 = vshrl.u32 %v1277, 7
    %v1279 = vsub.s32 0, %v1278
    %v1280 = vrot.slane %v1275, %v1279
    %v1283 = vsel %vm126, %v1250, 0
    %1285 = vmatprep.subr.mxu0 0.0
    %1286 = vmatpush1.msra.mxu0 %v1266
    %1287 = vmatprep.subr.mxu0 0.0
    %1288 = vmatpush1.msra.mxu0 %v1265
    %1289 = vmatprep.subr.mxu0 0.0
    %1290 = vmatpush1.msra.mxu0 %v1264
    %1291 = vmatprep.subr.mxu0 0.0
    %1292 = vmatpush1.msra.mxu0 %v1263
    %1293 = vmatprep.subr.mxu0 0.0
    %1294 = vmatpush1.msra.mxu0 %v1262
    %1295 = vmatprep.subr.mxu0 0.0
    %1296 = vmatpush1.msra.mxu0 %v1261
    %1297 = vmatprep.subr.mxu0 0.0
    %1298 = vmatpush1.msra.mxu0 %v1260
    %1299 = vmatprep.subr.mxu0 0.0
    %1300 = vmatpush1.msra.mxu0 %v1259
    %1301 = vmatprep.subr.mxu0 0.0
    %1302 = vmatpush1.msra.mxu0 %v1258
    %1303 = vmatprep.subr.mxu0 0.0
    %1304 = vmatpush1.msra.mxu0 %v1257
    %1305 = vmatprep.subr.mxu0 0.0
    %1306 = vmatpush1.msra.mxu0 %v1256
    %1307 = vmatprep.subr.mxu0 0.0
    %1308 = vmatpush1.msra.mxu0 %v1255
    %1309 = vmatprep.subr.mxu0 0.0
    %1310 = vmatpush1.msra.mxu0 %v1254
    %1311 = vmatprep.subr.mxu0 0.0
    %1312 = vmatpush1.msra.mxu0 %v1253
    %1313 = vmatprep.subr.mxu0 0.0
    %1314 = vmatpush1.msra.mxu0 %v1252
    %1315 = vmatprep.subr.mxu0 0.0
    %1316 = vmatpush1.msra.mxu0 %v1251
    %1317 = vmatprep.subr.mxu0 0.0
    %1318 = vmatpush2.msra.mxu0 0.0
    %1319 = vmatprep.subr.mxu0 0.0
    %1320 = vmatpush2.msra.mxu0 0.0
    %1321 = vmatprep.subr.mxu0 0.0
    %1322 = vmatpush2.msra.mxu0 0.0
    %1323 = vmatprep.subr.mxu0 0.0
    %1324 = vmatpush2.msra.mxu0 0.0
    %1325 = vmatprep.subr.mxu0 0.0
    %1326 = vmatpush2.msra.mxu0 0.0
    %1327 = vmatprep.subr.mxu0 0.0
    %1328 = vmatpush2.msra.mxu0 0.0
    %1329 = vmatprep.subr.mxu0 0.0
    %1330 = vmatpush2.msra.mxu0 0.0
    %1331 = vmatprep.subr.mxu0 0.0
    %1332 = vmatpush2.msra.mxu0 0.0
    %1333 = vmatprep.subr.mxu0 0.0
    %1334 = vmatpush2.msra.mxu0 %v1274
    %1335 = vmatprep.subr.mxu0 0.0
    %1336 = vmatpush2.msra.mxu0 %v1273
    %1337 = vmatprep.subr.mxu0 0.0
    %1338 = vmatpush2.msra.mxu0 %v1272
    %1339 = vmatprep.subr.mxu0 0.0
    %1340 = vmatpush2.msra.mxu0 %v1271
    %1341 = vmatprep.subr.mxu0 0.0
    %1342 = vmatpush2.msra.mxu0 %v1270
    %1343 = vmatprep.subr.mxu0 0.0
    %1344 = vmatpush2.msra.mxu0 %v1269
    %1345 = vmatprep.subr.mxu0 0.0
    %1346 = vmatpush2.msra.mxu0 %v1268
    %1347 = vmatprep.subr.mxu0 0.0
    %1348 = vmatpush2.msra.mxu0 %v1267
    %1349 = vmatprep.mubr.f32.mxu0 %v1283
    %1350 = vmatmul.mubr.f32.gmra.mxu0 %v1249
    %v1351 = vpop.f32.mrf.mxu0
    %v1352 = vadd.f32 %v1280, %v1351
    %v1353 = vpop.f32.mrf.mxu0
    %1354 = vdwg.mxu0
    %v1355 = vmul.f32 %v1352, 0.5
    %v1356 = vtanh.pop %v1355
    %v1357 = vmul.f32 %v1356, 0.5
    %v1358 = vadd.f32 %v1357, 0.5
    %v1359 = vmul.f32 %v1352, %v1358
    %1360 = vst [vmem:[#allocation2 + $0x50] sm:$0xff] %v1359
    %v1361 = vld [vmem:[%s0 + $0x28] sm:$0xff]
    %v1362 = vld [vmem:[%s0 + $0x30] sm:$0xff]
    %v1363 = vld [vmem:[%s1] sm:$0xff]
    %v1364 = vld [vmem:[%s1 + $0x8] sm:$0xff]
    %v1365 = vld [vmem:[%s1 + $0x10] sm:$0xff]
    %v1366 = vld [vmem:[%s1 + $0x18] sm:$0xff]
    %v1367 = vld [vmem:[%s1 + $0x20] sm:$0xff]
    %v1368 = vld [vmem:[%s1 + $0x28] sm:$0xff]
    %v1369 = vld [vmem:[%s1 + $0x30] sm:$0xff]
    %v1370 = vld [vmem:[%s1 + $0x38] sm:$0xff]
    %v1371 = vld [vmem:[%s1 + $0x40] sm:$0xff]
    %v1372 = vld [vmem:[%s1 + $0x48] sm:$0xff]
    %v1373 = vld [vmem:[%s1 + $0x50] sm:$0xff]
    %v1374 = vld [vmem:[%s1 + $0x58] sm:$0xff]
    %v1375 = vld [vmem:[%s1 + $0x60] sm:$0xff]
    %v1376 = vld [vmem:[%s1 + $0x68] sm:$0xff]
    %v1377 = vld [vmem:[%s1 + $0x70] sm:$0xff]
    %v1378 = vld [vmem:[%s1 + $0x78] sm:$0xff]
    %v1379 = vld [vmem:[%s1 + $0x80] sm:$0xff]
    %v1380 = vld [vmem:[%s1 + $0x88] sm:$0xff]
    %v1381 = vld [vmem:[%s1 + $0x90] sm:$0xff]
    %v1382 = vld [vmem:[%s1 + $0x98] sm:$0xff]
    %v1383 = vld [vmem:[%s1 + $0xa0] sm:$0xff]
    %v1384 = vld [vmem:[%s1 + $0xa8] sm:$0xff]
    %v1385 = vld [vmem:[%s1 + $0xb0] sm:$0xff]
    %v1386 = vld [vmem:[%s1 + $0xb8] sm:$0xff]
    %v1387 = vld [vmem:[%s2] sm:$0x1]
    %v1389 = vlaneseq
    %v1390 = vshrl.u32 %v1389, 7
    %v1391 = vsub.s32 0, %v1390
    %v1392 = vrot.slane %v1387, %v1391
    %1396 = vrot.lane.b32.xlu0 %v1361, 64
    %v1397 = vpop.permute.xlu0 %1396
    %1398 = vrot.lane.b32.xlu0 %v1362, 64
    %v1399 = vpop.permute.xlu0 %1398
    %v1400 = vsel %vm126, %v1397, %v1399
    %v1402 = vsel %vm126, %v1399, 0
    %1404 = vmatprep.subr.mxu0 0.0
    %1405 = vmatpush1.msra.mxu0 %v1378
    %1406 = vmatprep.subr.mxu0 0.0
    %1407 = vmatpush1.msra.mxu0 %v1377
    %1408 = vmatprep.subr.mxu0 0.0
    %1409 = vmatpush1.msra.mxu0 %v1376
    %1410 = vmatprep.subr.mxu0 0.0
    %1411 = vmatpush1.msra.mxu0 %v1375
    %1412 = vmatprep.subr.mxu0 0.0
    %1413 = vmatpush1.msra.mxu0 %v1374
    %1414 = vmatprep.subr.mxu0 0.0
    %1415 = vmatpush1.msra.mxu0 %v1373
    %1416 = vmatprep.subr.mxu0 0.0
    %1417 = vmatpush1.msra.mxu0 %v1372
    %1418 = vmatprep.subr.mxu0 0.0
    %1419 = vmatpush1.msra.mxu0 %v1371
    %1420 = vmatprep.subr.mxu0 0.0
    %1421 = vmatpush1.msra.mxu0 %v1370
    %1422 = vmatprep.subr.mxu0 0.0
    %1423 = vmatpush1.msra.mxu0 %v1369
    %1424 = vmatprep.subr.mxu0 0.0
    %1425 = vmatpush1.msra.mxu0 %v1368
    %1426 = vmatprep.subr.mxu0 0.0
    %1427 = vmatpush1.msra.mxu0 %v1367
    %1428 = vmatprep.subr.mxu0 0.0
    %1429 = vmatpush1.msra.mxu0 %v1366
    %1430 = vmatprep.subr.mxu0 0.0
    %1431 = vmatpush1.msra.mxu0 %v1365
    %1432 = vmatprep.subr.mxu0 0.0
    %1433 = vmatpush1.msra.mxu0 %v1364
    %1434 = vmatprep.subr.mxu0 0.0
    %1435 = vmatpush1.msra.mxu0 %v1363
    %1436 = vmatprep.subr.mxu0 0.0
    %1437 = vmatpush2.msra.mxu0 0.0
    %1438 = vmatprep.subr.mxu0 0.0
    %1439 = vmatpush2.msra.mxu0 0.0
    %1440 = vmatprep.subr.mxu0 0.0
    %1441 = vmatpush2.msra.mxu0 0.0
    %1442 = vmatprep.subr.mxu0 0.0
    %1443 = vmatpush2.msra.mxu0 0.0
    %1444 = vmatprep.subr.mxu0 0.0
    %1445 = vmatpush2.msra.mxu0 0.0
    %1446 = vmatprep.subr.mxu0 0.0
    %1447 = vmatpush2.msra.mxu0 0.0
    %1448 = vmatprep.subr.mxu0 0.0
    %1449 = vmatpush2.msra.mxu0 0.0
    %1450 = vmatprep.subr.mxu0 0.0
    %1451 = vmatpush2.msra.mxu0 0.0
    %1452 = vmatprep.subr.mxu0 0.0
    %1453 = vmatpush2.msra.mxu0 %v1386
    %1454 = vmatprep.subr.mxu0 0.0
    %1455 = vmatpush2.msra.mxu0 %v1385
    %1456 = vmatprep.subr.mxu0 0.0
    %1457 = vmatpush2.msra.mxu0 %v1384
    %1458 = vmatprep.subr.mxu0 0.0
    %1459 = vmatpush2.msra.mxu0 %v1383
    %1460 = vmatprep.subr.mxu0 0.0
    %1461 = vmatpush2.msra.mxu0 %v1382
    %1462 = vmatprep.subr.mxu0 0.0
    %1463 = vmatpush2.msra.mxu0 %v1381
    %1464 = vmatprep.subr.mxu0 0.0
    %1465 = vmatpush2.msra.mxu0 %v1380
    %1466 = vmatprep.subr.mxu0 0.0
    %1467 = vmatpush2.msra.mxu0 %v1379
    %1468 = vmatprep.mubr.f32.mxu0 %v1402
    %1469 = vmatmul.mubr.f32.gmra.mxu0 %v1400
    %v1470 = vpop.f32.mrf.mxu0
    %v1471 = vadd.f32 %v1392, %v1470
    %v1472 = vpop.f32.mrf.mxu0
    %1473 = vdwg.mxu0
    %v1474 = vmul.f32 %v1471, 0.5
    %v1475 = vtanh.pop %v1474
    %v1476 = vmul.f32 %v1475, 0.5
    %v1477 = vadd.f32 %v1476, 0.5
    %v1478 = vmul.f32 %v1471, %v1477
    %1479 = vst [vmem:[#allocation2 + $0x58] sm:$0xff] %v1478
    %v1480 = vld [vmem:[%s0 + $0x30] sm:$0xff]
    %v1481 = vld [vmem:[%s0 + $0x38] sm:$0xff]
    %v1482 = vld [vmem:[%s1] sm:$0xff]
    %v1483 = vld [vmem:[%s1 + $0x8] sm:$0xff]
    %v1484 = vld [vmem:[%s1 + $0x10] sm:$0xff]
    %v1485 = vld [vmem:[%s1 + $0x18] sm:$0xff]
    %v1486 = vld [vmem:[%s1 + $0x20] sm:$0xff]
    %v1487 = vld [vmem:[%s1 + $0x28] sm:$0xff]
    %v1488 = vld [vmem:[%s1 + $0x30] sm:$0xff]
    %v1489 = vld [vmem:[%s1 + $0x38] sm:$0xff]
    %v1490 = vld [vmem:[%s1 + $0x40] sm:$0xff]
    %v1491 = vld [vmem:[%s1 + $0x48] sm:$0xff]
    %v1492 = vld [vmem:[%s1 + $0x50] sm:$0xff]
    %v1493 = vld [vmem:[%s1 + $0x58] sm:$0xff]
    %v1494 = vld [vmem:[%s1 + $0x60] sm:$0xff]
    %v1495 = vld [vmem:[%s1 + $0x68] sm:$0xff]
    %v1496 = vld [vmem:[%s1 + $0x70] sm:$0xff]
    %v1497 = vld [vmem:[%s1 + $0x78] sm:$0xff]
    %v1498 = vld [vmem:[%s1 + $0x80] sm:$0xff]
    %v1499 = vld [vmem:[%s1 + $0x88] sm:$0xff]
    %v1500 = vld [vmem:[%s1 + $0x90] sm:$0xff]
    %v1501 = vld [vmem:[%s1 + $0x98] sm:$0xff]
    %v1502 = vld [vmem:[%s1 + $0xa0] sm:$0xff]
    %v1503 = vld [vmem:[%s1 + $0xa8] sm:$0xff]
    %v1504 = vld [vmem:[%s1 + $0xb0] sm:$0xff]
    %v1505 = vld [vmem:[%s1 + $0xb8] sm:$0xff]
    %v1506 = vld [vmem:[%s2] sm:$0x1]
    %v1508 = vlaneseq
    %v1509 = vshrl.u32 %v1508, 7
    %v1510 = vsub.s32 0, %v1509
    %v1511 = vrot.slane %v1506, %v1510
    %v1514 = vsel %vm126, %v1481, 0
    %1516 = vmatprep.subr.mxu0 0.0
    %1517 = vmatpush1.msra.mxu0 %v1497
    %1518 = vmatprep.subr.mxu0 0.0
    %1519 = vmatpush1.msra.mxu0 %v1496
    %1520 = vmatprep.subr.mxu0 0.0
    %1521 = vmatpush1.msra.mxu0 %v1495
    %1522 = vmatprep.subr.mxu0 0.0
    %1523 = vmatpush1.msra.mxu0 %v1494
    %1524 = vmatprep.subr.mxu0 0.0
    %1525 = vmatpush1.msra.mxu0 %v1493
    %1526 = vmatprep.subr.mxu0 0.0
    %1527 = vmatpush1.msra.mxu0 %v1492
    %1528 = vmatprep.subr.mxu0 0.0
    %1529 = vmatpush1.msra.mxu0 %v1491
    %1530 = vmatprep.subr.mxu0 0.0
    %1531 = vmatpush1.msra.mxu0 %v1490
    %1532 = vmatprep.subr.mxu0 0.0
    %1533 = vmatpush1.msra.mxu0 %v1489
    %1534 = vmatprep.subr.mxu0 0.0
    %1535 = vmatpush1.msra.mxu0 %v1488
    %1536 = vmatprep.subr.mxu0 0.0
    %1537 = vmatpush1.msra.mxu0 %v1487
    %1538 = vmatprep.subr.mxu0 0.0
    %1539 = vmatpush1.msra.mxu0 %v1486
    %1540 = vmatprep.subr.mxu0 0.0
    %1541 = vmatpush1.msra.mxu0 %v1485
    %1542 = vmatprep.subr.mxu0 0.0
    %1543 = vmatpush1.msra.mxu0 %v1484
    %1544 = vmatprep.subr.mxu0 0.0
    %1545 = vmatpush1.msra.mxu0 %v1483
    %1546 = vmatprep.subr.mxu0 0.0
    %1547 = vmatpush1.msra.mxu0 %v1482
    %1548 = vmatprep.subr.mxu0 0.0
    %1549 = vmatpush2.msra.mxu0 0.0
    %1550 = vmatprep.subr.mxu0 0.0
    %1551 = vmatpush2.msra.mxu0 0.0
    %1552 = vmatprep.subr.mxu0 0.0
    %1553 = vmatpush2.msra.mxu0 0.0
    %1554 = vmatprep.subr.mxu0 0.0
    %1555 = vmatpush2.msra.mxu0 0.0
    %1556 = vmatprep.subr.mxu0 0.0
    %1557 = vmatpush2.msra.mxu0 0.0
    %1558 = vmatprep.subr.mxu0 0.0
    %1559 = vmatpush2.msra.mxu0 0.0
    %1560 = vmatprep.subr.mxu0 0.0
    %1561 = vmatpush2.msra.mxu0 0.0
    %1562 = vmatprep.subr.mxu0 0.0
    %1563 = vmatpush2.msra.mxu0 0.0
    %1564 = vmatprep.subr.mxu0 0.0
    %1565 = vmatpush2.msra.mxu0 %v1505
    %1566 = vmatprep.subr.mxu0 0.0
    %1567 = vmatpush2.msra.mxu0 %v1504
    %1568 = vmatprep.subr.mxu0 0.0
    %1569 = vmatpush2.msra.mxu0 %v1503
    %1570 = vmatprep.subr.mxu0 0.0
    %1571 = vmatpush2.msra.mxu0 %v1502
    %1572 = vmatprep.subr.mxu0 0.0
    %1573 = vmatpush2.msra.mxu0 %v1501
    %1574 = vmatprep.subr.mxu0 0.0
    %1575 = vmatpush2.msra.mxu0 %v1500
    %1576 = vmatprep.subr.mxu0 0.0
    %1577 = vmatpush2.msra.mxu0 %v1499
    %1578 = vmatprep.subr.mxu0 0.0
    %1579 = vmatpush2.msra.mxu0 %v1498
    %1580 = vmatprep.mubr.f32.mxu0 %v1514
    %1581 = vmatmul.mubr.f32.gmra.mxu0 %v1480
    %v1582 = vpop.f32.mrf.mxu0
    %v1583 = vadd.f32 %v1511, %v1582
    %v1584 = vpop.f32.mrf.mxu0
    %1585 = vdwg.mxu0
    %v1586 = vmul.f32 %v1583, 0.5
    %v1587 = vtanh.pop %v1586
    %v1588 = vmul.f32 %v1587, 0.5
    %v1589 = vadd.f32 %v1588, 0.5
    %v1590 = vmul.f32 %v1583, %v1589
    %1591 = vst [vmem:[#allocation2 + $0x60] sm:$0xff] %v1590
    %v1592 = vld [vmem:[%s0 + $0x30] sm:$0xff]
    %v1593 = vld [vmem:[%s0 + $0x38] sm:$0xff]
    %v1594 = vld [vmem:[%s1] sm:$0xff]
    %v1595 = vld [vmem:[%s1 + $0x8] sm:$0xff]
    %v1596 = vld [vmem:[%s1 + $0x10] sm:$0xff]
    %v1597 = vld [vmem:[%s1 + $0x18] sm:$0xff]
    %v1598 = vld [vmem:[%s1 + $0x20] sm:$0xff]
    %v1599 = vld [vmem:[%s1 + $0x28] sm:$0xff]
    %v1600 = vld [vmem:[%s1 + $0x30] sm:$0xff]
    %v1601 = vld [vmem:[%s1 + $0x38] sm:$0xff]
    %v1602 = vld [vmem:[%s1 + $0x40] sm:$0xff]
    %v1603 = vld [vmem:[%s1 + $0x48] sm:$0xff]
    %v1604 = vld [vmem:[%s1 + $0x50] sm:$0xff]
    %v1605 = vld [vmem:[%s1 + $0x58] sm:$0xff]
    %v1606 = vld [vmem:[%s1 + $0x60] sm:$0xff]
    %v1607 = vld [vmem:[%s1 + $0x68] sm:$0xff]
    %v1608 = vld [vmem:[%s1 + $0x70] sm:$0xff]
    %v1609 = vld [vmem:[%s1 + $0x78] sm:$0xff]
    %v1610 = vld [vmem:[%s1 + $0x80] sm:$0xff]
    %v1611 = vld [vmem:[%s1 + $0x88] sm:$0xff]
    %v1612 = vld [vmem:[%s1 + $0x90] sm:$0xff]
    %v1613 = vld [vmem:[%s1 + $0x98] sm:$0xff]
    %v1614 = vld [vmem:[%s1 + $0xa0] sm:$0xff]
    %v1615 = vld [vmem:[%s1 + $0xa8] sm:$0xff]
    %v1616 = vld [vmem:[%s1 + $0xb0] sm:$0xff]
    %v1617 = vld [vmem:[%s1 + $0xb8] sm:$0xff]
    %v1618 = vld [vmem:[%s2] sm:$0x1]
    %v1620 = vlaneseq
    %v1621 = vshrl.u32 %v1620, 7
    %v1622 = vsub.s32 0, %v1621
    %v1623 = vrot.slane %v1618, %v1622
    %1627 = vrot.lane.b32.xlu0 %v1592, 64
    %v1628 = vpop.permute.xlu0 %1627
    %1629 = vrot.lane.b32.xlu0 %v1593, 64
    %v1630 = vpop.permute.xlu0 %1629
    %v1631 = vsel %vm126, %v1628, %v1630
    %v1633 = vsel %vm126, %v1630, 0
    %1635 = vmatprep.subr.mxu0 0.0
    %1636 = vmatpush1.msra.mxu0 %v1609
    %1637 = vmatprep.subr.mxu0 0.0
    %1638 = vmatpush1.msra.mxu0 %v1608
    %1639 = vmatprep.subr.mxu0 0.0
    %1640 = vmatpush1.msra.mxu0 %v1607
    %1641 = vmatprep.subr.mxu0 0.0
    %1642 = vmatpush1.msra.mxu0 %v1606
    %1643 = vmatprep.subr.mxu0 0.0
    %1644 = vmatpush1.msra.mxu0 %v1605
    %1645 = vmatprep.subr.mxu0 0.0
    %1646 = vmatpush1.msra.mxu0 %v1604
    %1647 = vmatprep.subr.mxu0 0.0
    %1648 = vmatpush1.msra.mxu0 %v1603
    %1649 = vmatprep.subr.mxu0 0.0
    %1650 = vmatpush1.msra.mxu0 %v1602
    %1651 = vmatprep.subr.mxu0 0.0
    %1652 = vmatpush1.msra.mxu0 %v1601
    %1653 = vmatprep.subr.mxu0 0.0
    %1654 = vmatpush1.msra.mxu0 %v1600
    %1655 = vmatprep.subr.mxu0 0.0
    %1656 = vmatpush1.msra.mxu0 %v1599
    %1657 = vmatprep.subr.mxu0 0.0
    %1658 = vmatpush1.msra.mxu0 %v1598
    %1659 = vmatprep.subr.mxu0 0.0
    %1660 = vmatpush1.msra.mxu0 %v1597
    %1661 = vmatprep.subr.mxu0 0.0
    %1662 = vmatpush1.msra.mxu0 %v1596
    %1663 = vmatprep.subr.mxu0 0.0
    %1664 = vmatpush1.msra.mxu0 %v1595
    %1665 = vmatprep.subr.mxu0 0.0
    %1666 = vmatpush1.msra.mxu0 %v1594
    %1667 = vmatprep.subr.mxu0 0.0
    %1668 = vmatpush2.msra.mxu0 0.0
    %1669 = vmatprep.subr.mxu0 0.0
    %1670 = vmatpush2.msra.mxu0 0.0
    %1671 = vmatprep.subr.mxu0 0.0
    %1672 = vmatpush2.msra.mxu0 0.0
    %1673 = vmatprep.subr.mxu0 0.0
    %1674 = vmatpush2.msra.mxu0 0.0
    %1675 = vmatprep.subr.mxu0 0.0
    %1676 = vmatpush2.msra.mxu0 0.0
    %1677 = vmatprep.subr.mxu0 0.0
    %1678 = vmatpush2.msra.mxu0 0.0
    %1679 = vmatprep.subr.mxu0 0.0
    %1680 = vmatpush2.msra.mxu0 0.0
    %1681 = vmatprep.subr.mxu0 0.0
    %1682 = vmatpush2.msra.mxu0 0.0
    %1683 = vmatprep.subr.mxu0 0.0
    %1684 = vmatpush2.msra.mxu0 %v1617
    %1685 = vmatprep.subr.mxu0 0.0
    %1686 = vmatpush2.msra.mxu0 %v1616
    %1687 = vmatprep.subr.mxu0 0.0
    %1688 = vmatpush2.msra.mxu0 %v1615
    %1689 = vmatprep.subr.mxu0 0.0
    %1690 = vmatpush2.msra.mxu0 %v1614
    %1691 = vmatprep.subr.mxu0 0.0
    %1692 = vmatpush2.msra.mxu0 %v1613
    %1693 = vmatprep.subr.mxu0 0.0
    %1694 = vmatpush2.msra.mxu0 %v1612
    %1695 = vmatprep.subr.mxu0 0.0
    %1696 = vmatpush2.msra.mxu0 %v1611
    %1697 = vmatprep.subr.mxu0 0.0
    %1698 = vmatpush2.msra.mxu0 %v1610
    %1699 = vmatprep.mubr.f32.mxu0 %v1633
    %1700 = vmatmul.mubr.f32.gmra.mxu0 %v1631
    %v1701 = vpop.f32.mrf.mxu0
    %v1702 = vadd.f32 %v1623, %v1701
    %v1703 = vpop.f32.mrf.mxu0
    %1704 = vdwg.mxu0
    %v1705 = vmul.f32 %v1702, 0.5
    %v1706 = vtanh.pop %v1705
    %v1707 = vmul.f32 %v1706, 0.5
    %v1708 = vadd.f32 %v1707, 0.5
    %v1709 = vmul.f32 %v1702, %v1708
    %1710 = vst [vmem:[#allocation2 + $0x68] sm:$0xff] %v1709
    %v1711 = vld [vmem:[#allocation2] sm:$0xff]
    %v1712 = vld [vmem:[#allocation2 + $0x8] sm:$0xff]
    %v1713 = vld [vmem:[#allocation2 + $0x10] sm:$0xff]
    %v1714 = vld [vmem:[#allocation2 + $0x18] sm:$0xff]
    %v1715 = vld [vmem:[#allocation2 + $0x20] sm:$0xff]
    %v1716 = vld [vmem:[#allocation2 + $0x28] sm:$0xff]
    %v1717 = vld [vmem:[#allocation4] sm:$0xff]
    %v1718 = vld [vmem:[#allocation4 + $0x8] sm:$0xff]
    %v1719 = vld [vmem:[#allocation4 + $0x10] sm:$0xff]
    %v1720 = vld [vmem:[#allocation4 + $0x18] sm:$0xff]
    %v1721 = vld [vmem:[#allocation4 + $0x20] sm:$0xff]
    %v1722 = vld [vmem:[#allocation4 + $0x28] sm:$0xff]
    %v1723 = vld [vmem:[#allocation4 + $0x30] sm:$0xff]
    %v1724 = vld [vmem:[#allocation4 + $0x38] sm:$0xff]
    %v1725 = vld [vmem:[#allocation4 + $0x40] sm:$0xff]
    %v1726 = vld [vmem:[#allocation4 + $0x48] sm:$0xff]
    %v1727 = vld [vmem:[#allocation4 + $0x50] sm:$0xff]
    %v1728 = vld [vmem:[#allocation4 + $0x58] sm:$0xff]
    %v1729 = vld [vmem:[#allocation4 + $0x60] sm:$0xff]
    %v1730 = vld [vmem:[#allocation4 + $0x68] sm:$0xff]
    %v1731 = vld [vmem:[#allocation4 + $0x70] sm:$0xff]
    %v1732 = vld [vmem:[#allocation4 + $0x78] sm:$0xff]
    %v1733 = vld [vmem:[#allocation4 + $0x80] sm:$0xff]
    %v1734 = vld [vmem:[#allocation4 + $0x88] sm:$0xff]
    %v1735 = vld [vmem:[#allocation4 + $0x90] sm:$0xff]
    %v1736 = vld [vmem:[#allocation4 + $0x98] sm:$0xff]
    %v1737 = vld [vmem:[#allocation4 + $0xa0] sm:$0xff]
    %v1738 = vld [vmem:[#allocation4 + $0xa8] sm:$0xff]
    %v1739 = vld [vmem:[#allocation4 + $0xb0] sm:$0xff]
    %v1740 = vld [vmem:[#allocation4 + $0xb8] sm:$0xff]
    %v1741 = vld [vmem:[#allocation4 + $0xc0] sm:$0xff]
    %v1742 = vld [vmem:[#allocation4 + $0xc8] sm:$0xff]
    %v1743 = vld [vmem:[#allocation4 + $0xd0] sm:$0xff]
    %v1744 = vld [vmem:[#allocation4 + $0xd8] sm:$0xff]
    %v1745 = vld [vmem:[#allocation4 + $0xe0] sm:$0xff]
    %v1746 = vld [vmem:[#allocation4 + $0xe8] sm:$0xff]
    %v1747 = vld [vmem:[#allocation4 + $0xf0] sm:$0xff]
    %v1748 = vld [vmem:[#allocation4 + $0xf8] sm:$0xff]
    %v1749 = vld [vmem:[#allocation4 + $0x100] sm:$0xff]
    %v1750 = vld [vmem:[#allocation4 + $0x108] sm:$0xff]
    %v1751 = vld [vmem:[#allocation4 + $0x110] sm:$0xff]
    %v1752 = vld [vmem:[#allocation4 + $0x118] sm:$0xff]
    %v1753 = vld [vmem:[#allocation4 + $0x120] sm:$0xff]
    %v1754 = vld [vmem:[#allocation4 + $0x128] sm:$0xff]
    %v1755 = vld [vmem:[#allocation4 + $0x130] sm:$0xff]
    %v1756 = vld [vmem:[#allocation4 + $0x138] sm:$0xff]
    %v1757 = vld [vmem:[#allocation4 + $0x140] sm:$0xff]
    %v1758 = vld [vmem:[#allocation4 + $0x148] sm:$0xff]
    %v1759 = vld [vmem:[#allocation4 + $0x150] sm:$0xff]
    %v1760 = vld [vmem:[#allocation4 + $0x158] sm:$0xff]
    %v1761 = vld [vmem:[#allocation4 + $0x160] sm:$0xff]
    %v1762 = vld [vmem:[#allocation4 + $0x168] sm:$0xff]
    %v1763 = vld [vmem:[#allocation4 + $0x170] sm:$0xff]
    %v1764 = vld [vmem:[#allocation4 + $0x178] sm:$0xff]
    %v1765 = vld [vmem:[#allocation4 + $0x180] sm:$0xff]
    %v1766 = vld [vmem:[#allocation4 + $0x188] sm:$0xff]
    %v1767 = vld [vmem:[#allocation4 + $0x190] sm:$0xff]
    %v1768 = vld [vmem:[#allocation4 + $0x198] sm:$0xff]
    %v1769 = vld [vmem:[#allocation4 + $0x1a0] sm:$0xff]
    %v1770 = vld [vmem:[#allocation4 + $0x1a8] sm:$0xff]
    %v1771 = vld [vmem:[#allocation4 + $0x1b0] sm:$0xff]
    %v1772 = vld [vmem:[#allocation4 + $0x1b8] sm:$0xff]
    %v1773 = vld [vmem:[#allocation4 + $0x1c0] sm:$0xff]
    %v1774 = vld [vmem:[#allocation4 + $0x1c8] sm:$0xff]
    %v1775 = vld [vmem:[#allocation4 + $0x1d0] sm:$0xff]
    %v1776 = vld [vmem:[#allocation4 + $0x1d8] sm:$0xff]
    %v1777 = vld [vmem:[#allocation4 + $0x1e0] sm:$0xff]
    %v1778 = vld [vmem:[#allocation4 + $0x1e8] sm:$0xff]
    %v1779 = vld [vmem:[#allocation4 + $0x1f0] sm:$0xff]
    %v1780 = vld [vmem:[#allocation4 + $0x1f8] sm:$0xff]
    %v1781 = vld [vmem:[#allocation4 + $0x200] sm:$0xff]
    %v1782 = vld [vmem:[#allocation4 + $0x208] sm:$0xff]
    %v1783 = vld [vmem:[#allocation4 + $0x210] sm:$0xff]
    %v1784 = vld [vmem:[#allocation4 + $0x218] sm:$0xff]
    %v1785 = vld [vmem:[#allocation4 + $0x220] sm:$0xff]
    %v1786 = vld [vmem:[#allocation4 + $0x228] sm:$0xff]
    %v1787 = vld [vmem:[#allocation4 + $0x230] sm:$0xff]
    %v1788 = vld [vmem:[#allocation4 + $0x238] sm:$0xff]
    %v1789 = vld [vmem:[#allocation4 + $0x240] sm:$0xff]
    %v1790 = vld [vmem:[#allocation4 + $0x248] sm:$0xff]
    %v1791 = vld [vmem:[#allocation4 + $0x250] sm:$0xff]
    %v1792 = vld [vmem:[#allocation4 + $0x258] sm:$0xff]
    %v1793 = vld [vmem:[#allocation4 + $0x260] sm:$0xff]
    %v1794 = vld [vmem:[#allocation4 + $0x268] sm:$0xff]
    %v1795 = vld [vmem:[#allocation4 + $0x270] sm:$0xff]
    %v1796 = vld [vmem:[#allocation4 + $0x278] sm:$0xff]
    %v1797 = vld [vmem:[#allocation4 + $0x280] sm:$0xff]
    %v1798 = vld [vmem:[#allocation4 + $0x288] sm:$0xff]
    %v1799 = vld [vmem:[#allocation4 + $0x290] sm:$0xff]
    %v1800 = vld [vmem:[#allocation4 + $0x298] sm:$0xff]
    %v1801 = vld [vmem:[#allocation4 + $0x2a0] sm:$0xff]
    %v1802 = vld [vmem:[#allocation4 + $0x2a8] sm:$0xff]
    %v1803 = vld [vmem:[#allocation4 + $0x2b0] sm:$0xff]
    %v1804 = vld [vmem:[#allocation4 + $0x2b8] sm:$0xff]
    %v1805 = vld [vmem:[#allocation4 + $0x2c0] sm:$0xff]
    %v1806 = vld [vmem:[#allocation4 + $0x2c8] sm:$0xff]
    %v1807 = vld [vmem:[#allocation4 + $0x2d0] sm:$0xff]
    %v1808 = vld [vmem:[#allocation4 + $0x2d8] sm:$0xff]
    %v1809 = vld [vmem:[#allocation4 + $0x2e0] sm:$0xff]
    %v1810 = vld [vmem:[#allocation4 + $0x2e8] sm:$0xff]
    %v1811 = vld [vmem:[#allocation4 + $0x2f0] sm:$0xff]
    %v1812 = vld [vmem:[#allocation4 + $0x2f8] sm:$0xff]
    %v1813 = vld [vmem:[%s4] sm:$0x1]
    %v1815 = vlaneseq
    %v1816 = vshrl.u32 %v1815, 7
    %v1817 = vsub.s32 0, %v1816
    %v1818 = vrot.slane %v1813, %v1817
    %1820 = vmatprep.subr.mxu0 0.0
    %1821 = vmatpush1.msra.mxu0 %v1732
    %1822 = vmatprep.subr.mxu0 0.0
    %1823 = vmatpush1.msra.mxu0 %v1731
    %1824 = vmatprep.subr.mxu0 0.0
    %1825 = vmatpush1.msra.mxu0 %v1730
    %1826 = vmatprep.subr.mxu0 0.0
    %1827 = vmatpush1.msra.mxu0 %v1729
    %1828 = vmatprep.subr.mxu0 0.0
    %1829 = vmatpush1.msra.mxu0 %v1728
    %1830 = vmatprep.subr.mxu0 0.0
    %1831 = vmatpush1.msra.mxu0 %v1727
    %1832 = vmatprep.subr.mxu0 0.0
    %1833 = vmatpush1.msra.mxu0 %v1726
    %1834 = vmatprep.subr.mxu0 0.0
    %1835 = vmatpush1.msra.mxu0 %v1725
    %1836 = vmatprep.subr.mxu0 0.0
    %1837 = vmatpush1.msra.mxu0 %v1724
    %1838 = vmatprep.subr.mxu0 0.0
    %1839 = vmatpush1.msra.mxu0 %v1723
    %1840 = vmatprep.subr.mxu0 0.0
    %1841 = vmatpush1.msra.mxu0 %v1722
    %1842 = vmatprep.subr.mxu0 0.0
    %1843 = vmatpush1.msra.mxu0 %v1721
    %1844 = vmatprep.subr.mxu0 0.0
    %1845 = vmatpush1.msra.mxu0 %v1720
    %1846 = vmatprep.subr.mxu0 0.0
    %1847 = vmatpush1.msra.mxu0 %v1719
    %1848 = vmatprep.subr.mxu0 0.0
    %1849 = vmatpush1.msra.mxu0 %v1718
    %1850 = vmatprep.subr.mxu0 0.0
    %1851 = vmatpush1.msra.mxu0 %v1717
    %1852 = vmatprep.subr.mxu0 0.0
    %1853 = vmatpush2.msra.mxu0 %v1748
    %1854 = vmatprep.subr.mxu0 0.0
    %1855 = vmatpush2.msra.mxu0 %v1747
    %1856 = vmatprep.subr.mxu0 0.0
    %1857 = vmatpush2.msra.mxu0 %v1746
    %1858 = vmatprep.subr.mxu0 0.0
    %1859 = vmatpush2.msra.mxu0 %v1745
    %1860 = vmatprep.subr.mxu0 0.0
    %1861 = vmatpush2.msra.mxu0 %v1744
    %1862 = vmatprep.subr.mxu0 0.0
    %1863 = vmatpush2.msra.mxu0 %v1743
    %1864 = vmatprep.subr.mxu0 0.0
    %1865 = vmatpush2.msra.mxu0 %v1742
    %1866 = vmatprep.subr.mxu0 0.0
    %1867 = vmatpush2.msra.mxu0 %v1741
    %1868 = vmatprep.subr.mxu0 0.0
    %1869 = vmatpush2.msra.mxu0 %v1740
    %1870 = vmatprep.subr.mxu0 0.0
    %1871 = vmatpush2.msra.mxu0 %v1739
    %1872 = vmatprep.subr.mxu0 0.0
    %1873 = vmatpush2.msra.mxu0 %v1738
    %1874 = vmatprep.subr.mxu0 0.0
    %1875 = vmatpush2.msra.mxu0 %v1737
    %1876 = vmatprep.subr.mxu0 0.0
    %1877 = vmatpush2.msra.mxu0 %v1736
    %1878 = vmatprep.subr.mxu0 0.0
    %1879 = vmatpush2.msra.mxu0 %v1735
    %1880 = vmatprep.subr.mxu0 0.0
    %1881 = vmatpush2.msra.mxu0 %v1734
    %1882 = vmatprep.subr.mxu0 0.0
    %1883 = vmatpush2.msra.mxu0 %v1733
    %1884 = vmatprep.mubr.f32.mxu0 %v1712
    %1885 = vmatmul.mubr.f32.gmra.mxu0 %v1711
    %v1886 = vpop.f32.mrf.mxu0
    %v1887 = vadd.f32 %v1818, %v1886
    %v1888 = vpop.f32.mrf.mxu0
    %1889 = vdwg.mxu0
    %1890 = vmatprep.subr.mxu0 0.0
    %1891 = vmatpush1.msra.mxu0 %v1764
    %1892 = vmatprep.subr.mxu0 0.0
    %1893 = vmatpush1.msra.mxu0 %v1763
    %1894 = vmatprep.subr.mxu0 0.0
    %1895 = vmatpush1.msra.mxu0 %v1762
    %1896 = vmatprep.subr.mxu0 0.0
    %1897 = vmatpush1.msra.mxu0 %v1761
    %1898 = vmatprep.subr.mxu0 0.0
    %1899 = vmatpush1.msra.mxu0 %v1760
    %1900 = vmatprep.subr.mxu0 0.0
    %1901 = vmatpush1.msra.mxu0 %v1759
    %1902 = vmatprep.subr.mxu0 0.0
    %1903 = vmatpush1.msra.mxu0 %v1758
    %1904 = vmatprep.subr.mxu0 0.0
    %1905 = vmatpush1.msra.mxu0 %v1757
    %1906 = vmatprep.subr.mxu0 0.0
    %1907 = vmatpush1.msra.mxu0 %v1756
    %1908 = vmatprep.subr.mxu0 0.0
    %1909 = vmatpush1.msra.mxu0 %v1755
    %1910 = vmatprep.subr.mxu0 0.0
    %1911 = vmatpush1.msra.mxu0 %v1754
    %1912 = vmatprep.subr.mxu0 0.0
    %1913 = vmatpush1.msra.mxu0 %v1753
    %1914 = vmatprep.subr.mxu0 0.0
    %1915 = vmatpush1.msra.mxu0 %v1752
    %1916 = vmatprep.subr.mxu0 0.0
    %1917 = vmatpush1.msra.mxu0 %v1751
    %1918 = vmatprep.subr.mxu0 0.0
    %1919 = vmatpush1.msra.mxu0 %v1750
    %1920 = vmatprep.subr.mxu0 0.0
    %1921 = vmatpush1.msra.mxu0 %v1749
    %1922 = vmatprep.subr.mxu0 0.0
    %1923 = vmatpush2.msra.mxu0 %v1780
    %1924 = vmatprep.subr.mxu0 0.0
    %1925 = vmatpush2.msra.mxu0 %v1779
    %1926 = vmatprep.subr.mxu0 0.0
    %1927 = vmatpush2.msra.mxu0 %v1778
    %1928 = vmatprep.subr.mxu0 0.0
    %1929 = vmatpush2.msra.mxu0 %v1777
    %1930 = vmatprep.subr.mxu0 0.0
    %1931 = vmatpush2.msra.mxu0 %v1776
    %1932 = vmatprep.subr.mxu0 0.0
    %1933 = vmatpush2.msra.mxu0 %v1775
    %1934 = vmatprep.subr.mxu0 0.0
    %1935 = vmatpush2.msra.mxu0 %v1774
    %1936 = vmatprep.subr.mxu0 0.0
    %1937 = vmatpush2.msra.mxu0 %v1773
    %1938 = vmatprep.subr.mxu0 0.0
    %1939 = vmatpush2.msra.mxu0 %v1772
    %1940 = vmatprep.subr.mxu0 0.0
    %1941 = vmatpush2.msra.mxu0 %v1771
    %1942 = vmatprep.subr.mxu0 0.0
    %1943 = vmatpush2.msra.mxu0 %v1770
    %1944 = vmatprep.subr.mxu0 0.0
    %1945 = vmatpush2.msra.mxu0 %v1769
    %1946 = vmatprep.subr.mxu0 0.0
    %1947 = vmatpush2.msra.mxu0 %v1768
    %1948 = vmatprep.subr.mxu0 0.0
    %1949 = vmatpush2.msra.mxu0 %v1767
    %1950 = vmatprep.subr.mxu0 0.0
    %1951 = vmatpush2.msra.mxu0 %v1766
    %1952 = vmatprep.subr.mxu0 0.0
    %1953 = vmatpush2.msra.mxu0 %v1765
    %1954 = vmatprep.mubr.f32.mxu0 %v1714
    %1955 = vmatmul.mubr.f32.gmra.mxu0 %v1713
    %v1956 = vpop.f32.mrf.mxu0
    %v1957 = vadd.f32 %v1887, %v1956
    %v1958 = vpop.f32.mrf.mxu0
    %1959 = vdwg.mxu0
    %1960 = vmatprep.subr.mxu0 0.0
    %1961 = vmatpush1.msra.mxu0 %v1796
    %1962 = vmatprep.subr.mxu0 0.0
    %1963 = vmatpush1.msra.mxu0 %v1795
    %1964 = vmatprep.subr.mxu0 0.0
    %1965 = vmatpush1.msra.mxu0 %v1794
    %1966 = vmatprep.subr.mxu0 0.0
    %1967 = vmatpush1.msra.mxu0 %v1793
    %1968 = vmatprep.subr.mxu0 0.0
    %1969 = vmatpush1.msra.mxu0 %v1792
    %1970 = vmatprep.subr.mxu0 0.0
    %1971 = vmatpush1.msra.mxu0 %v1791
    %1972 = vmatprep.subr.mxu0 0.0
    %1973 = vmatpush1.msra.mxu0 %v1790
    %1974 = vmatprep.subr.mxu0 0.0
    %1975 = vmatpush1.msra.mxu0 %v1789
    %1976 = vmatprep.subr.mxu0 0.0
    %1977 = vmatpush1.msra.mxu0 %v1788
    %1978 = vmatprep.subr.mxu0 0.0
    %1979 = vmatpush1.msra.mxu0 %v1787
    %1980 = vmatprep.subr.mxu0 0.0
    %1981 = vmatpush1.msra.mxu0 %v1786
    %1982 = vmatprep.subr.mxu0 0.0
    %1983 = vmatpush1.msra.mxu0 %v1785
    %1984 = vmatprep.subr.mxu0 0.0
    %1985 = vmatpush1.msra.mxu0 %v1784
    %1986 = vmatprep.subr.mxu0 0.0
    %1987 = vmatpush1.msra.mxu0 %v1783
    %1988 = vmatprep.subr.mxu0 0.0
    %1989 = vmatpush1.msra.mxu0 %v1782
    %1990 = vmatprep.subr.mxu0 0.0
    %1991 = vmatpush1.msra.mxu0 %v1781
    %1992 = vmatprep.subr.mxu0 0.0
    %1993 = vmatpush2.msra.mxu0 %v1812
    %1994 = vmatprep.subr.mxu0 0.0
    %1995 = vmatpush2.msra.mxu0 %v1811
    %1996 = vmatprep.subr.mxu0 0.0
    %1997 = vmatpush2.msra.mxu0 %v1810
    %1998 = vmatprep.subr.mxu0 0.0
    %1999 = vmatpush2.msra.mxu0 %v1809
    %2000 = vmatprep.subr.mxu0 0.0
    %2001 = vmatpush2.msra.mxu0 %v1808
    %2002 = vmatprep.subr.mxu0 0.0
    %2003 = vmatpush2.msra.mxu0 %v1807
    %2004 = vmatprep.subr.mxu0 0.0
    %2005 = vmatpush2.msra.mxu0 %v1806
    %2006 = vmatprep.subr.mxu0 0.0
    %2007 = vmatpush2.msra.mxu0 %v1805
    %2008 = vmatprep.subr.mxu0 0.0
    %2009 = vmatpush2.msra.mxu0 %v1804
    %2010 = vmatprep.subr.mxu0 0.0
    %2011 = vmatpush2.msra.mxu0 %v1803
    %2012 = vmatprep.subr.mxu0 0.0
    %2013 = vmatpush2.msra.mxu0 %v1802
    %2014 = vmatprep.subr.mxu0 0.0
    %2015 = vmatpush2.msra.mxu0 %v1801
    %2016 = vmatprep.subr.mxu0 0.0
    %2017 = vmatpush2.msra.mxu0 %v1800
    %2018 = vmatprep.subr.mxu0 0.0
    %2019 = vmatpush2.msra.mxu0 %v1799
    %2020 = vmatprep.subr.mxu0 0.0
    %2021 = vmatpush2.msra.mxu0 %v1798
    %2022 = vmatprep.subr.mxu0 0.0
    %2023 = vmatpush2.msra.mxu0 %v1797
    %2024 = vmatprep.mubr.f32.mxu0 %v1716
    %2025 = vmatmul.mubr.f32.gmra.mxu0 %v1715
    %v2026 = vpop.f32.mrf.mxu0
    %v2027 = vadd.f32 %v1957, %v2026
    %v2028 = vpop.f32.mrf.mxu0
    %2029 = vdwg.mxu0
    %v2030 = vmul.f32 %v2027, 0.5
    %v2031 = vtanh.pop %v2030
    %v2032 = vmul.f32 %v2031, 0.5
    %v2033 = vadd.f32 %v2032, 0.5
    %v2034 = vmul.f32 %v2027, %v2033
    %2035 = vst [vmem:[#allocation3] sm:$0xff] %v2034
    %v2036 = vld [vmem:[#allocation2 + $0x10] sm:$0xff]
    %v2037 = vld [vmem:[#allocation2 + $0x18] sm:$0xff]
    %v2038 = vld [vmem:[#allocation2 + $0x20] sm:$0xff]
    %v2039 = vld [vmem:[#allocation2 + $0x28] sm:$0xff]
    %v2040 = vld [vmem:[#allocation2 + $0x30] sm:$0xff]
    %v2041 = vld [vmem:[#allocation2 + $0x38] sm:$0xff]
    %v2042 = vld [vmem:[#allocation4] sm:$0xff]
    %v2043 = vld [vmem:[#allocation4 + $0x8] sm:$0xff]
    %v2044 = vld [vmem:[#allocation4 + $0x10] sm:$0xff]
    %v2045 = vld [vmem:[#allocation4 + $0x18] sm:$0xff]
    %v2046 = vld [vmem:[#allocation4 + $0x20] sm:$0xff]
    %v2047 = vld [vmem:[#allocation4 + $0x28] sm:$0xff]
    %v2048 = vld [vmem:[#allocation4 + $0x30] sm:$0xff]
    %v2049 = vld [vmem:[#allocation4 + $0x38] sm:$0xff]
    %v2050 = vld [vmem:[#allocation4 + $0x40] sm:$0xff]
    %v2051 = vld [vmem:[#allocation4 + $0x48] sm:$0xff]
    %v2052 = vld [vmem:[#allocation4 + $0x50] sm:$0xff]
    %v2053 = vld [vmem:[#allocation4 + $0x58] sm:$0xff]
    %v2054 = vld [vmem:[#allocation4 + $0x60] sm:$0xff]
    %v2055 = vld [vmem:[#allocation4 + $0x68] sm:$0xff]
    %v2056 = vld [vmem:[#allocation4 + $0x70] sm:$0xff]
    %v2057 = vld [vmem:[#allocation4 + $0x78] sm:$0xff]
    %v2058 = vld [vmem:[#allocation4 + $0x80] sm:$0xff]
    %v2059 = vld [vmem:[#allocation4 + $0x88] sm:$0xff]
    %v2060 = vld [vmem:[#allocation4 + $0x90] sm:$0xff]
    %v2061 = vld [vmem:[#allocation4 + $0x98] sm:$0xff]
    %v2062 = vld [vmem:[#allocation4 + $0xa0] sm:$0xff]
    %v2063 = vld [vmem:[#allocation4 + $0xa8] sm:$0xff]
    %v2064 = vld [vmem:[#allocation4 + $0xb0] sm:$0xff]
    %v2065 = vld [vmem:[#allocation4 + $0xb8] sm:$0xff]
    %v2066 = vld [vmem:[#allocation4 + $0xc0] sm:$0xff]
    %v2067 = vld [vmem:[#allocation4 + $0xc8] sm:$0xff]
    %v2068 = vld [vmem:[#allocation4 + $0xd0] sm:$0xff]
    %v2069 = vld [vmem:[#allocation4 + $0xd8] sm:$0xff]
    %v2070 = vld [vmem:[#allocation4 + $0xe0] sm:$0xff]
    %v2071 = vld [vmem:[#allocation4 + $0xe8] sm:$0xff]
    %v2072 = vld [vmem:[#allocation4 + $0xf0] sm:$0xff]
    %v2073 = vld [vmem:[#allocation4 + $0xf8] sm:$0xff]
    %v2074 = vld [vmem:[#allocation4 + $0x100] sm:$0xff]
    %v2075 = vld [vmem:[#allocation4 + $0x108] sm:$0xff]
    %v2076 = vld [vmem:[#allocation4 + $0x110] sm:$0xff]
    %v2077 = vld [vmem:[#allocation4 + $0x118] sm:$0xff]
    %v2078 = vld [vmem:[#allocation4 + $0x120] sm:$0xff]
    %v2079 = vld [vmem:[#allocation4 + $0x128] sm:$0xff]
    %v2080 = vld [vmem:[#allocation4 + $0x130] sm:$0xff]
    %v2081 = vld [vmem:[#allocation4 + $0x138] sm:$0xff]
    %v2082 = vld [vmem:[#allocation4 + $0x140] sm:$0xff]
    %v2083 = vld [vmem:[#allocation4 + $0x148] sm:$0xff]
    %v2084 = vld [vmem:[#allocation4 + $0x150] sm:$0xff]
    %v2085 = vld [vmem:[#allocation4 + $0x158] sm:$0xff]
    %v2086 = vld [vmem:[#allocation4 + $0x160] sm:$0xff]
    %v2087 = vld [vmem:[#allocation4 + $0x168] sm:$0xff]
    %v2088 = vld [vmem:[#allocation4 + $0x170] sm:$0xff]
    %v2089 = vld [vmem:[#allocation4 + $0x178] sm:$0xff]
    %v2090 = vld [vmem:[#allocation4 + $0x180] sm:$0xff]
    %v2091 = vld [vmem:[#allocation4 + $0x188] sm:$0xff]
    %v2092 = vld [vmem:[#allocation4 + $0x190] sm:$0xff]
    %v2093 = vld [vmem:[#allocation4 + $0x198] sm:$0xff]
    %v2094 = vld [vmem:[#allocation4 + $0x1a0] sm:$0xff]
    %v2095 = vld [vmem:[#allocation4 + $0x1a8] sm:$0xff]
    %v2096 = vld [vmem:[#allocation4 + $0x1b0] sm:$0xff]
    %v2097 = vld [vmem:[#allocation4 + $0x1b8] sm:$0xff]
    %v2098 = vld [vmem:[#allocation4 + $0x1c0] sm:$0xff]
    %v2099 = vld [vmem:[#allocation4 + $0x1c8] sm:$0xff]
    %v2100 = vld [vmem:[#allocation4 + $0x1d0] sm:$0xff]
    %v2101 = vld [vmem:[#allocation4 + $0x1d8] sm:$0xff]
    %v2102 = vld [vmem:[#allocation4 + $0x1e0] sm:$0xff]
    %v2103 = vld [vmem:[#allocation4 + $0x1e8] sm:$0xff]
    %v2104 = vld [vmem:[#allocation4 + $0x1f0] sm:$0xff]
    %v2105 = vld [vmem:[#allocation4 + $0x1f8] sm:$0xff]
    %v2106 = vld [vmem:[#allocation4 + $0x200] sm:$0xff]
    %v2107 = vld [vmem:[#allocation4 + $0x208] sm:$0xff]
    %v2108 = vld [vmem:[#allocation4 + $0x210] sm:$0xff]
    %v2109 = vld [vmem:[#allocation4 + $0x218] sm:$0xff]
    %v2110 = vld [vmem:[#allocation4 + $0x220] sm:$0xff]
    %v2111 = vld [vmem:[#allocation4 + $0x228] sm:$0xff]
    %v2112 = vld [vmem:[#allocation4 + $0x230] sm:$0xff]
    %v2113 = vld [vmem:[#allocation4 + $0x238] sm:$0xff]
    %v2114 = vld [vmem:[#allocation4 + $0x240] sm:$0xff]
    %v2115 = vld [vmem:[#allocation4 + $0x248] sm:$0xff]
    %v2116 = vld [vmem:[#allocation4 + $0x250] sm:$0xff]
    %v2117 = vld [vmem:[#allocation4 + $0x258] sm:$0xff]
    %v2118 = vld [vmem:[#allocation4 + $0x260] sm:$0xff]
    %v2119 = vld [vmem:[#allocation4 + $0x268] sm:$0xff]
    %v2120 = vld [vmem:[#allocation4 + $0x270] sm:$0xff]
    %v2121 = vld [vmem:[#allocation4 + $0x278] sm:$0xff]
    %v2122 = vld [vmem:[#allocation4 + $0x280] sm:$0xff]
    %v2123 = vld [vmem:[#allocation4 + $0x288] sm:$0xff]
    %v2124 = vld [vmem:[#allocation4 + $0x290] sm:$0xff]
    %v2125 = vld [vmem:[#allocation4 + $0x298] sm:$0xff]
    %v2126 = vld [vmem:[#allocation4 + $0x2a0] sm:$0xff]
    %v2127 = vld [vmem:[#allocation4 + $0x2a8] sm:$0xff]
    %v2128 = vld [vmem:[#allocation4 + $0x2b0] sm:$0xff]
    %v2129 = vld [vmem:[#allocation4 + $0x2b8] sm:$0xff]
    %v2130 = vld [vmem:[#allocation4 + $0x2c0] sm:$0xff]
    %v2131 = vld [vmem:[#allocation4 + $0x2c8] sm:$0xff]
    %v2132 = vld [vmem:[#allocation4 + $0x2d0] sm:$0xff]
    %v2133 = vld [vmem:[#allocation4 + $0x2d8] sm:$0xff]
    %v2134 = vld [vmem:[#allocation4 + $0x2e0] sm:$0xff]
    %v2135 = vld [vmem:[#allocation4 + $0x2e8] sm:$0xff]
    %v2136 = vld [vmem:[#allocation4 + $0x2f0] sm:$0xff]
    %v2137 = vld [vmem:[#allocation4 + $0x2f8] sm:$0xff]
    %v2138 = vld [vmem:[%s4] sm:$0x1]
    %v2140 = vlaneseq
    %v2141 = vshrl.u32 %v2140, 7
    %v2142 = vsub.s32 0, %v2141
    %v2143 = vrot.slane %v2138, %v2142
    %2145 = vmatprep.subr.mxu0 0.0
    %2146 = vmatpush1.msra.mxu0 %v2057
    %2147 = vmatprep.subr.mxu0 0.0
    %2148 = vmatpush1.msra.mxu0 %v2056
    %2149 = vmatprep.subr.mxu0 0.0
    %2150 = vmatpush1.msra.mxu0 %v2055
    %2151 = vmatprep.subr.mxu0 0.0
    %2152 = vmatpush1.msra.mxu0 %v2054
    %2153 = vmatprep.subr.mxu0 0.0
    %2154 = vmatpush1.msra.mxu0 %v2053
    %2155 = vmatprep.subr.mxu0 0.0
    %2156 = vmatpush1.msra.mxu0 %v2052
    %2157 = vmatprep.subr.mxu0 0.0
    %2158 = vmatpush1.msra.mxu0 %v2051
    %2159 = vmatprep.subr.mxu0 0.0
    %2160 = vmatpush1.msra.mxu0 %v2050
    %2161 = vmatprep.subr.mxu0 0.0
    %2162 = vmatpush1.msra.mxu0 %v2049
    %2163 = vmatprep.subr.mxu0 0.0
    %2164 = vmatpush1.msra.mxu0 %v2048
    %2165 = vmatprep.subr.mxu0 0.0
    %2166 = vmatpush1.msra.mxu0 %v2047
    %2167 = vmatprep.subr.mxu0 0.0
    %2168 = vmatpush1.msra.mxu0 %v2046
    %2169 = vmatprep.subr.mxu0 0.0
    %2170 = vmatpush1.msra.mxu0 %v2045
    %2171 = vmatprep.subr.mxu0 0.0
    %2172 = vmatpush1.msra.mxu0 %v2044
    %2173 = vmatprep.subr.mxu0 0.0
    %2174 = vmatpush1.msra.mxu0 %v2043
    %2175 = vmatprep.subr.mxu0 0.0
    %2176 = vmatpush1.msra.mxu0 %v2042
    %2177 = vmatprep.subr.mxu0 0.0
    %2178 = vmatpush2.msra.mxu0 %v2073
    %2179 = vmatprep.subr.mxu0 0.0
    %2180 = vmatpush2.msra.mxu0 %v2072
    %2181 = vmatprep.subr.mxu0 0.0
    %2182 = vmatpush2.msra.mxu0 %v2071
    %2183 = vmatprep.subr.mxu0 0.0
    %2184 = vmatpush2.msra.mxu0 %v2070
    %2185 = vmatprep.subr.mxu0 0.0
    %2186 = vmatpush2.msra.mxu0 %v2069
    %2187 = vmatprep.subr.mxu0 0.0
    %2188 = vmatpush2.msra.mxu0 %v2068
    %2189 = vmatprep.subr.mxu0 0.0
    %2190 = vmatpush2.msra.mxu0 %v2067
    %2191 = vmatprep.subr.mxu0 0.0
    %2192 = vmatpush2.msra.mxu0 %v2066
    %2193 = vmatprep.subr.mxu0 0.0
    %2194 = vmatpush2.msra.mxu0 %v2065
    %2195 = vmatprep.subr.mxu0 0.0
    %2196 = vmatpush2.msra.mxu0 %v2064
    %2197 = vmatprep.subr.mxu0 0.0
    %2198 = vmatpush2.msra.mxu0 %v2063
    %2199 = vmatprep.subr.mxu0 0.0
    %2200 = vmatpush2.msra.mxu0 %v2062
    %2201 = vmatprep.subr.mxu0 0.0
    %2202 = vmatpush2.msra.mxu0 %v2061
    %2203 = vmatprep.subr.mxu0 0.0
    %2204 = vmatpush2.msra.mxu0 %v2060
    %2205 = vmatprep.subr.mxu0 0.0
    %2206 = vmatpush2.msra.mxu0 %v2059
    %2207 = vmatprep.subr.mxu0 0.0
    %2208 = vmatpush2.msra.mxu0 %v2058
    %2209 = vmatprep.mubr.f32.mxu0 %v2037
    %2210 = vmatmul.mubr.f32.gmra.mxu0 %v2036
    %v2211 = vpop.f32.mrf.mxu0
    %v2212 = vadd.f32 %v2143, %v2211
    %v2213 = vpop.f32.mrf.mxu0
    %2214 = vdwg.mxu0
    %2215 = vmatprep.subr.mxu0 0.0
    %2216 = vmatpush1.msra.mxu0 %v2089
    %2217 = vmatprep.subr.mxu0 0.0
    %2218 = vmatpush1.msra.mxu0 %v2088
    %2219 = vmatprep.subr.mxu0 0.0
    %2220 = vmatpush1.msra.mxu0 %v2087
    %2221 = vmatprep.subr.mxu0 0.0
    %2222 = vmatpush1.msra.mxu0 %v2086
    %2223 = vmatprep.subr.mxu0 0.0
    %2224 = vmatpush1.msra.mxu0 %v2085
    %2225 = vmatprep.subr.mxu0 0.0
    %2226 = vmatpush1.msra.mxu0 %v2084
    %2227 = vmatprep.subr.mxu0 0.0
    %2228 = vmatpush1.msra.mxu0 %v2083
    %2229 = vmatprep.subr.mxu0 0.0
    %2230 = vmatpush1.msra.mxu0 %v2082
    %2231 = vmatprep.subr.mxu0 0.0
    %2232 = vmatpush1.msra.mxu0 %v2081
    %2233 = vmatprep.subr.mxu0 0.0
    %2234 = vmatpush1.msra.mxu0 %v2080
    %2235 = vmatprep.subr.mxu0 0.0
    %2236 = vmatpush1.msra.mxu0 %v2079
    %2237 = vmatprep.subr.mxu0 0.0
    %2238 = vmatpush1.msra.mxu0 %v2078
    %2239 = vmatprep.subr.mxu0 0.0
    %2240 = vmatpush1.msra.mxu0 %v2077
    %2241 = vmatprep.subr.mxu0 0.0
    %2242 = vmatpush1.msra.mxu0 %v2076
    %2243 = vmatprep.subr.mxu0 0.0
    %2244 = vmatpush1.msra.mxu0 %v2075
    %2245 = vmatprep.subr.mxu0 0.0
    %2246 = vmatpush1.msra.mxu0 %v2074
    %2247 = vmatprep.subr.mxu0 0.0
    %2248 = vmatpush2.msra.mxu0 %v2105
    %2249 = vmatprep.subr.mxu0 0.0
    %2250 = vmatpush2.msra.mxu0 %v2104
    %2251 = vmatprep.subr.mxu0 0.0
    %2252 = vmatpush2.msra.mxu0 %v2103
    %2253 = vmatprep.subr.mxu0 0.0
    %2254 = vmatpush2.msra.mxu0 %v2102
    %2255 = vmatprep.subr.mxu0 0.0
    %2256 = vmatpush2.msra.mxu0 %v2101
    %2257 = vmatprep.subr.mxu0 0.0
    %2258 = vmatpush2.msra.mxu0 %v2100
    %2259 = vmatprep.subr.mxu0 0.0
    %2260 = vmatpush2.msra.mxu0 %v2099
    %2261 = vmatprep.subr.mxu0 0.0
    %2262 = vmatpush2.msra.mxu0 %v2098
    %2263 = vmatprep.subr.mxu0 0.0
    %2264 = vmatpush2.msra.mxu0 %v2097
    %2265 = vmatprep.subr.mxu0 0.0
    %2266 = vmatpush2.msra.mxu0 %v2096
    %2267 = vmatprep.subr.mxu0 0.0
    %2268 = vmatpush2.msra.mxu0 %v2095
    %2269 = vmatprep.subr.mxu0 0.0
    %2270 = vmatpush2.msra.mxu0 %v2094
    %2271 = vmatprep.subr.mxu0 0.0
    %2272 = vmatpush2.msra.mxu0 %v2093
    %2273 = vmatprep.subr.mxu0 0.0
    %2274 = vmatpush2.msra.mxu0 %v2092
    %2275 = vmatprep.subr.mxu0 0.0
    %2276 = vmatpush2.msra.mxu0 %v2091
    %2277 = vmatprep.subr.mxu0 0.0
    %2278 = vmatpush2.msra.mxu0 %v2090
    %2279 = vmatprep.mubr.f32.mxu0 %v2039
    %2280 = vmatmul.mubr.f32.gmra.mxu0 %v2038
    %v2281 = vpop.f32.mrf.mxu0
    %v2282 = vadd.f32 %v2212, %v2281
    %v2283 = vpop.f32.mrf.mxu0
    %2284 = vdwg.mxu0
    %2285 = vmatprep.subr.mxu0 0.0
    %2286 = vmatpush1.msra.mxu0 %v2121
    %2287 = vmatprep.subr.mxu0 0.0
    %2288 = vmatpush1.msra.mxu0 %v2120
    %2289 = vmatprep.subr.mxu0 0.0
    %2290 = vmatpush1.msra.mxu0 %v2119
    %2291 = vmatprep.subr.mxu0 0.0
    %2292 = vmatpush1.msra.mxu0 %v2118
    %2293 = vmatprep.subr.mxu0 0.0
    %2294 = vmatpush1.msra.mxu0 %v2117
    %2295 = vmatprep.subr.mxu0 0.0
    %2296 = vmatpush1.msra.mxu0 %v2116
    %2297 = vmatprep.subr.mxu0 0.0
    %2298 = vmatpush1.msra.mxu0 %v2115
    %2299 = vmatprep.subr.mxu0 0.0
    %2300 = vmatpush1.msra.mxu0 %v2114
    %2301 = vmatprep.subr.mxu0 0.0
    %2302 = vmatpush1.msra.mxu0 %v2113
    %2303 = vmatprep.subr.mxu0 0.0
    %2304 = vmatpush1.msra.mxu0 %v2112
    %2305 = vmatprep.subr.mxu0 0.0
    %2306 = vmatpush1.msra.mxu0 %v2111
    %2307 = vmatprep.subr.mxu0 0.0
    %2308 = vmatpush1.msra.mxu0 %v2110
    %2309 = vmatprep.subr.mxu0 0.0
    %2310 = vmatpush1.msra.mxu0 %v2109
    %2311 = vmatprep.subr.mxu0 0.0
    %2312 = vmatpush1.msra.mxu0 %v2108
    %2313 = vmatprep.subr.mxu0 0.0
    %2314 = vmatpush1.msra.mxu0 %v2107
    %2315 = vmatprep.subr.mxu0 0.0
    %2316 = vmatpush1.msra.mxu0 %v2106
    %2317 = vmatprep.subr.mxu0 0.0
    %2318 = vmatpush2.msra.mxu0 %v2137
    %2319 = vmatprep.subr.mxu0 0.0
    %2320 = vmatpush2.msra.mxu0 %v2136
    %2321 = vmatprep.subr.mxu0 0.0
    %2322 = vmatpush2.msra.mxu0 %v2135
    %2323 = vmatprep.subr.mxu0 0.0
    %2324 = vmatpush2.msra.mxu0 %v2134
    %2325 = vmatprep.subr.mxu0 0.0
    %2326 = vmatpush2.msra.mxu0 %v2133
    %2327 = vmatprep.subr.mxu0 0.0
    %2328 = vmatpush2.msra.mxu0 %v2132
    %2329 = vmatprep.subr.mxu0 0.0
    %2330 = vmatpush2.msra.mxu0 %v2131
    %2331 = vmatprep.subr.mxu0 0.0
    %2332 = vmatpush2.msra.mxu0 %v2130
    %2333 = vmatprep.subr.mxu0 0.0
    %2334 = vmatpush2.msra.mxu0 %v2129
    %2335 = vmatprep.subr.mxu0 0.0
    %2336 = vmatpush2.msra.mxu0 %v2128
    %2337 = vmatprep.subr.mxu0 0.0
    %2338 = vmatpush2.msra.mxu0 %v2127
    %2339 = vmatprep.subr.mxu0 0.0
    %2340 = vmatpush2.msra.mxu0 %v2126
    %2341 = vmatprep.subr.mxu0 0.0
    %2342 = vmatpush2.msra.mxu0 %v2125
    %2343 = vmatprep.subr.mxu0 0.0
    %2344 = vmatpush2.msra.mxu0 %v2124
    %2345 = vmatprep.subr.mxu0 0.0
    %2346 = vmatpush2.msra.mxu0 %v2123
    %2347 = vmatprep.subr.mxu0 0.0
    %2348 = vmatpush2.msra.mxu0 %v2122
    %2349 = vmatprep.mubr.f32.mxu0 %v2041
    %2350 = vmatmul.mubr.f32.gmra.mxu0 %v2040
    %v2351 = vpop.f32.mrf.mxu0
    %v2352 = vadd.f32 %v2282, %v2351
    %v2353 = vpop.f32.mrf.mxu0
    %2354 = vdwg.mxu0
    %v2355 = vmul.f32 %v2352, 0.5
    %v2356 = vtanh.pop %v2355
    %v2357 = vmul.f32 %v2356, 0.5
    %v2358 = vadd.f32 %v2357, 0.5
    %v2359 = vmul.f32 %v2352, %v2358
    %2360 = vst [vmem:[#allocation3 + $0x8] sm:$0xff] %v2359
    %v2361 = vld [vmem:[#allocation2 + $0x20] sm:$0xff]
    %v2362 = vld [vmem:[#allocation2 + $0x28] sm:$0xff]
    %v2363 = vld [vmem:[#allocation2 + $0x30] sm:$0xff]
    %v2364 = vld [vmem:[#allocation2 + $0x38] sm:$0xff]
    %v2365 = vld [vmem:[#allocation2 + $0x40] sm:$0xff]
    %v2366 = vld [vmem:[#allocation2 + $0x48] sm:$0xff]
    %v2367 = vld [vmem:[#allocation4] sm:$0xff]
    %v2368 = vld [vmem:[#allocation4 + $0x8] sm:$0xff]
    %v2369 = vld [vmem:[#allocation4 + $0x10] sm:$0xff]
    %v2370 = vld [vmem:[#allocation4 + $0x18] sm:$0xff]
    %v2371 = vld [vmem:[#allocation4 + $0x20] sm:$0xff]
    %v2372 = vld [vmem:[#allocation4 + $0x28] sm:$0xff]
    %v2373 = vld [vmem:[#allocation4 + $0x30] sm:$0xff]
    %v2374 = vld [vmem:[#allocation4 + $0x38] sm:$0xff]
    %v2375 = vld [vmem:[#allocation4 + $0x40] sm:$0xff]
    %v2376 = vld [vmem:[#allocation4 + $0x48] sm:$0xff]
    %v2377 = vld [vmem:[#allocation4 + $0x50] sm:$0xff]
    %v2378 = vld [vmem:[#allocation4 + $0x58] sm:$0xff]
    %v2379 = vld [vmem:[#allocation4 + $0x60] sm:$0xff]
    %v2380 = vld [vmem:[#allocation4 + $0x68] sm:$0xff]
    %v2381 = vld [vmem:[#allocation4 + $0x70] sm:$0xff]
    %v2382 = vld [vmem:[#allocation4 + $0x78] sm:$0xff]
    %v2383 = vld [vmem:[#allocation4 + $0x80] sm:$0xff]
    %v2384 = vld [vmem:[#allocation4 + $0x88] sm:$0xff]
    %v2385 = vld [vmem:[#allocation4 + $0x90] sm:$0xff]
    %v2386 = vld [vmem:[#allocation4 + $0x98] sm:$0xff]
    %v2387 = vld [vmem:[#allocation4 + $0xa0] sm:$0xff]
    %v2388 = vld [vmem:[#allocation4 + $0xa8] sm:$0xff]
    %v2389 = vld [vmem:[#allocation4 + $0xb0] sm:$0xff]
    %v2390 = vld [vmem:[#allocation4 + $0xb8] sm:$0xff]
    %v2391 = vld [vmem:[#allocation4 + $0xc0] sm:$0xff]
    %v2392 = vld [vmem:[#allocation4 + $0xc8] sm:$0xff]
    %v2393 = vld [vmem:[#allocation4 + $0xd0] sm:$0xff]
    %v2394 = vld [vmem:[#allocation4 + $0xd8] sm:$0xff]
    %v2395 = vld [vmem:[#allocation4 + $0xe0] sm:$0xff]
    %v2396 = vld [vmem:[#allocation4 + $0xe8] sm:$0xff]
    %v2397 = vld [vmem:[#allocation4 + $0xf0] sm:$0xff]
    %v2398 = vld [vmem:[#allocation4 + $0xf8] sm:$0xff]
    %v2399 = vld [vmem:[#allocation4 + $0x100] sm:$0xff]
    %v2400 = vld [vmem:[#allocation4 + $0x108] sm:$0xff]
    %v2401 = vld [vmem:[#allocation4 + $0x110] sm:$0xff]
    %v2402 = vld [vmem:[#allocation4 + $0x118] sm:$0xff]
    %v2403 = vld [vmem:[#allocation4 + $0x120] sm:$0xff]
    %v2404 = vld [vmem:[#allocation4 + $0x128] sm:$0xff]
    %v2405 = vld [vmem:[#allocation4 + $0x130] sm:$0xff]
    %v2406 = vld [vmem:[#allocation4 + $0x138] sm:$0xff]
    %v2407 = vld [vmem:[#allocation4 + $0x140] sm:$0xff]
    %v2408 = vld [vmem:[#allocation4 + $0x148] sm:$0xff]
    %v2409 = vld [vmem:[#allocation4 + $0x150] sm:$0xff]
    %v2410 = vld [vmem:[#allocation4 + $0x158] sm:$0xff]
    %v2411 = vld [vmem:[#allocation4 + $0x160] sm:$0xff]
    %v2412 = vld [vmem:[#allocation4 + $0x168] sm:$0xff]
    %v2413 = vld [vmem:[#allocation4 + $0x170] sm:$0xff]
    %v2414 = vld [vmem:[#allocation4 + $0x178] sm:$0xff]
    %v2415 = vld [vmem:[#allocation4 + $0x180] sm:$0xff]
    %v2416 = vld [vmem:[#allocation4 + $0x188] sm:$0xff]
    %v2417 = vld [vmem:[#allocation4 + $0x190] sm:$0xff]
    %v2418 = vld [vmem:[#allocation4 + $0x198] sm:$0xff]
    %v2419 = vld [vmem:[#allocation4 + $0x1a0] sm:$0xff]
    %v2420 = vld [vmem:[#allocation4 + $0x1a8] sm:$0xff]
    %v2421 = vld [vmem:[#allocation4 + $0x1b0] sm:$0xff]
    %v2422 = vld [vmem:[#allocation4 + $0x1b8] sm:$0xff]
    %v2423 = vld [vmem:[#allocation4 + $0x1c0] sm:$0xff]
    %v2424 = vld [vmem:[#allocation4 + $0x1c8] sm:$0xff]
    %v2425 = vld [vmem:[#allocation4 + $0x1d0] sm:$0xff]
    %v2426 = vld [vmem:[#allocation4 + $0x1d8] sm:$0xff]
    %v2427 = vld [vmem:[#allocation4 + $0x1e0] sm:$0xff]
    %v2428 = vld [vmem:[#allocation4 + $0x1e8] sm:$0xff]
    %v2429 = vld [vmem:[#allocation4 + $0x1f0] sm:$0xff]
    %v2430 = vld [vmem:[#allocation4 + $0x1f8] sm:$0xff]
    %v2431 = vld [vmem:[#allocation4 + $0x200] sm:$0xff]
    %v2432 = vld [vmem:[#allocation4 + $0x208] sm:$0xff]
    %v2433 = vld [vmem:[#allocation4 + $0x210] sm:$0xff]
    %v2434 = vld [vmem:[#allocation4 + $0x218] sm:$0xff]
    %v2435 = vld [vmem:[#allocation4 + $0x220] sm:$0xff]
    %v2436 = vld [vmem:[#allocation4 + $0x228] sm:$0xff]
    %v2437 = vld [vmem:[#allocation4 + $0x230] sm:$0xff]
    %v2438 = vld [vmem:[#allocation4 + $0x238] sm:$0xff]
    %v2439 = vld [vmem:[#allocation4 + $0x240] sm:$0xff]
    %v2440 = vld [vmem:[#allocation4 + $0x248] sm:$0xff]
    %v2441 = vld [vmem:[#allocation4 + $0x250] sm:$0xff]
    %v2442 = vld [vmem:[#allocation4 + $0x258] sm:$0xff]
    %v2443 = vld [vmem:[#allocation4 + $0x260] sm:$0xff]
    %v2444 = vld [vmem:[#allocation4 + $0x268] sm:$0xff]
    %v2445 = vld [vmem:[#allocation4 + $0x270] sm:$0xff]
    %v2446 = vld [vmem:[#allocation4 + $0x278] sm:$0xff]
    %v2447 = vld [vmem:[#allocation4 + $0x280] sm:$0xff]
    %v2448 = vld [vmem:[#allocation4 + $0x288] sm:$0xff]
    %v2449 = vld [vmem:[#allocation4 + $0x290] sm:$0xff]
    %v2450 = vld [vmem:[#allocation4 + $0x298] sm:$0xff]
    %v2451 = vld [vmem:[#allocation4 + $0x2a0] sm:$0xff]
    %v2452 = vld [vmem:[#allocation4 + $0x2a8] sm:$0xff]
    %v2453 = vld [vmem:[#allocation4 + $0x2b0] sm:$0xff]
    %v2454 = vld [vmem:[#allocation4 + $0x2b8] sm:$0xff]
    %v2455 = vld [vmem:[#allocation4 + $0x2c0] sm:$0xff]
    %v2456 = vld [vmem:[#allocation4 + $0x2c8] sm:$0xff]
    %v2457 = vld [vmem:[#allocation4 + $0x2d0] sm:$0xff]
    %v2458 = vld [vmem:[#allocation4 + $0x2d8] sm:$0xff]
    %v2459 = vld [vmem:[#allocation4 + $0x2e0] sm:$0xff]
    %v2460 = vld [vmem:[#allocation4 + $0x2e8] sm:$0xff]
    %v2461 = vld [vmem:[#allocation4 + $0x2f0] sm:$0xff]
    %v2462 = vld [vmem:[#allocation4 + $0x2f8] sm:$0xff]
    %v2463 = vld [vmem:[%s4] sm:$0x1]
    %v2465 = vlaneseq
    %v2466 = vshrl.u32 %v2465, 7
    %v2467 = vsub.s32 0, %v2466
    %v2468 = vrot.slane %v2463, %v2467
    %2470 = vmatprep.subr.mxu0 0.0
    %2471 = vmatpush1.msra.mxu0 %v2382
    %2472 = vmatprep.subr.mxu0 0.0
    %2473 = vmatpush1.msra.mxu0 %v2381
    %2474 = vmatprep.subr.mxu0 0.0
    %2475 = vmatpush1.msra.mxu0 %v2380
    %2476 = vmatprep.subr.mxu0 0.0
    %2477 = vmatpush1.msra.mxu0 %v2379
    %2478 = vmatprep.subr.mxu0 0.0
    %2479 = vmatpush1.msra.mxu0 %v2378
    %2480 = vmatprep.subr.mxu0 0.0
    %2481 = vmatpush1.msra.mxu0 %v2377
    %2482 = vmatprep.subr.mxu0 0.0
    %2483 = vmatpush1.msra.mxu0 %v2376
    %2484 = vmatprep.subr.mxu0 0.0
    %2485 = vmatpush1.msra.mxu0 %v2375
    %2486 = vmatprep.subr.mxu0 0.0
    %2487 = vmatpush1.msra.mxu0 %v2374
    %2488 = vmatprep.subr.mxu0 0.0
    %2489 = vmatpush1.msra.mxu0 %v2373
    %2490 = vmatprep.subr.mxu0 0.0
    %2491 = vmatpush1.msra.mxu0 %v2372
    %2492 = vmatprep.subr.mxu0 0.0
    %2493 = vmatpush1.msra.mxu0 %v2371
    %2494 = vmatprep.subr.mxu0 0.0
    %2495 = vmatpush1.msra.mxu0 %v2370
    %2496 = vmatprep.subr.mxu0 0.0
    %2497 = vmatpush1.msra.mxu0 %v2369
    %2498 = vmatprep.subr.mxu0 0.0
    %2499 = vmatpush1.msra.mxu0 %v2368
    %2500 = vmatprep.subr.mxu0 0.0
    %2501 = vmatpush1.msra.mxu0 %v2367
    %2502 = vmatprep.subr.mxu0 0.0
    %2503 = vmatpush2.msra.mxu0 %v2398
    %2504 = vmatprep.subr.mxu0 0.0
    %2505 = vmatpush2.msra.mxu0 %v2397
    %2506 = vmatprep.subr.mxu0 0.0
    %2507 = vmatpush2.msra.mxu0 %v2396
    %2508 = vmatprep.subr.mxu0 0.0
    %2509 = vmatpush2.msra.mxu0 %v2395
    %2510 = vmatprep.subr.mxu0 0.0
    %2511 = vmatpush2.msra.mxu0 %v2394
    %2512 = vmatprep.subr.mxu0 0.0
    %2513 = vmatpush2.msra.mxu0 %v2393
    %2514 = vmatprep.subr.mxu0 0.0
    %2515 = vmatpush2.msra.mxu0 %v2392
    %2516 = vmatprep.subr.mxu0 0.0
    %2517 = vmatpush2.msra.mxu0 %v2391
    %2518 = vmatprep.subr.mxu0 0.0
    %2519 = vmatpush2.msra.mxu0 %v2390
    %2520 = vmatprep.subr.mxu0 0.0
    %2521 = vmatpush2.msra.mxu0 %v2389
    %2522 = vmatprep.subr.mxu0 0.0
    %2523 = vmatpush2.msra.mxu0 %v2388
    %2524 = vmatprep.subr.mxu0 0.0
    %2525 = vmatpush2.msra.mxu0 %v2387
    %2526 = vmatprep.subr.mxu0 0.0
    %2527 = vmatpush2.msra.mxu0 %v2386
    %2528 = vmatprep.subr.mxu0 0.0
    %2529 = vmatpush2.msra.mxu0 %v2385
    %2530 = vmatprep.subr.mxu0 0.0
    %2531 = vmatpush2.msra.mxu0 %v2384
    %2532 = vmatprep.subr.mxu0 0.0
    %2533 = vmatpush2.msra.mxu0 %v2383
    %2534 = vmatprep.mubr.f32.mxu0 %v2362
    %2535 = vmatmul.mubr.f32.gmra.mxu0 %v2361
    %v2536 = vpop.f32.mrf.mxu0
    %v2537 = vadd.f32 %v2468, %v2536
    %v2538 = vpop.f32.mrf.mxu0
    %2539 = vdwg.mxu0
    %2540 = vmatprep.subr.mxu0 0.0
    %2541 = vmatpush1.msra.mxu0 %v2414
    %2542 = vmatprep.subr.mxu0 0.0
    %2543 = vmatpush1.msra.mxu0 %v2413
    %2544 = vmatprep.subr.mxu0 0.0
    %2545 = vmatpush1.msra.mxu0 %v2412
    %2546 = vmatprep.subr.mxu0 0.0
    %2547 = vmatpush1.msra.mxu0 %v2411
    %2548 = vmatprep.subr.mxu0 0.0
    %2549 = vmatpush1.msra.mxu0 %v2410
    %2550 = vmatprep.subr.mxu0 0.0
    %2551 = vmatpush1.msra.mxu0 %v2409
    %2552 = vmatprep.subr.mxu0 0.0
    %2553 = vmatpush1.msra.mxu0 %v2408
    %2554 = vmatprep.subr.mxu0 0.0
    %2555 = vmatpush1.msra.mxu0 %v2407
    %2556 = vmatprep.subr.mxu0 0.0
    %2557 = vmatpush1.msra.mxu0 %v2406
    %2558 = vmatprep.subr.mxu0 0.0
    %2559 = vmatpush1.msra.mxu0 %v2405
    %2560 = vmatprep.subr.mxu0 0.0
    %2561 = vmatpush1.msra.mxu0 %v2404
    %2562 = vmatprep.subr.mxu0 0.0
    %2563 = vmatpush1.msra.mxu0 %v2403
    %2564 = vmatprep.subr.mxu0 0.0
    %2565 = vmatpush1.msra.mxu0 %v2402
    %2566 = vmatprep.subr.mxu0 0.0
    %2567 = vmatpush1.msra.mxu0 %v2401
    %2568 = vmatprep.subr.mxu0 0.0
    %2569 = vmatpush1.msra.mxu0 %v2400
    %2570 = vmatprep.subr.mxu0 0.0
    %2571 = vmatpush1.msra.mxu0 %v2399
    %2572 = vmatprep.subr.mxu0 0.0
    %2573 = vmatpush2.msra.mxu0 %v2430
    %2574 = vmatprep.subr.mxu0 0.0
    %2575 = vmatpush2.msra.mxu0 %v2429
    %2576 = vmatprep.subr.mxu0 0.0
    %2577 = vmatpush2.msra.mxu0 %v2428
    %2578 = vmatprep.subr.mxu0 0.0
    %2579 = vmatpush2.msra.mxu0 %v2427
    %2580 = vmatprep.subr.mxu0 0.0
    %2581 = vmatpush2.msra.mxu0 %v2426
    %2582 = vmatprep.subr.mxu0 0.0
    %2583 = vmatpush2.msra.mxu0 %v2425
    %2584 = vmatprep.subr.mxu0 0.0
    %2585 = vmatpush2.msra.mxu0 %v2424
    %2586 = vmatprep.subr.mxu0 0.0
    %2587 = vmatpush2.msra.mxu0 %v2423
    %2588 = vmatprep.subr.mxu0 0.0
    %2589 = vmatpush2.msra.mxu0 %v2422
    %2590 = vmatprep.subr.mxu0 0.0
    %2591 = vmatpush2.msra.mxu0 %v2421
    %2592 = vmatprep.subr.mxu0 0.0
    %2593 = vmatpush2.msra.mxu0 %v2420
    %2594 = vmatprep.subr.mxu0 0.0
    %2595 = vmatpush2.msra.mxu0 %v2419
    %2596 = vmatprep.subr.mxu0 0.0
    %2597 = vmatpush2.msra.mxu0 %v2418
    %2598 = vmatprep.subr.mxu0 0.0
    %2599 = vmatpush2.msra.mxu0 %v2417
    %2600 = vmatprep.subr.mxu0 0.0
    %2601 = vmatpush2.msra.mxu0 %v2416
    %2602 = vmatprep.subr.mxu0 0.0
    %2603 = vmatpush2.msra.mxu0 %v2415
    %2604 = vmatprep.mubr.f32.mxu0 %v2364
    %2605 = vmatmul.mubr.f32.gmra.mxu0 %v2363
    %v2606 = vpop.f32.mrf.mxu0
    %v2607 = vadd.f32 %v2537, %v2606
    %v2608 = vpop.f32.mrf.mxu0
    %2609 = vdwg.mxu0
    %2610 = vmatprep.subr.mxu0 0.0
    %2611 = vmatpush1.msra.mxu0 %v2446
    %2612 = vmatprep.subr.mxu0 0.0
    %2613 = vmatpush1.msra.mxu0 %v2445
    %2614 = vmatprep.subr.mxu0 0.0
    %2615 = vmatpush1.msra.mxu0 %v2444
    %2616 = vmatprep.subr.mxu0 0.0
    %2617 = vmatpush1.msra.mxu0 %v2443
    %2618 = vmatprep.subr.mxu0 0.0
    %2619 = vmatpush1.msra.mxu0 %v2442
    %2620 = vmatprep.subr.mxu0 0.0
    %2621 = vmatpush1.msra.mxu0 %v2441
    %2622 = vmatprep.subr.mxu0 0.0
    %2623 = vmatpush1.msra.mxu0 %v2440
    %2624 = vmatprep.subr.mxu0 0.0
    %2625 = vmatpush1.msra.mxu0 %v2439
    %2626 = vmatprep.subr.mxu0 0.0
    %2627 = vmatpush1.msra.mxu0 %v2438
    %2628 = vmatprep.subr.mxu0 0.0
    %2629 = vmatpush1.msra.mxu0 %v2437
    %2630 = vmatprep.subr.mxu0 0.0
    %2631 = vmatpush1.msra.mxu0 %v2436
    %2632 = vmatprep.subr.mxu0 0.0
    %2633 = vmatpush1.msra.mxu0 %v2435
    %2634 = vmatprep.subr.mxu0 0.0
    %2635 = vmatpush1.msra.mxu0 %v2434
    %2636 = vmatprep.subr.mxu0 0.0
    %2637 = vmatpush1.msra.mxu0 %v2433
    %2638 = vmatprep.subr.mxu0 0.0
    %2639 = vmatpush1.msra.mxu0 %v2432
    %2640 = vmatprep.subr.mxu0 0.0
    %2641 = vmatpush1.msra.mxu0 %v2431
    %2642 = vmatprep.subr.mxu0 0.0
    %2643 = vmatpush2.msra.mxu0 %v2462
    %2644 = vmatprep.subr.mxu0 0.0
    %2645 = vmatpush2.msra.mxu0 %v2461
    %2646 = vmatprep.subr.mxu0 0.0
    %2647 = vmatpush2.msra.mxu0 %v2460
    %2648 = vmatprep.subr.mxu0 0.0
    %2649 = vmatpush2.msra.mxu0 %v2459
    %2650 = vmatprep.subr.mxu0 0.0
    %2651 = vmatpush2.msra.mxu0 %v2458
    %2652 = vmatprep.subr.mxu0 0.0
    %2653 = vmatpush2.msra.mxu0 %v2457
    %2654 = vmatprep.subr.mxu0 0.0
    %2655 = vmatpush2.msra.mxu0 %v2456
    %2656 = vmatprep.subr.mxu0 0.0
    %2657 = vmatpush2.msra.mxu0 %v2455
    %2658 = vmatprep.subr.mxu0 0.0
    %2659 = vmatpush2.msra.mxu0 %v2454
    %2660 = vmatprep.subr.mxu0 0.0
    %2661 = vmatpush2.msra.mxu0 %v2453
    %2662 = vmatprep.subr.mxu0 0.0
    %2663 = vmatpush2.msra.mxu0 %v2452
    %2664 = vmatprep.subr.mxu0 0.0
    %2665 = vmatpush2.msra.mxu0 %v2451
    %2666 = vmatprep.subr.mxu0 0.0
    %2667 = vmatpush2.msra.mxu0 %v2450
    %2668 = vmatprep.subr.mxu0 0.0
    %2669 = vmatpush2.msra.mxu0 %v2449
    %2670 = vmatprep.subr.mxu0 0.0
    %2671 = vmatpush2.msra.mxu0 %v2448
    %2672 = vmatprep.subr.mxu0 0.0
    %2673 = vmatpush2.msra.mxu0 %v2447
    %2674 = vmatprep.mubr.f32.mxu0 %v2366
    %2675 = vmatmul.mubr.f32.gmra.mxu0 %v2365
    %v2676 = vpop.f32.mrf.mxu0
    %v2677 = vadd.f32 %v2607, %v2676
    %v2678 = vpop.f32.mrf.mxu0
    %2679 = vdwg.mxu0
    %v2680 = vmul.f32 %v2677, 0.5
    %v2681 = vtanh.pop %v2680
    %v2682 = vmul.f32 %v2681, 0.5
    %v2683 = vadd.f32 %v2682, 0.5
    %v2684 = vmul.f32 %v2677, %v2683
    %2685 = vst [vmem:[#allocation3 + $0x10] sm:$0xff] %v2684
    %v2686 = vld [vmem:[#allocation2 + $0x30] sm:$0xff]
    %v2687 = vld [vmem:[#allocation2 + $0x38] sm:$0xff]
    %v2688 = vld [vmem:[#allocation2 + $0x40] sm:$0xff]
    %v2689 = vld [vmem:[#allocation2 + $0x48] sm:$0xff]
    %v2690 = vld [vmem:[#allocation2 + $0x50] sm:$0xff]
    %v2691 = vld [vmem:[#allocation2 + $0x58] sm:$0xff]
    %v2692 = vld [vmem:[#allocation4] sm:$0xff]
    %v2693 = vld [vmem:[#allocation4 + $0x8] sm:$0xff]
    %v2694 = vld [vmem:[#allocation4 + $0x10] sm:$0xff]
    %v2695 = vld [vmem:[#allocation4 + $0x18] sm:$0xff]
    %v2696 = vld [vmem:[#allocation4 + $0x20] sm:$0xff]
    %v2697 = vld [vmem:[#allocation4 + $0x28] sm:$0xff]
    %v2698 = vld [vmem:[#allocation4 + $0x30] sm:$0xff]
    %v2699 = vld [vmem:[#allocation4 + $0x38] sm:$0xff]
    %v2700 = vld [vmem:[#allocation4 + $0x40] sm:$0xff]
    %v2701 = vld [vmem:[#allocation4 + $0x48] sm:$0xff]
    %v2702 = vld [vmem:[#allocation4 + $0x50] sm:$0xff]
    %v2703 = vld [vmem:[#allocation4 + $0x58] sm:$0xff]
    %v2704 = vld [vmem:[#allocation4 + $0x60] sm:$0xff]
    %v2705 = vld [vmem:[#allocation4 + $0x68] sm:$0xff]
    %v2706 = vld [vmem:[#allocation4 + $0x70] sm:$0xff]
    %v2707 = vld [vmem:[#allocation4 + $0x78] sm:$0xff]
    %v2708 = vld [vmem:[#allocation4 + $0x80] sm:$0xff]
    %v2709 = vld [vmem:[#allocation4 + $0x88] sm:$0xff]
    %v2710 = vld [vmem:[#allocation4 + $0x90] sm:$0xff]
    %v2711 = vld [vmem:[#allocation4 + $0x98] sm:$0xff]
    %v2712 = vld [vmem:[#allocation4 + $0xa0] sm:$0xff]
    %v2713 = vld [vmem:[#allocation4 + $0xa8] sm:$0xff]
    %v2714 = vld [vmem:[#allocation4 + $0xb0] sm:$0xff]
    %v2715 = vld [vmem:[#allocation4 + $0xb8] sm:$0xff]
    %v2716 = vld [vmem:[#allocation4 + $0xc0] sm:$0xff]
    %v2717 = vld [vmem:[#allocation4 + $0xc8] sm:$0xff]
    %v2718 = vld [vmem:[#allocation4 + $0xd0] sm:$0xff]
    %v2719 = vld [vmem:[#allocation4 + $0xd8] sm:$0xff]
    %v2720 = vld [vmem:[#allocation4 + $0xe0] sm:$0xff]
    %v2721 = vld [vmem:[#allocation4 + $0xe8] sm:$0xff]
    %v2722 = vld [vmem:[#allocation4 + $0xf0] sm:$0xff]
    %v2723 = vld [vmem:[#allocation4 + $0xf8] sm:$0xff]
    %v2724 = vld [vmem:[#allocation4 + $0x100] sm:$0xff]
    %v2725 = vld [vmem:[#allocation4 + $0x108] sm:$0xff]
    %v2726 = vld [vmem:[#allocation4 + $0x110] sm:$0xff]
    %v2727 = vld [vmem:[#allocation4 + $0x118] sm:$0xff]
    %v2728 = vld [vmem:[#allocation4 + $0x120] sm:$0xff]
    %v2729 = vld [vmem:[#allocation4 + $0x128] sm:$0xff]
    %v2730 = vld [vmem:[#allocation4 + $0x130] sm:$0xff]
    %v2731 = vld [vmem:[#allocation4 + $0x138] sm:$0xff]
    %v2732 = vld [vmem:[#allocation4 + $0x140] sm:$0xff]
    %v2733 = vld [vmem:[#allocation4 + $0x148] sm:$0xff]
    %v2734 = vld [vmem:[#allocation4 + $0x150] sm:$0xff]
    %v2735 = vld [vmem:[#allocation4 + $0x158] sm:$0xff]
    %v2736 = vld [vmem:[#allocation4 + $0x160] sm:$0xff]
    %v2737 = vld [vmem:[#allocation4 + $0x168] sm:$0xff]
    %v2738 = vld [vmem:[#allocation4 + $0x170] sm:$0xff]
    %v2739 = vld [vmem:[#allocation4 + $0x178] sm:$0xff]
    %v2740 = vld [vmem:[#allocation4 + $0x180] sm:$0xff]
    %v2741 = vld [vmem:[#allocation4 + $0x188] sm:$0xff]
    %v2742 = vld [vmem:[#allocation4 + $0x190] sm:$0xff]
    %v2743 = vld [vmem:[#allocation4 + $0x198] sm:$0xff]
    %v2744 = vld [vmem:[#allocation4 + $0x1a0] sm:$0xff]
    %v2745 = vld [vmem:[#allocation4 + $0x1a8] sm:$0xff]
    %v2746 = vld [vmem:[#allocation4 + $0x1b0] sm:$0xff]
    %v2747 = vld [vmem:[#allocation4 + $0x1b8] sm:$0xff]
    %v2748 = vld [vmem:[#allocation4 + $0x1c0] sm:$0xff]
    %v2749 = vld [vmem:[#allocation4 + $0x1c8] sm:$0xff]
    %v2750 = vld [vmem:[#allocation4 + $0x1d0] sm:$0xff]
    %v2751 = vld [vmem:[#allocation4 + $0x1d8] sm:$0xff]
    %v2752 = vld [vmem:[#allocation4 + $0x1e0] sm:$0xff]
    %v2753 = vld [vmem:[#allocation4 + $0x1e8] sm:$0xff]
    %v2754 = vld [vmem:[#allocation4 + $0x1f0] sm:$0xff]
    %v2755 = vld [vmem:[#allocation4 + $0x1f8] sm:$0xff]
    %v2756 = vld [vmem:[#allocation4 + $0x200] sm:$0xff]
    %v2757 = vld [vmem:[#allocation4 + $0x208] sm:$0xff]
    %v2758 = vld [vmem:[#allocation4 + $0x210] sm:$0xff]
    %v2759 = vld [vmem:[#allocation4 + $0x218] sm:$0xff]
    %v2760 = vld [vmem:[#allocation4 + $0x220] sm:$0xff]
    %v2761 = vld [vmem:[#allocation4 + $0x228] sm:$0xff]
    %v2762 = vld [vmem:[#allocation4 + $0x230] sm:$0xff]
    %v2763 = vld [vmem:[#allocation4 + $0x238] sm:$0xff]
    %v2764 = vld [vmem:[#allocation4 + $0x240] sm:$0xff]
    %v2765 = vld [vmem:[#allocation4 + $0x248] sm:$0xff]
    %v2766 = vld [vmem:[#allocation4 + $0x250] sm:$0xff]
    %v2767 = vld [vmem:[#allocation4 + $0x258] sm:$0xff]
    %v2768 = vld [vmem:[#allocation4 + $0x260] sm:$0xff]
    %v2769 = vld [vmem:[#allocation4 + $0x268] sm:$0xff]
    %v2770 = vld [vmem:[#allocation4 + $0x270] sm:$0xff]
    %v2771 = vld [vmem:[#allocation4 + $0x278] sm:$0xff]
    %v2772 = vld [vmem:[#allocation4 + $0x280] sm:$0xff]
    %v2773 = vld [vmem:[#allocation4 + $0x288] sm:$0xff]
    %v2774 = vld [vmem:[#allocation4 + $0x290] sm:$0xff]
    %v2775 = vld [vmem:[#allocation4 + $0x298] sm:$0xff]
    %v2776 = vld [vmem:[#allocation4 + $0x2a0] sm:$0xff]
    %v2777 = vld [vmem:[#allocation4 + $0x2a8] sm:$0xff]
    %v2778 = vld [vmem:[#allocation4 + $0x2b0] sm:$0xff]
    %v2779 = vld [vmem:[#allocation4 + $0x2b8] sm:$0xff]
    %v2780 = vld [vmem:[#allocation4 + $0x2c0] sm:$0xff]
    %v2781 = vld [vmem:[#allocation4 + $0x2c8] sm:$0xff]
    %v2782 = vld [vmem:[#allocation4 + $0x2d0] sm:$0xff]
    %v2783 = vld [vmem:[#allocation4 + $0x2d8] sm:$0xff]
    %v2784 = vld [vmem:[#allocation4 + $0x2e0] sm:$0xff]
    %v2785 = vld [vmem:[#allocation4 + $0x2e8] sm:$0xff]
    %v2786 = vld [vmem:[#allocation4 + $0x2f0] sm:$0xff]
    %v2787 = vld [vmem:[#allocation4 + $0x2f8] sm:$0xff]
    %v2788 = vld [vmem:[%s4] sm:$0x1]
    %v2790 = vlaneseq
    %v2791 = vshrl.u32 %v2790, 7
    %v2792 = vsub.s32 0, %v2791
    %v2793 = vrot.slane %v2788, %v2792
    %2795 = vmatprep.subr.mxu0 0.0
    %2796 = vmatpush1.msra.mxu0 %v2707
    %2797 = vmatprep.subr.mxu0 0.0
    %2798 = vmatpush1.msra.mxu0 %v2706
    %2799 = vmatprep.subr.mxu0 0.0
    %2800 = vmatpush1.msra.mxu0 %v2705
    %2801 = vmatprep.subr.mxu0 0.0
    %2802 = vmatpush1.msra.mxu0 %v2704
    %2803 = vmatprep.subr.mxu0 0.0
    %2804 = vmatpush1.msra.mxu0 %v2703
    %2805 = vmatprep.subr.mxu0 0.0
    %2806 = vmatpush1.msra.mxu0 %v2702
    %2807 = vmatprep.subr.mxu0 0.0
    %2808 = vmatpush1.msra.mxu0 %v2701
    %2809 = vmatprep.subr.mxu0 0.0
    %2810 = vmatpush1.msra.mxu0 %v2700
    %2811 = vmatprep.subr.mxu0 0.0
    %2812 = vmatpush1.msra.mxu0 %v2699
    %2813 = vmatprep.subr.mxu0 0.0
    %2814 = vmatpush1.msra.mxu0 %v2698
    %2815 = vmatprep.subr.mxu0 0.0
    %2816 = vmatpush1.msra.mxu0 %v2697
    %2817 = vmatprep.subr.mxu0 0.0
    %2818 = vmatpush1.msra.mxu0 %v2696
    %2819 = vmatprep.subr.mxu0 0.0
    %2820 = vmatpush1.msra.mxu0 %v2695
    %2821 = vmatprep.subr.mxu0 0.0
    %2822 = vmatpush1.msra.mxu0 %v2694
    %2823 = vmatprep.subr.mxu0 0.0
    %2824 = vmatpush1.msra.mxu0 %v2693
    %2825 = vmatprep.subr.mxu0 0.0
    %2826 = vmatpush1.msra.mxu0 %v2692
    %2827 = vmatprep.subr.mxu0 0.0
    %2828 = vmatpush2.msra.mxu0 %v2723
    %2829 = vmatprep.subr.mxu0 0.0
    %2830 = vmatpush2.msra.mxu0 %v2722
    %2831 = vmatprep.subr.mxu0 0.0
    %2832 = vmatpush2.msra.mxu0 %v2721
    %2833 = vmatprep.subr.mxu0 0.0
    %2834 = vmatpush2.msra.mxu0 %v2720
    %2835 = vmatprep.subr.mxu0 0.0
    %2836 = vmatpush2.msra.mxu0 %v2719
    %2837 = vmatprep.subr.mxu0 0.0
    %2838 = vmatpush2.msra.mxu0 %v2718
    %2839 = vmatprep.subr.mxu0 0.0
    %2840 = vmatpush2.msra.mxu0 %v2717
    %2841 = vmatprep.subr.mxu0 0.0
    %2842 = vmatpush2.msra.mxu0 %v2716
    %2843 = vmatprep.subr.mxu0 0.0
    %2844 = vmatpush2.msra.mxu0 %v2715
    %2845 = vmatprep.subr.mxu0 0.0
    %2846 = vmatpush2.msra.mxu0 %v2714
    %2847 = vmatprep.subr.mxu0 0.0
    %2848 = vmatpush2.msra.mxu0 %v2713
    %2849 = vmatprep.subr.mxu0 0.0
    %2850 = vmatpush2.msra.mxu0 %v2712
    %2851 = vmatprep.subr.mxu0 0.0
    %2852 = vmatpush2.msra.mxu0 %v2711
    %2853 = vmatprep.subr.mxu0 0.0
    %2854 = vmatpush2.msra.mxu0 %v2710
    %2855 = vmatprep.subr.mxu0 0.0
    %2856 = vmatpush2.msra.mxu0 %v2709
    %2857 = vmatprep.subr.mxu0 0.0
    %2858 = vmatpush2.msra.mxu0 %v2708
    %2859 = vmatprep.mubr.f32.mxu0 %v2687
    %2860 = vmatmul.mubr.f32.gmra.mxu0 %v2686
    %v2861 = vpop.f32.mrf.mxu0
    %v2862 = vadd.f32 %v2793, %v2861
    %v2863 = vpop.f32.mrf.mxu0
    %2864 = vdwg.mxu0
    %2865 = vmatprep.subr.mxu0 0.0
    %2866 = vmatpush1.msra.mxu0 %v2739
    %2867 = vmatprep.subr.mxu0 0.0
    %2868 = vmatpush1.msra.mxu0 %v2738
    %2869 = vmatprep.subr.mxu0 0.0
    %2870 = vmatpush1.msra.mxu0 %v2737
    %2871 = vmatprep.subr.mxu0 0.0
    %2872 = vmatpush1.msra.mxu0 %v2736
    %2873 = vmatprep.subr.mxu0 0.0
    %2874 = vmatpush1.msra.mxu0 %v2735
    %2875 = vmatprep.subr.mxu0 0.0
    %2876 = vmatpush1.msra.mxu0 %v2734
    %2877 = vmatprep.subr.mxu0 0.0
    %2878 = vmatpush1.msra.mxu0 %v2733
    %2879 = vmatprep.subr.mxu0 0.0
    %2880 = vmatpush1.msra.mxu0 %v2732
    %2881 = vmatprep.subr.mxu0 0.0
    %2882 = vmatpush1.msra.mxu0 %v2731
    %2883 = vmatprep.subr.mxu0 0.0
    %2884 = vmatpush1.msra.mxu0 %v2730
    %2885 = vmatprep.subr.mxu0 0.0
    %2886 = vmatpush1.msra.mxu0 %v2729
    %2887 = vmatprep.subr.mxu0 0.0
    %2888 = vmatpush1.msra.mxu0 %v2728
    %2889 = vmatprep.subr.mxu0 0.0
    %2890 = vmatpush1.msra.mxu0 %v2727
    %2891 = vmatprep.subr.mxu0 0.0
    %2892 = vmatpush1.msra.mxu0 %v2726
    %2893 = vmatprep.subr.mxu0 0.0
    %2894 = vmatpush1.msra.mxu0 %v2725
    %2895 = vmatprep.subr.mxu0 0.0
    %2896 = vmatpush1.msra.mxu0 %v2724
    %2897 = vmatprep.subr.mxu0 0.0
    %2898 = vmatpush2.msra.mxu0 %v2755
    %2899 = vmatprep.subr.mxu0 0.0
    %2900 = vmatpush2.msra.mxu0 %v2754
    %2901 = vmatprep.subr.mxu0 0.0
    %2902 = vmatpush2.msra.mxu0 %v2753
    %2903 = vmatprep.subr.mxu0 0.0
    %2904 = vmatpush2.msra.mxu0 %v2752
    %2905 = vmatprep.subr.mxu0 0.0
    %2906 = vmatpush2.msra.mxu0 %v2751
    %2907 = vmatprep.subr.mxu0 0.0
    %2908 = vmatpush2.msra.mxu0 %v2750
    %2909 = vmatprep.subr.mxu0 0.0
    %2910 = vmatpush2.msra.mxu0 %v2749
    %2911 = vmatprep.subr.mxu0 0.0
    %2912 = vmatpush2.msra.mxu0 %v2748
    %2913 = vmatprep.subr.mxu0 0.0
    %2914 = vmatpush2.msra.mxu0 %v2747
    %2915 = vmatprep.subr.mxu0 0.0
    %2916 = vmatpush2.msra.mxu0 %v2746
    %2917 = vmatprep.subr.mxu0 0.0
    %2918 = vmatpush2.msra.mxu0 %v2745
    %2919 = vmatprep.subr.mxu0 0.0
    %2920 = vmatpush2.msra.mxu0 %v2744
    %2921 = vmatprep.subr.mxu0 0.0
    %2922 = vmatpush2.msra.mxu0 %v2743
    %2923 = vmatprep.subr.mxu0 0.0
    %2924 = vmatpush2.msra.mxu0 %v2742
    %2925 = vmatprep.subr.mxu0 0.0
    %2926 = vmatpush2.msra.mxu0 %v2741
    %2927 = vmatprep.subr.mxu0 0.0
    %2928 = vmatpush2.msra.mxu0 %v2740
    %2929 = vmatprep.mubr.f32.mxu0 %v2689
    %2930 = vmatmul.mubr.f32.gmra.mxu0 %v2688
    %v2931 = vpop.f32.mrf.mxu0
    %v2932 = vadd.f32 %v2862, %v2931
    %v2933 = vpop.f32.mrf.mxu0
    %2934 = vdwg.mxu0
    %2935 = vmatprep.subr.mxu0 0.0
    %2936 = vmatpush1.msra.mxu0 %v2771
    %2937 = vmatprep.subr.mxu0 0.0
    %2938 = vmatpush1.msra.mxu0 %v2770
    %2939 = vmatprep.subr.mxu0 0.0
    %2940 = vmatpush1.msra.mxu0 %v2769
    %2941 = vmatprep.subr.mxu0 0.0
    %2942 = vmatpush1.msra.mxu0 %v2768
    %2943 = vmatprep.subr.mxu0 0.0
    %2944 = vmatpush1.msra.mxu0 %v2767
    %2945 = vmatprep.subr.mxu0 0.0
    %2946 = vmatpush1.msra.mxu0 %v2766
    %2947 = vmatprep.subr.mxu0 0.0
    %2948 = vmatpush1.msra.mxu0 %v2765
    %2949 = vmatprep.subr.mxu0 0.0
    %2950 = vmatpush1.msra.mxu0 %v2764
    %2951 = vmatprep.subr.mxu0 0.0
    %2952 = vmatpush1.msra.mxu0 %v2763
    %2953 = vmatprep.subr.mxu0 0.0
    %2954 = vmatpush1.msra.mxu0 %v2762
    %2955 = vmatprep.subr.mxu0 0.0
    %2956 = vmatpush1.msra.mxu0 %v2761
    %2957 = vmatprep.subr.mxu0 0.0
    %2958 = vmatpush1.msra.mxu0 %v2760
    %2959 = vmatprep.subr.mxu0 0.0
    %2960 = vmatpush1.msra.mxu0 %v2759
    %2961 = vmatprep.subr.mxu0 0.0
    %2962 = vmatpush1.msra.mxu0 %v2758
    %2963 = vmatprep.subr.mxu0 0.0
    %2964 = vmatpush1.msra.mxu0 %v2757
    %2965 = vmatprep.subr.mxu0 0.0
    %2966 = vmatpush1.msra.mxu0 %v2756
    %2967 = vmatprep.subr.mxu0 0.0
    %2968 = vmatpush2.msra.mxu0 %v2787
    %2969 = vmatprep.subr.mxu0 0.0
    %2970 = vmatpush2.msra.mxu0 %v2786
    %2971 = vmatprep.subr.mxu0 0.0
    %2972 = vmatpush2.msra.mxu0 %v2785
    %2973 = vmatprep.subr.mxu0 0.0
    %2974 = vmatpush2.msra.mxu0 %v2784
    %2975 = vmatprep.subr.mxu0 0.0
    %2976 = vmatpush2.msra.mxu0 %v2783
    %2977 = vmatprep.subr.mxu0 0.0
    %2978 = vmatpush2.msra.mxu0 %v2782
    %2979 = vmatprep.subr.mxu0 0.0
    %2980 = vmatpush2.msra.mxu0 %v2781
    %2981 = vmatprep.subr.mxu0 0.0
    %2982 = vmatpush2.msra.mxu0 %v2780
    %2983 = vmatprep.subr.mxu0 0.0
    %2984 = vmatpush2.msra.mxu0 %v2779
    %2985 = vmatprep.subr.mxu0 0.0
    %2986 = vmatpush2.msra.mxu0 %v2778
    %2987 = vmatprep.subr.mxu0 0.0
    %2988 = vmatpush2.msra.mxu0 %v2777
    %2989 = vmatprep.subr.mxu0 0.0
    %2990 = vmatpush2.msra.mxu0 %v2776
    %2991 = vmatprep.subr.mxu0 0.0
    %2992 = vmatpush2.msra.mxu0 %v2775
    %2993 = vmatprep.subr.mxu0 0.0
    %2994 = vmatpush2.msra.mxu0 %v2774
    %2995 = vmatprep.subr.mxu0 0.0
    %2996 = vmatpush2.msra.mxu0 %v2773
    %2997 = vmatprep.subr.mxu0 0.0
    %2998 = vmatpush2.msra.mxu0 %v2772
    %2999 = vmatprep.mubr.f32.mxu0 %v2691
    %3000 = vmatmul.mubr.f32.gmra.mxu0 %v2690
    %v3001 = vpop.f32.mrf.mxu0
    %v3002 = vadd.f32 %v2932, %v3001
    %v3003 = vpop.f32.mrf.mxu0
    %3004 = vdwg.mxu0
    %v3005 = vmul.f32 %v3002, 0.5
    %v3006 = vtanh.pop %v3005
    %v3007 = vmul.f32 %v3006, 0.5
    %v3008 = vadd.f32 %v3007, 0.5
    %v3009 = vmul.f32 %v3002, %v3008
    %3010 = vst [vmem:[#allocation3 + $0x18] sm:$0xff] %v3009
    %v3011 = vld [vmem:[#allocation2 + $0x40] sm:$0xff]
    %v3012 = vld [vmem:[#allocation2 + $0x48] sm:$0xff]
    %v3013 = vld [vmem:[#allocation2 + $0x50] sm:$0xff]
    %v3014 = vld [vmem:[#allocation2 + $0x58] sm:$0xff]
    %v3015 = vld [vmem:[#allocation2 + $0x60] sm:$0xff]
    %v3016 = vld [vmem:[#allocation2 + $0x68] sm:$0xff]
    %v3017 = vld [vmem:[#allocation4] sm:$0xff]
    %v3018 = vld [vmem:[#allocation4 + $0x8] sm:$0xff]
    %v3019 = vld [vmem:[#allocation4 + $0x10] sm:$0xff]
    %v3020 = vld [vmem:[#allocation4 + $0x18] sm:$0xff]
    %v3021 = vld [vmem:[#allocation4 + $0x20] sm:$0xff]
    %v3022 = vld [vmem:[#allocation4 + $0x28] sm:$0xff]
    %v3023 = vld [vmem:[#allocation4 + $0x30] sm:$0xff]
    %v3024 = vld [vmem:[#allocation4 + $0x38] sm:$0xff]
    %v3025 = vld [vmem:[#allocation4 + $0x40] sm:$0xff]
    %v3026 = vld [vmem:[#allocation4 + $0x48] sm:$0xff]
    %v3027 = vld [vmem:[#allocation4 + $0x50] sm:$0xff]
    %v3028 = vld [vmem:[#allocation4 + $0x58] sm:$0xff]
    %v3029 = vld [vmem:[#allocation4 + $0x60] sm:$0xff]
    %v3030 = vld [vmem:[#allocation4 + $0x68] sm:$0xff]
    %v3031 = vld [vmem:[#allocation4 + $0x70] sm:$0xff]
    %v3032 = vld [vmem:[#allocation4 + $0x78] sm:$0xff]
    %v3033 = vld [vmem:[#allocation4 + $0x80] sm:$0xff]
    %v3034 = vld [vmem:[#allocation4 + $0x88] sm:$0xff]
    %v3035 = vld [vmem:[#allocation4 + $0x90] sm:$0xff]
    %v3036 = vld [vmem:[#allocation4 + $0x98] sm:$0xff]
    %v3037 = vld [vmem:[#allocation4 + $0xa0] sm:$0xff]
    %v3038 = vld [vmem:[#allocation4 + $0xa8] sm:$0xff]
    %v3039 = vld [vmem:[#allocation4 + $0xb0] sm:$0xff]
    %v3040 = vld [vmem:[#allocation4 + $0xb8] sm:$0xff]
    %v3041 = vld [vmem:[#allocation4 + $0xc0] sm:$0xff]
    %v3042 = vld [vmem:[#allocation4 + $0xc8] sm:$0xff]
    %v3043 = vld [vmem:[#allocation4 + $0xd0] sm:$0xff]
    %v3044 = vld [vmem:[#allocation4 + $0xd8] sm:$0xff]
    %v3045 = vld [vmem:[#allocation4 + $0xe0] sm:$0xff]
    %v3046 = vld [vmem:[#allocation4 + $0xe8] sm:$0xff]
    %v3047 = vld [vmem:[#allocation4 + $0xf0] sm:$0xff]
    %v3048 = vld [vmem:[#allocation4 + $0xf8] sm:$0xff]
    %v3049 = vld [vmem:[#allocation4 + $0x100] sm:$0xff]
    %v3050 = vld [vmem:[#allocation4 + $0x108] sm:$0xff]
    %v3051 = vld [vmem:[#allocation4 + $0x110] sm:$0xff]
    %v3052 = vld [vmem:[#allocation4 + $0x118] sm:$0xff]
    %v3053 = vld [vmem:[#allocation4 + $0x120] sm:$0xff]
    %v3054 = vld [vmem:[#allocation4 + $0x128] sm:$0xff]
    %v3055 = vld [vmem:[#allocation4 + $0x130] sm:$0xff]
    %v3056 = vld [vmem:[#allocation4 + $0x138] sm:$0xff]
    %v3057 = vld [vmem:[#allocation4 + $0x140] sm:$0xff]
    %v3058 = vld [vmem:[#allocation4 + $0x148] sm:$0xff]
    %v3059 = vld [vmem:[#allocation4 + $0x150] sm:$0xff]
    %v3060 = vld [vmem:[#allocation4 + $0x158] sm:$0xff]
    %v3061 = vld [vmem:[#allocation4 + $0x160] sm:$0xff]
    %v3062 = vld [vmem:[#allocation4 + $0x168] sm:$0xff]
    %v3063 = vld [vmem:[#allocation4 + $0x170] sm:$0xff]
    %v3064 = vld [vmem:[#allocation4 + $0x178] sm:$0xff]
    %v3065 = vld [vmem:[#allocation4 + $0x180] sm:$0xff]
    %v3066 = vld [vmem:[#allocation4 + $0x188] sm:$0xff]
    %v3067 = vld [vmem:[#allocation4 + $0x190] sm:$0xff]
    %v3068 = vld [vmem:[#allocation4 + $0x198] sm:$0xff]
    %v3069 = vld [vmem:[#allocation4 + $0x1a0] sm:$0xff]
    %v3070 = vld [vmem:[#allocation4 + $0x1a8] sm:$0xff]
    %v3071 = vld [vmem:[#allocation4 + $0x1b0] sm:$0xff]
    %v3072 = vld [vmem:[#allocation4 + $0x1b8] sm:$0xff]
    %v3073 = vld [vmem:[#allocation4 + $0x1c0] sm:$0xff]
    %v3074 = vld [vmem:[#allocation4 + $0x1c8] sm:$0xff]
    %v3075 = vld [vmem:[#allocation4 + $0x1d0] sm:$0xff]
    %v3076 = vld [vmem:[#allocation4 + $0x1d8] sm:$0xff]
    %v3077 = vld [vmem:[#allocation4 + $0x1e0] sm:$0xff]
    %v3078 = vld [vmem:[#allocation4 + $0x1e8] sm:$0xff]
    %v3079 = vld [vmem:[#allocation4 + $0x1f0] sm:$0xff]
    %v3080 = vld [vmem:[#allocation4 + $0x1f8] sm:$0xff]
    %v3081 = vld [vmem:[#allocation4 + $0x200] sm:$0xff]
    %v3082 = vld [vmem:[#allocation4 + $0x208] sm:$0xff]
    %v3083 = vld [vmem:[#allocation4 + $0x210] sm:$0xff]
    %v3084 = vld [vmem:[#allocation4 + $0x218] sm:$0xff]
    %v3085 = vld [vmem:[#allocation4 + $0x220] sm:$0xff]
    %v3086 = vld [vmem:[#allocation4 + $0x228] sm:$0xff]
    %v3087 = vld [vmem:[#allocation4 + $0x230] sm:$0xff]
    %v3088 = vld [vmem:[#allocation4 + $0x238] sm:$0xff]
    %v3089 = vld [vmem:[#allocation4 + $0x240] sm:$0xff]
    %v3090 = vld [vmem:[#allocation4 + $0x248] sm:$0xff]
    %v3091 = vld [vmem:[#allocation4 + $0x250] sm:$0xff]
    %v3092 = vld [vmem:[#allocation4 + $0x258] sm:$0xff]
    %v3093 = vld [vmem:[#allocation4 + $0x260] sm:$0xff]
    %v3094 = vld [vmem:[#allocation4 + $0x268] sm:$0xff]
    %v3095 = vld [vmem:[#allocation4 + $0x270] sm:$0xff]
    %v3096 = vld [vmem:[#allocation4 + $0x278] sm:$0xff]
    %v3097 = vld [vmem:[#allocation4 + $0x280] sm:$0xff]
    %v3098 = vld [vmem:[#allocation4 + $0x288] sm:$0xff]
    %v3099 = vld [vmem:[#allocation4 + $0x290] sm:$0xff]
    %v3100 = vld [vmem:[#allocation4 + $0x298] sm:$0xff]
    %v3101 = vld [vmem:[#allocation4 + $0x2a0] sm:$0xff]
    %v3102 = vld [vmem:[#allocation4 + $0x2a8] sm:$0xff]
    %v3103 = vld [vmem:[#allocation4 + $0x2b0] sm:$0xff]
    %v3104 = vld [vmem:[#allocation4 + $0x2b8] sm:$0xff]
    %v3105 = vld [vmem:[#allocation4 + $0x2c0] sm:$0xff]
    %v3106 = vld [vmem:[#allocation4 + $0x2c8] sm:$0xff]
    %v3107 = vld [vmem:[#allocation4 + $0x2d0] sm:$0xff]
    %v3108 = vld [vmem:[#allocation4 + $0x2d8] sm:$0xff]
    %v3109 = vld [vmem:[#allocation4 + $0x2e0] sm:$0xff]
    %v3110 = vld [vmem:[#allocation4 + $0x2e8] sm:$0xff]
    %v3111 = vld [vmem:[#allocation4 + $0x2f0] sm:$0xff]
    %v3112 = vld [vmem:[#allocation4 + $0x2f8] sm:$0xff]
    %v3113 = vld [vmem:[%s4] sm:$0x1]
    %v3115 = vlaneseq
    %v3116 = vshrl.u32 %v3115, 7
    %v3117 = vsub.s32 0, %v3116
    %v3118 = vrot.slane %v3113, %v3117
    %3120 = vmatprep.subr.mxu0 0.0
    %3121 = vmatpush1.msra.mxu0 %v3032
    %3122 = vmatprep.subr.mxu0 0.0
    %3123 = vmatpush1.msra.mxu0 %v3031
    %3124 = vmatprep.subr.mxu0 0.0
    %3125 = vmatpush1.msra.mxu0 %v3030
    %3126 = vmatprep.subr.mxu0 0.0
    %3127 = vmatpush1.msra.mxu0 %v3029
    %3128 = vmatprep.subr.mxu0 0.0
    %3129 = vmatpush1.msra.mxu0 %v3028
    %3130 = vmatprep.subr.mxu0 0.0
    %3131 = vmatpush1.msra.mxu0 %v3027
    %3132 = vmatprep.subr.mxu0 0.0
    %3133 = vmatpush1.msra.mxu0 %v3026
    %3134 = vmatprep.subr.mxu0 0.0
    %3135 = vmatpush1.msra.mxu0 %v3025
    %3136 = vmatprep.subr.mxu0 0.0
    %3137 = vmatpush1.msra.mxu0 %v3024
    %3138 = vmatprep.subr.mxu0 0.0
    %3139 = vmatpush1.msra.mxu0 %v3023
    %3140 = vmatprep.subr.mxu0 0.0
    %3141 = vmatpush1.msra.mxu0 %v3022
    %3142 = vmatprep.subr.mxu0 0.0
    %3143 = vmatpush1.msra.mxu0 %v3021
    %3144 = vmatprep.subr.mxu0 0.0
    %3145 = vmatpush1.msra.mxu0 %v3020
    %3146 = vmatprep.subr.mxu0 0.0
    %3147 = vmatpush1.msra.mxu0 %v3019
    %3148 = vmatprep.subr.mxu0 0.0
    %3149 = vmatpush1.msra.mxu0 %v3018
    %3150 = vmatprep.subr.mxu0 0.0
    %3151 = vmatpush1.msra.mxu0 %v3017
    %3152 = vmatprep.subr.mxu0 0.0
    %3153 = vmatpush2.msra.mxu0 %v3048
    %3154 = vmatprep.subr.mxu0 0.0
    %3155 = vmatpush2.msra.mxu0 %v3047
    %3156 = vmatprep.subr.mxu0 0.0
    %3157 = vmatpush2.msra.mxu0 %v3046
    %3158 = vmatprep.subr.mxu0 0.0
    %3159 = vmatpush2.msra.mxu0 %v3045
    %3160 = vmatprep.subr.mxu0 0.0
    %3161 = vmatpush2.msra.mxu0 %v3044
    %3162 = vmatprep.subr.mxu0 0.0
    %3163 = vmatpush2.msra.mxu0 %v3043
    %3164 = vmatprep.subr.mxu0 0.0
    %3165 = vmatpush2.msra.mxu0 %v3042
    %3166 = vmatprep.subr.mxu0 0.0
    %3167 = vmatpush2.msra.mxu0 %v3041
    %3168 = vmatprep.subr.mxu0 0.0
    %3169 = vmatpush2.msra.mxu0 %v3040
    %3170 = vmatprep.subr.mxu0 0.0
    %3171 = vmatpush2.msra.mxu0 %v3039
    %3172 = vmatprep.subr.mxu0 0.0
    %3173 = vmatpush2.msra.mxu0 %v3038
    %3174 = vmatprep.subr.mxu0 0.0
    %3175 = vmatpush2.msra.mxu0 %v3037
    %3176 = vmatprep.subr.mxu0 0.0
    %3177 = vmatpush2.msra.mxu0 %v3036
    %3178 = vmatprep.subr.mxu0 0.0
    %3179 = vmatpush2.msra.mxu0 %v3035
    %3180 = vmatprep.subr.mxu0 0.0
    %3181 = vmatpush2.msra.mxu0 %v3034
    %3182 = vmatprep.subr.mxu0 0.0
    %3183 = vmatpush2.msra.mxu0 %v3033
    %3184 = vmatprep.mubr.f32.mxu0 %v3012
    %3185 = vmatmul.mubr.f32.gmra.mxu0 %v3011
    %v3186 = vpop.f32.mrf.mxu0
    %v3187 = vadd.f32 %v3118, %v3186
    %v3188 = vpop.f32.mrf.mxu0
    %3189 = vdwg.mxu0
    %3190 = vmatprep.subr.mxu0 0.0
    %3191 = vmatpush1.msra.mxu0 %v3064
    %3192 = vmatprep.subr.mxu0 0.0
    %3193 = vmatpush1.msra.mxu0 %v3063
    %3194 = vmatprep.subr.mxu0 0.0
    %3195 = vmatpush1.msra.mxu0 %v3062
    %3196 = vmatprep.subr.mxu0 0.0
    %3197 = vmatpush1.msra.mxu0 %v3061
    %3198 = vmatprep.subr.mxu0 0.0
    %3199 = vmatpush1.msra.mxu0 %v3060
    %3200 = vmatprep.subr.mxu0 0.0
    %3201 = vmatpush1.msra.mxu0 %v3059
    %3202 = vmatprep.subr.mxu0 0.0
    %3203 = vmatpush1.msra.mxu0 %v3058
    %3204 = vmatprep.subr.mxu0 0.0
    %3205 = vmatpush1.msra.mxu0 %v3057
    %3206 = vmatprep.subr.mxu0 0.0
    %3207 = vmatpush1.msra.mxu0 %v3056
    %3208 = vmatprep.subr.mxu0 0.0
    %3209 = vmatpush1.msra.mxu0 %v3055
    %3210 = vmatprep.subr.mxu0 0.0
    %3211 = vmatpush1.msra.mxu0 %v3054
    %3212 = vmatprep.subr.mxu0 0.0
    %3213 = vmatpush1.msra.mxu0 %v3053
    %3214 = vmatprep.subr.mxu0 0.0
    %3215 = vmatpush1.msra.mxu0 %v3052
    %3216 = vmatprep.subr.mxu0 0.0
    %3217 = vmatpush1.msra.mxu0 %v3051
    %3218 = vmatprep.subr.mxu0 0.0
    %3219 = vmatpush1.msra.mxu0 %v3050
    %3220 = vmatprep.subr.mxu0 0.0
    %3221 = vmatpush1.msra.mxu0 %v3049
    %3222 = vmatprep.subr.mxu0 0.0
    %3223 = vmatpush2.msra.mxu0 %v3080
    %3224 = vmatprep.subr.mxu0 0.0
    %3225 = vmatpush2.msra.mxu0 %v3079
    %3226 = vmatprep.subr.mxu0 0.0
    %3227 = vmatpush2.msra.mxu0 %v3078
    %3228 = vmatprep.subr.mxu0 0.0
    %3229 = vmatpush2.msra.mxu0 %v3077
    %3230 = vmatprep.subr.mxu0 0.0
    %3231 = vmatpush2.msra.mxu0 %v3076
    %3232 = vmatprep.subr.mxu0 0.0
    %3233 = vmatpush2.msra.mxu0 %v3075
    %3234 = vmatprep.subr.mxu0 0.0
    %3235 = vmatpush2.msra.mxu0 %v3074
    %3236 = vmatprep.subr.mxu0 0.0
    %3237 = vmatpush2.msra.mxu0 %v3073
    %3238 = vmatprep.subr.mxu0 0.0
    %3239 = vmatpush2.msra.mxu0 %v3072
    %3240 = vmatprep.subr.mxu0 0.0
    %3241 = vmatpush2.msra.mxu0 %v3071
    %3242 = vmatprep.subr.mxu0 0.0
    %3243 = vmatpush2.msra.mxu0 %v3070
    %3244 = vmatprep.subr.mxu0 0.0
    %3245 = vmatpush2.msra.mxu0 %v3069
    %3246 = vmatprep.subr.mxu0 0.0
    %3247 = vmatpush2.msra.mxu0 %v3068
    %3248 = vmatprep.subr.mxu0 0.0
    %3249 = vmatpush2.msra.mxu0 %v3067
    %3250 = vmatprep.subr.mxu0 0.0
    %3251 = vmatpush2.msra.mxu0 %v3066
    %3252 = vmatprep.subr.mxu0 0.0
    %3253 = vmatpush2.msra.mxu0 %v3065
    %3254 = vmatprep.mubr.f32.mxu0 %v3014
    %3255 = vmatmul.mubr.f32.gmra.mxu0 %v3013
    %v3256 = vpop.f32.mrf.mxu0
    %v3257 = vadd.f32 %v3187, %v3256
    %v3258 = vpop.f32.mrf.mxu0
    %3259 = vdwg.mxu0
    %3260 = vmatprep.subr.mxu0 0.0
    %3261 = vmatpush1.msra.mxu0 %v3096
    %3262 = vmatprep.subr.mxu0 0.0
    %3263 = vmatpush1.msra.mxu0 %v3095
    %3264 = vmatprep.subr.mxu0 0.0
    %3265 = vmatpush1.msra.mxu0 %v3094
    %3266 = vmatprep.subr.mxu0 0.0
    %3267 = vmatpush1.msra.mxu0 %v3093
    %3268 = vmatprep.subr.mxu0 0.0
    %3269 = vmatpush1.msra.mxu0 %v3092
    %3270 = vmatprep.subr.mxu0 0.0
    %3271 = vmatpush1.msra.mxu0 %v3091
    %3272 = vmatprep.subr.mxu0 0.0
    %3273 = vmatpush1.msra.mxu0 %v3090
    %3274 = vmatprep.subr.mxu0 0.0
    %3275 = vmatpush1.msra.mxu0 %v3089
    %3276 = vmatprep.subr.mxu0 0.0
    %3277 = vmatpush1.msra.mxu0 %v3088
    %3278 = vmatprep.subr.mxu0 0.0
    %3279 = vmatpush1.msra.mxu0 %v3087
    %3280 = vmatprep.subr.mxu0 0.0
    %3281 = vmatpush1.msra.mxu0 %v3086
    %3282 = vmatprep.subr.mxu0 0.0
    %3283 = vmatpush1.msra.mxu0 %v3085
    %3284 = vmatprep.subr.mxu0 0.0
    %3285 = vmatpush1.msra.mxu0 %v3084
    %3286 = vmatprep.subr.mxu0 0.0
    %3287 = vmatpush1.msra.mxu0 %v3083
    %3288 = vmatprep.subr.mxu0 0.0
    %3289 = vmatpush1.msra.mxu0 %v3082
    %3290 = vmatprep.subr.mxu0 0.0
    %3291 = vmatpush1.msra.mxu0 %v3081
    %3292 = vmatprep.subr.mxu0 0.0
    %3293 = vmatpush2.msra.mxu0 %v3112
    %3294 = vmatprep.subr.mxu0 0.0
    %3295 = vmatpush2.msra.mxu0 %v3111
    %3296 = vmatprep.subr.mxu0 0.0
    %3297 = vmatpush2.msra.mxu0 %v3110
    %3298 = vmatprep.subr.mxu0 0.0
    %3299 = vmatpush2.msra.mxu0 %v3109
    %3300 = vmatprep.subr.mxu0 0.0
    %3301 = vmatpush2.msra.mxu0 %v3108
    %3302 = vmatprep.subr.mxu0 0.0
    %3303 = vmatpush2.msra.mxu0 %v3107
    %3304 = vmatprep.subr.mxu0 0.0
    %3305 = vmatpush2.msra.mxu0 %v3106
    %3306 = vmatprep.subr.mxu0 0.0
    %3307 = vmatpush2.msra.mxu0 %v3105
    %3308 = vmatprep.subr.mxu0 0.0
    %3309 = vmatpush2.msra.mxu0 %v3104
    %3310 = vmatprep.subr.mxu0 0.0
    %3311 = vmatpush2.msra.mxu0 %v3103
    %3312 = vmatprep.subr.mxu0 0.0
    %3313 = vmatpush2.msra.mxu0 %v3102
    %3314 = vmatprep.subr.mxu0 0.0
    %3315 = vmatpush2.msra.mxu0 %v3101
    %3316 = vmatprep.subr.mxu0 0.0
    %3317 = vmatpush2.msra.mxu0 %v3100
    %3318 = vmatprep.subr.mxu0 0.0
    %3319 = vmatpush2.msra.mxu0 %v3099
    %3320 = vmatprep.subr.mxu0 0.0
    %3321 = vmatpush2.msra.mxu0 %v3098
    %3322 = vmatprep.subr.mxu0 0.0
    %3323 = vmatpush2.msra.mxu0 %v3097
    %3324 = vmatprep.mubr.f32.mxu0 %v3016
    %3325 = vmatmul.mubr.f32.gmra.mxu0 %v3015
    %v3326 = vpop.f32.mrf.mxu0
    %v3327 = vadd.f32 %v3257, %v3326
    %v3328 = vpop.f32.mrf.mxu0
    %3329 = vdwg.mxu0
    %v3330 = vmul.f32 %v3327, 0.5
    %v3331 = vtanh.pop %v3330
    %v3332 = vmul.f32 %v3331, 0.5
    %v3333 = vadd.f32 %v3332, 0.5
    %v3334 = vmul.f32 %v3327, %v3333
    %3335 = vst [vmem:[#allocation3 + $0x20] sm:$0xff] %v3334
    %v3336 = vld [vmem:[#allocation3] sm:$0xff]
    %v3337 = vld [vmem:[#allocation3 + $0x8] sm:$0xff]
    %v3338 = vld [vmem:[#allocation3 + $0x10] sm:$0xff]
    %v3339 = vld [vmem:[#allocation3 + $0x18] sm:$0xff]
    %v3340 = vld [vmem:[#allocation3 + $0x20] sm:$0xff]
    %v3341 = vld [vmem:[#allocation6] sm:$0xff]
    %v3342 = vld [vmem:[#allocation6 + $0x8] sm:$0xff]
    %v3343 = vld [vmem:[#allocation6 + $0x10] sm:$0xff]
    %v3344 = vld [vmem:[#allocation6 + $0x18] sm:$0xff]
    %v3345 = vld [vmem:[#allocation6 + $0x20] sm:$0xff]
    %v3346 = vld [vmem:[#allocation6 + $0x28] sm:$0xff]
    %v3347 = vld [vmem:[#allocation6 + $0x30] sm:$0xff]
    %v3348 = vld [vmem:[#allocation6 + $0x38] sm:$0xff]
    %v3349 = vld [vmem:[#allocation6 + $0x40] sm:$0xff]
    %v3350 = vld [vmem:[#allocation6 + $0x48] sm:$0xff]
    %v3351 = vld [vmem:[#allocation6 + $0x50] sm:$0xff]
    %v3352 = vld [vmem:[#allocation6 + $0x58] sm:$0xff]
    %v3353 = vld [vmem:[#allocation6 + $0x60] sm:$0xff]
    %v3354 = vld [vmem:[#allocation6 + $0x68] sm:$0xff]
    %v3355 = vld [vmem:[#allocation6 + $0x70] sm:$0xff]
    %v3356 = vld [vmem:[#allocation6 + $0x78] sm:$0xff]
    %v3357 = vld [vmem:[#allocation6 + $0x80] sm:$0xff]
    %v3358 = vld [vmem:[#allocation6 + $0x88] sm:$0xff]
    %v3359 = vld [vmem:[#allocation6 + $0x90] sm:$0xff]
    %v3360 = vld [vmem:[#allocation6 + $0x98] sm:$0xff]
    %v3361 = vld [vmem:[#allocation6 + $0xa0] sm:$0xff]
    %v3362 = vld [vmem:[#allocation6 + $0xa8] sm:$0xff]
    %v3363 = vld [vmem:[#allocation6 + $0xb0] sm:$0xff]
    %v3364 = vld [vmem:[#allocation6 + $0xb8] sm:$0xff]
    %v3365 = vld [vmem:[#allocation6 + $0xc0] sm:$0xff]
    %v3366 = vld [vmem:[#allocation6 + $0xc8] sm:$0xff]
    %v3367 = vld [vmem:[#allocation6 + $0xd0] sm:$0xff]
    %v3368 = vld [vmem:[#allocation6 + $0xd8] sm:$0xff]
    %v3369 = vld [vmem:[#allocation6 + $0xe0] sm:$0xff]
    %v3370 = vld [vmem:[#allocation6 + $0xe8] sm:$0xff]
    %v3371 = vld [vmem:[#allocation6 + $0xf0] sm:$0xff]
    %v3372 = vld [vmem:[#allocation6 + $0xf8] sm:$0xff]
    %v3373 = vld [vmem:[#allocation6 + $0x100] sm:$0xff]
    %v3374 = vld [vmem:[#allocation6 + $0x108] sm:$0xff]
    %v3375 = vld [vmem:[#allocation6 + $0x110] sm:$0xff]
    %v3376 = vld [vmem:[#allocation6 + $0x118] sm:$0xff]
    %v3377 = vld [vmem:[#allocation6 + $0x120] sm:$0xff]
    %v3378 = vld [vmem:[#allocation6 + $0x128] sm:$0xff]
    %v3379 = vld [vmem:[#allocation6 + $0x130] sm:$0xff]
    %v3380 = vld [vmem:[#allocation6 + $0x138] sm:$0xff]
    %v3381 = vld [vmem:[#allocation6 + $0x140] sm:$0xff]
    %v3382 = vld [vmem:[#allocation6 + $0x148] sm:$0xff]
    %v3383 = vld [vmem:[#allocation6 + $0x150] sm:$0xff]
    %v3384 = vld [vmem:[#allocation6 + $0x158] sm:$0xff]
    %v3385 = vld [vmem:[#allocation6 + $0x160] sm:$0xff]
    %v3386 = vld [vmem:[#allocation6 + $0x168] sm:$0xff]
    %v3387 = vld [vmem:[#allocation6 + $0x170] sm:$0xff]
    %v3388 = vld [vmem:[#allocation6 + $0x178] sm:$0xff]
    %v3389 = vld [vmem:[#allocation6 + $0x180] sm:$0xff]
    %v3390 = vld [vmem:[#allocation6 + $0x188] sm:$0xff]
    %v3391 = vld [vmem:[#allocation6 + $0x190] sm:$0xff]
    %v3392 = vld [vmem:[#allocation6 + $0x198] sm:$0xff]
    %v3393 = vld [vmem:[#allocation6 + $0x1a0] sm:$0xff]
    %v3394 = vld [vmem:[#allocation6 + $0x1a8] sm:$0xff]
    %v3395 = vld [vmem:[#allocation6 + $0x1b0] sm:$0xff]
    %v3396 = vld [vmem:[#allocation6 + $0x1b8] sm:$0xff]
    %v3397 = vld [vmem:[#allocation6 + $0x1c0] sm:$0xff]
    %v3398 = vld [vmem:[#allocation6 + $0x1c8] sm:$0xff]
    %v3399 = vld [vmem:[#allocation6 + $0x1d0] sm:$0xff]
    %v3400 = vld [vmem:[#allocation6 + $0x1d8] sm:$0xff]
    %v3401 = vld [vmem:[#allocation6 + $0x1e0] sm:$0xff]
    %v3402 = vld [vmem:[#allocation6 + $0x1e8] sm:$0xff]
    %v3403 = vld [vmem:[#allocation6 + $0x1f0] sm:$0xff]
    %v3404 = vld [vmem:[#allocation6 + $0x1f8] sm:$0xff]
    %v3405 = vld [vmem:[#allocation6 + $0x200] sm:$0xff]
    %v3406 = vld [vmem:[#allocation6 + $0x208] sm:$0xff]
    %v3407 = vld [vmem:[#allocation6 + $0x210] sm:$0xff]
    %v3408 = vld [vmem:[#allocation6 + $0x218] sm:$0xff]
    %v3409 = vld [vmem:[#allocation6 + $0x220] sm:$0xff]
    %v3410 = vld [vmem:[#allocation6 + $0x228] sm:$0xff]
    %v3411 = vld [vmem:[#allocation6 + $0x230] sm:$0xff]
    %v3412 = vld [vmem:[#allocation6 + $0x238] sm:$0xff]
    %v3413 = vld [vmem:[#allocation6 + $0x240] sm:$0xff]
    %v3414 = vld [vmem:[#allocation6 + $0x248] sm:$0xff]
    %v3415 = vld [vmem:[#allocation6 + $0x250] sm:$0xff]
    %v3416 = vld [vmem:[#allocation6 + $0x258] sm:$0xff]
    %v3417 = vld [vmem:[#allocation6 + $0x260] sm:$0xff]
    %v3418 = vld [vmem:[#allocation6 + $0x268] sm:$0xff]
    %v3419 = vld [vmem:[#allocation6 + $0x270] sm:$0xff]
    %v3420 = vld [vmem:[#allocation6 + $0x278] sm:$0xff]
    %v3421 = vld [vmem:[%s6] sm:$0x1]
    %v3423 = vlaneseq
    %v3424 = vshrl.u32 %v3423, 7
    %v3425 = vsub.s32 0, %v3424
    %v3426 = vrot.slane %v3421, %v3425
    %3428 = vmatprep.subr.mxu0 0.0
    %3429 = vmatpush1.msra.mxu0 %v3356
    %3430 = vmatprep.subr.mxu0 0.0
    %3431 = vmatpush1.msra.mxu0 %v3355
    %3432 = vmatprep.subr.mxu0 0.0
    %3433 = vmatpush1.msra.mxu0 %v3354
    %3434 = vmatprep.subr.mxu0 0.0
    %3435 = vmatpush1.msra.mxu0 %v3353
    %3436 = vmatprep.subr.mxu0 0.0
    %3437 = vmatpush1.msra.mxu0 %v3352
    %3438 = vmatprep.subr.mxu0 0.0
    %3439 = vmatpush1.msra.mxu0 %v3351
    %3440 = vmatprep.subr.mxu0 0.0
    %3441 = vmatpush1.msra.mxu0 %v3350
    %3442 = vmatprep.subr.mxu0 0.0
    %3443 = vmatpush1.msra.mxu0 %v3349
    %3444 = vmatprep.subr.mxu0 0.0
    %3445 = vmatpush1.msra.mxu0 %v3348
    %3446 = vmatprep.subr.mxu0 0.0
    %3447 = vmatpush1.msra.mxu0 %v3347
    %3448 = vmatprep.subr.mxu0 0.0
    %3449 = vmatpush1.msra.mxu0 %v3346
    %3450 = vmatprep.subr.mxu0 0.0
    %3451 = vmatpush1.msra.mxu0 %v3345
    %3452 = vmatprep.subr.mxu0 0.0
    %3453 = vmatpush1.msra.mxu0 %v3344
    %3454 = vmatprep.subr.mxu0 0.0
    %3455 = vmatpush1.msra.mxu0 %v3343
    %3456 = vmatprep.subr.mxu0 0.0
    %3457 = vmatpush1.msra.mxu0 %v3342
    %3458 = vmatprep.subr.mxu0 0.0
    %3459 = vmatpush1.msra.mxu0 %v3341
    %3460 = vmatprep.subr.mxu0 0.0
    %3461 = vmatpush2.msra.mxu0 %v3372
    %3462 = vmatprep.subr.mxu0 0.0
    %3463 = vmatpush2.msra.mxu0 %v3371
    %3464 = vmatprep.subr.mxu0 0.0
    %3465 = vmatpush2.msra.mxu0 %v3370
    %3466 = vmatprep.subr.mxu0 0.0
    %3467 = vmatpush2.msra.mxu0 %v3369
    %3468 = vmatprep.subr.mxu0 0.0
    %3469 = vmatpush2.msra.mxu0 %v3368
    %3470 = vmatprep.subr.mxu0 0.0
    %3471 = vmatpush2.msra.mxu0 %v3367
    %3472 = vmatprep.subr.mxu0 0.0
    %3473 = vmatpush2.msra.mxu0 %v3366
    %3474 = vmatprep.subr.mxu0 0.0
    %3475 = vmatpush2.msra.mxu0 %v3365
    %3476 = vmatprep.subr.mxu0 0.0
    %3477 = vmatpush2.msra.mxu0 %v3364
    %3478 = vmatprep.subr.mxu0 0.0
    %3479 = vmatpush2.msra.mxu0 %v3363
    %3480 = vmatprep.subr.mxu0 0.0
    %3481 = vmatpush2.msra.mxu0 %v3362
    %3482 = vmatprep.subr.mxu0 0.0
    %3483 = vmatpush2.msra.mxu0 %v3361
    %3484 = vmatprep.subr.mxu0 0.0
    %3485 = vmatpush2.msra.mxu0 %v3360
    %3486 = vmatprep.subr.mxu0 0.0
    %3487 = vmatpush2.msra.mxu0 %v3359
    %3488 = vmatprep.subr.mxu0 0.0
    %3489 = vmatpush2.msra.mxu0 %v3358
    %3490 = vmatprep.subr.mxu0 0.0
    %3491 = vmatpush2.msra.mxu0 %v3357
    %3492 = vmatprep.mubr.f32.mxu0 %v3337
    %3493 = vmatmul.mubr.f32.gmra.mxu0 %v3336
    %v3494 = vpop.f32.mrf.mxu0
    %v3495 = vadd.f32 %v3426, %v3494
    %v3496 = vpop.f32.mrf.mxu0
    %3497 = vdwg.mxu0
    %3498 = vmatprep.subr.mxu0 0.0
    %3499 = vmatpush1.msra.mxu0 %v3388
    %3500 = vmatprep.subr.mxu0 0.0
    %3501 = vmatpush1.msra.mxu0 %v3387
    %3502 = vmatprep.subr.mxu0 0.0
    %3503 = vmatpush1.msra.mxu0 %v3386
    %3504 = vmatprep.subr.mxu0 0.0
    %3505 = vmatpush1.msra.mxu0 %v3385
    %3506 = vmatprep.subr.mxu0 0.0
    %3507 = vmatpush1.msra.mxu0 %v3384
    %3508 = vmatprep.subr.mxu0 0.0
    %3509 = vmatpush1.msra.mxu0 %v3383
    %3510 = vmatprep.subr.mxu0 0.0
    %3511 = vmatpush1.msra.mxu0 %v3382
    %3512 = vmatprep.subr.mxu0 0.0
    %3513 = vmatpush1.msra.mxu0 %v3381
    %3514 = vmatprep.subr.mxu0 0.0
    %3515 = vmatpush1.msra.mxu0 %v3380
    %3516 = vmatprep.subr.mxu0 0.0
    %3517 = vmatpush1.msra.mxu0 %v3379
    %3518 = vmatprep.subr.mxu0 0.0
    %3519 = vmatpush1.msra.mxu0 %v3378
    %3520 = vmatprep.subr.mxu0 0.0
    %3521 = vmatpush1.msra.mxu0 %v3377
    %3522 = vmatprep.subr.mxu0 0.0
    %3523 = vmatpush1.msra.mxu0 %v3376
    %3524 = vmatprep.subr.mxu0 0.0
    %3525 = vmatpush1.msra.mxu0 %v3375
    %3526 = vmatprep.subr.mxu0 0.0
    %3527 = vmatpush1.msra.mxu0 %v3374
    %3528 = vmatprep.subr.mxu0 0.0
    %3529 = vmatpush1.msra.mxu0 %v3373
    %3530 = vmatprep.subr.mxu0 0.0
    %3531 = vmatpush2.msra.mxu0 %v3404
    %3532 = vmatprep.subr.mxu0 0.0
    %3533 = vmatpush2.msra.mxu0 %v3403
    %3534 = vmatprep.subr.mxu0 0.0
    %3535 = vmatpush2.msra.mxu0 %v3402
    %3536 = vmatprep.subr.mxu0 0.0
    %3537 = vmatpush2.msra.mxu0 %v3401
    %3538 = vmatprep.subr.mxu0 0.0
    %3539 = vmatpush2.msra.mxu0 %v3400
    %3540 = vmatprep.subr.mxu0 0.0
    %3541 = vmatpush2.msra.mxu0 %v3399
    %3542 = vmatprep.subr.mxu0 0.0
    %3543 = vmatpush2.msra.mxu0 %v3398
    %3544 = vmatprep.subr.mxu0 0.0
    %3545 = vmatpush2.msra.mxu0 %v3397
    %3546 = vmatprep.subr.mxu0 0.0
    %3547 = vmatpush2.msra.mxu0 %v3396
    %3548 = vmatprep.subr.mxu0 0.0
    %3549 = vmatpush2.msra.mxu0 %v3395
    %3550 = vmatprep.subr.mxu0 0.0
    %3551 = vmatpush2.msra.mxu0 %v3394
    %3552 = vmatprep.subr.mxu0 0.0
    %3553 = vmatpush2.msra.mxu0 %v3393
    %3554 = vmatprep.subr.mxu0 0.0
    %3555 = vmatpush2.msra.mxu0 %v3392
    %3556 = vmatprep.subr.mxu0 0.0
    %3557 = vmatpush2.msra.mxu0 %v3391
    %3558 = vmatprep.subr.mxu0 0.0
    %3559 = vmatpush2.msra.mxu0 %v3390
    %3560 = vmatprep.subr.mxu0 0.0
    %3561 = vmatpush2.msra.mxu0 %v3389
    %3562 = vmatprep.mubr.f32.mxu0 %v3339
    %3563 = vmatmul.mubr.f32.gmra.mxu0 %v3338
    %v3564 = vpop.f32.mrf.mxu0
    %v3565 = vadd.f32 %v3495, %v3564
    %v3566 = vpop.f32.mrf.mxu0
    %3567 = vdwg.mxu0
    %3568 = vmatprep.subr.mxu0 0.0
    %3569 = vmatpush1.msra.mxu0 %v3420
    %3570 = vmatprep.subr.mxu0 0.0
    %3571 = vmatpush1.msra.mxu0 %v3419
    %3572 = vmatprep.subr.mxu0 0.0
    %3573 = vmatpush1.msra.mxu0 %v3418
    %3574 = vmatprep.subr.mxu0 0.0
    %3575 = vmatpush1.msra.mxu0 %v3417
    %3576 = vmatprep.subr.mxu0 0.0
    %3577 = vmatpush1.msra.mxu0 %v3416
    %3578 = vmatprep.subr.mxu0 0.0
    %3579 = vmatpush1.msra.mxu0 %v3415
    %3580 = vmatprep.subr.mxu0 0.0
    %3581 = vmatpush1.msra.mxu0 %v3414
    %3582 = vmatprep.subr.mxu0 0.0
    %3583 = vmatpush1.msra.mxu0 %v3413
    %3584 = vmatprep.subr.mxu0 0.0
    %3585 = vmatpush1.msra.mxu0 %v3412
    %3586 = vmatprep.subr.mxu0 0.0
    %3587 = vmatpush1.msra.mxu0 %v3411
    %3588 = vmatprep.subr.mxu0 0.0
    %3589 = vmatpush1.msra.mxu0 %v3410
    %3590 = vmatprep.subr.mxu0 0.0
    %3591 = vmatpush1.msra.mxu0 %v3409
    %3592 = vmatprep.subr.mxu0 0.0
    %3593 = vmatpush1.msra.mxu0 %v3408
    %3594 = vmatprep.subr.mxu0 0.0
    %3595 = vmatpush1.msra.mxu0 %v3407
    %3596 = vmatprep.subr.mxu0 0.0
    %3597 = vmatpush1.msra.mxu0 %v3406
    %3598 = vmatprep.subr.mxu0 0.0
    %3599 = vmatpush1.msra.mxu0 %v3405
    %3600 = vmatprep.subr.mxu0 0.0
    %3601 = vmatpush2.msra.mxu0 0.0
    %3602 = vmatprep.subr.mxu0 0.0
    %3603 = vmatpush2.msra.mxu0 0.0
    %3604 = vmatprep.subr.mxu0 0.0
    %3605 = vmatpush2.msra.mxu0 0.0
    %3606 = vmatprep.subr.mxu0 0.0
    %3607 = vmatpush2.msra.mxu0 0.0
    %3608 = vmatprep.subr.mxu0 0.0
    %3609 = vmatpush2.msra.mxu0 0.0
    %3610 = vmatprep.subr.mxu0 0.0
    %3611 = vmatpush2.msra.mxu0 0.0
    %3612 = vmatprep.subr.mxu0 0.0
    %3613 = vmatpush2.msra.mxu0 0.0
    %3614 = vmatprep.subr.mxu0 0.0
    %3615 = vmatpush2.msra.mxu0 0.0
    %3616 = vmatprep.subr.mxu0 0.0
    %3617 = vmatpush2.msra.mxu0 0.0
    %3618 = vmatprep.subr.mxu0 0.0
    %3619 = vmatpush2.msra.mxu0 0.0
    %3620 = vmatprep.subr.mxu0 0.0
    %3621 = vmatpush2.msra.mxu0 0.0
    %3622 = vmatprep.subr.mxu0 0.0
    %3623 = vmatpush2.msra.mxu0 0.0
    %3624 = vmatprep.subr.mxu0 0.0
    %3625 = vmatpush2.msra.mxu0 0.0
    %3626 = vmatprep.subr.mxu0 0.0
    %3627 = vmatpush2.msra.mxu0 0.0
    %3628 = vmatprep.subr.mxu0 0.0
    %3629 = vmatpush2.msra.mxu0 0.0
    %3630 = vmatprep.subr.mxu0 0.0
    %3631 = vmatpush2.msra.mxu0 0.0
    %3632 = vmatprep.mubr.f32.mxu0 0.0
    %3633 = vmatmul.mubr.f32.gmra.mxu0 %v3340
    %v3634 = vpop.f32.mrf.mxu0
    %v3635 = vadd.f32 %v3565, %v3634
    %v3636 = vpop.f32.mrf.mxu0
    %3637 = vdwg.mxu0
    %v3638 = vmul.f32 %v3635, 0.5
    %v3639 = vtanh.pop %v3638
    %v3640 = vmul.f32 %v3639, 0.5
    %v3641 = vadd.f32 %v3640, 0.5
    %v3642 = vmul.f32 %v3635, %v3641
    %v3643 = vld [vmem:[#allocation8] sm:$0xff]
    %v3644 = vld [vmem:[#allocation8 + $0x8] sm:$0xff]
    %v3645 = vld [vmem:[#allocation8 + $0x10] sm:$0xff]
    %v3646 = vld [vmem:[#allocation8 + $0x18] sm:$0xff]
    %v3647 = vld [vmem:[#allocation8 + $0x20] sm:$0xff]
    %v3648 = vld [vmem:[#allocation8 + $0x28] sm:$0xff]
    %v3649 = vld [vmem:[#allocation8 + $0x30] sm:$0xff]
    %v3650 = vld [vmem:[#allocation8 + $0x38] sm:$0xff]
    %v3651 = vld [vmem:[#allocation8 + $0x40] sm:$0xff]
    %v3652 = vld [vmem:[#allocation8 + $0x48] sm:$0xff]
    %v3653 = vld [vmem:[#allocation8 + $0x50] sm:$0xff]
    %v3654 = vld [vmem:[#allocation8 + $0x58] sm:$0xff]
    %v3655 = vld [vmem:[#allocation8 + $0x60] sm:$0xff]
    %v3656 = vld [vmem:[#allocation8 + $0x68] sm:$0xff]
    %v3657 = vld [vmem:[#allocation8 + $0x70] sm:$0xff]
    %v3658 = vld [vmem:[#allocation8 + $0x78] sm:$0xff]
    %v3659 = vld [vmem:[%s8] sm:$0x1]
    %v3661 = vlaneseq
    %v3662 = vshrl.u32 %v3661, 7
    %v3663 = vsub.s32 0, %v3662
    %v3664 = vrot.slane %v3659, %v3663
    %3666 = vmatprep.subr.mxu0 0.0
    %3667 = vmatpush1.msra.mxu0 %v3658
    %3668 = vmatprep.subr.mxu0 0.0
    %3669 = vmatpush1.msra.mxu0 %v3657
    %3670 = vmatprep.subr.mxu0 0.0
    %3671 = vmatpush1.msra.mxu0 %v3656
    %3672 = vmatprep.subr.mxu0 0.0
    %3673 = vmatpush1.msra.mxu0 %v3655
    %3674 = vmatprep.subr.mxu0 0.0
    %3675 = vmatpush1.msra.mxu0 %v3654
    %3676 = vmatprep.subr.mxu0 0.0
    %3677 = vmatpush1.msra.mxu0 %v3653
    %3678 = vmatprep.subr.mxu0 0.0
    %3679 = vmatpush1.msra.mxu0 %v3652
    %3680 = vmatprep.subr.mxu0 0.0
    %3681 = vmatpush1.msra.mxu0 %v3651
    %3682 = vmatprep.subr.mxu0 0.0
    %3683 = vmatpush1.msra.mxu0 %v3650
    %3684 = vmatprep.subr.mxu0 0.0
    %3685 = vmatpush1.msra.mxu0 %v3649
    %3686 = vmatprep.subr.mxu0 0.0
    %3687 = vmatpush1.msra.mxu0 %v3648
    %3688 = vmatprep.subr.mxu0 0.0
    %3689 = vmatpush1.msra.mxu0 %v3647
    %3690 = vmatprep.subr.mxu0 0.0
    %3691 = vmatpush1.msra.mxu0 %v3646
    %3692 = vmatprep.subr.mxu0 0.0
    %3693 = vmatpush1.msra.mxu0 %v3645
    %3694 = vmatprep.subr.mxu0 0.0
    %3695 = vmatpush1.msra.mxu0 %v3644
    %3696 = vmatprep.subr.mxu0 0.0
    %3697 = vmatpush1.msra.mxu0 %v3643
    %3698 = vmatprep.subr.mxu0 0.0
    %3699 = vmatpush2.msra.mxu0 0.0
    %3700 = vmatprep.subr.mxu0 0.0
    %3701 = vmatpush2.msra.mxu0 0.0
    %3702 = vmatprep.subr.mxu0 0.0
    %3703 = vmatpush2.msra.mxu0 0.0
    %3704 = vmatprep.subr.mxu0 0.0
    %3705 = vmatpush2.msra.mxu0 0.0
    %3706 = vmatprep.subr.mxu0 0.0
    %3707 = vmatpush2.msra.mxu0 0.0
    %3708 = vmatprep.subr.mxu0 0.0
    %3709 = vmatpush2.msra.mxu0 0.0
    %3710 = vmatprep.subr.mxu0 0.0
    %3711 = vmatpush2.msra.mxu0 0.0
    %3712 = vmatprep.subr.mxu0 0.0
    %3713 = vmatpush2.msra.mxu0 0.0
    %3714 = vmatprep.subr.mxu0 0.0
    %3715 = vmatpush2.msra.mxu0 0.0
    %3716 = vmatprep.subr.mxu0 0.0
    %3717 = vmatpush2.msra.mxu0 0.0
    %3718 = vmatprep.subr.mxu0 0.0
    %3719 = vmatpush2.msra.mxu0 0.0
    %3720 = vmatprep.subr.mxu0 0.0
    %3721 = vmatpush2.msra.mxu0 0.0
    %3722 = vmatprep.subr.mxu0 0.0
    %3723 = vmatpush2.msra.mxu0 0.0
    %3724 = vmatprep.subr.mxu0 0.0
    %3725 = vmatpush2.msra.mxu0 0.0
    %3726 = vmatprep.subr.mxu0 0.0
    %3727 = vmatpush2.msra.mxu0 0.0
    %3728 = vmatprep.subr.mxu0 0.0
    %3729 = vmatpush2.msra.mxu0 0.0
    %3730 = vmatprep.mubr.f32.mxu0 0.0
    %3731 = vmatmul.mubr.f32.gmra.mxu0 %v3642
    %v3732 = vpop.f32.mrf.mxu0
    %v3733 = vadd.f32 %v3664, %v3732
    %v3734 = vpop.f32.mrf.mxu0
    %3735 = vdwg.mxu0
    %v3736 = vmul.f32 %v3733, 0.5
    %v3737 = vtanh.pop %v3736
    %v3738 = vmul.f32 %v3737, 0.5
    %v3739 = vadd.f32 %v3738, 0.5
    %v3740 = vmul.f32 %v3733, %v3739
    %v3741 = vld [vmem:[#allocation9] sm:$0xff]
    %v3742 = vld [vmem:[#allocation9 + $0x8] sm:$0xff]
    %v3743 = vld [vmem:[#allocation9 + $0x10] sm:$0xff]
    %v3744 = vld [vmem:[#allocation9 + $0x18] sm:$0xff]
    %v3745 = vld [vmem:[#allocation9 + $0x20] sm:$0xff]
    %v3746 = vld [vmem:[#allocation9 + $0x28] sm:$0xff]
    %v3747 = vld [vmem:[#allocation9 + $0x30] sm:$0xff]
    %v3748 = vld [vmem:[#allocation9 + $0x38] sm:$0xff]
    %v3749 = vld [vmem:[#allocation9 + $0x40] sm:$0xff]
    %v3750 = vld [vmem:[#allocation9 + $0x48] sm:$0xff]
    %v3751 = vld [vmem:[#allocation9 + $0x50] sm:$0xff]
    %v3752 = vld [vmem:[#allocation9 + $0x58] sm:$0xff]
    %v3753 = vld [vmem:[#allocation9 + $0x60] sm:$0xff]
    %v3754 = vld [vmem:[#allocation9 + $0x68] sm:$0xff]
    %v3755 = vld [vmem:[#allocation9 + $0x70] sm:$0xff]
    %v3756 = vld [vmem:[#allocation9 + $0x78] sm:$0xff]
    %v3757 = vld [vmem:[%s10] sm:$0x1]
    %v3759 = vlaneseq
    %v3760 = vshrl.u32 %v3759, 7
    %v3761 = vsub.s32 0, %v3760
    %v3762 = vrot.slane %v3757, %v3761
    %3764 = vmatprep.subr.mxu0 0.0
    %3765 = vmatpush1.msra.mxu0 %v3756
    %3766 = vmatprep.subr.mxu0 0.0
    %3767 = vmatpush1.msra.mxu0 %v3755
    %3768 = vmatprep.subr.mxu0 0.0
    %3769 = vmatpush1.msra.mxu0 %v3754
    %3770 = vmatprep.subr.mxu0 0.0
    %3771 = vmatpush1.msra.mxu0 %v3753
    %3772 = vmatprep.subr.mxu0 0.0
    %3773 = vmatpush1.msra.mxu0 %v3752
    %3774 = vmatprep.subr.mxu0 0.0
    %3775 = vmatpush1.msra.mxu0 %v3751
    %3776 = vmatprep.subr.mxu0 0.0
    %3777 = vmatpush1.msra.mxu0 %v3750
    %3778 = vmatprep.subr.mxu0 0.0
    %3779 = vmatpush1.msra.mxu0 %v3749
    %3780 = vmatprep.subr.mxu0 0.0
    %3781 = vmatpush1.msra.mxu0 %v3748
    %3782 = vmatprep.subr.mxu0 0.0
    %3783 = vmatpush1.msra.mxu0 %v3747
    %3784 = vmatprep.subr.mxu0 0.0
    %3785 = vmatpush1.msra.mxu0 %v3746
    %3786 = vmatprep.subr.mxu0 0.0
    %3787 = vmatpush1.msra.mxu0 %v3745
    %3788 = vmatprep.subr.mxu0 0.0
    %3789 = vmatpush1.msra.mxu0 %v3744
    %3790 = vmatprep.subr.mxu0 0.0
    %3791 = vmatpush1.msra.mxu0 %v3743
    %3792 = vmatprep.subr.mxu0 0.0
    %3793 = vmatpush1.msra.mxu0 %v3742
    %3794 = vmatprep.subr.mxu0 0.0
    %3795 = vmatpush1.msra.mxu0 %v3741
    %3796 = vmatprep.subr.mxu0 0.0
    %3797 = vmatpush2.msra.mxu0 0.0
    %3798 = vmatprep.subr.mxu0 0.0
    %3799 = vmatpush2.msra.mxu0 0.0
    %3800 = vmatprep.subr.mxu0 0.0
    %3801 = vmatpush2.msra.mxu0 0.0
    %3802 = vmatprep.subr.mxu0 0.0
    %3803 = vmatpush2.msra.mxu0 0.0
    %3804 = vmatprep.subr.mxu0 0.0
    %3805 = vmatpush2.msra.mxu0 0.0
    %3806 = vmatprep.subr.mxu0 0.0
    %3807 = vmatpush2.msra.mxu0 0.0
    %3808 = vmatprep.subr.mxu0 0.0
    %3809 = vmatpush2.msra.mxu0 0.0
    %3810 = vmatprep.subr.mxu0 0.0
    %3811 = vmatpush2.msra.mxu0 0.0
    %3812 = vmatprep.subr.mxu0 0.0
    %3813 = vmatpush2.msra.mxu0 0.0
    %3814 = vmatprep.subr.mxu0 0.0
    %3815 = vmatpush2.msra.mxu0 0.0
    %3816 = vmatprep.subr.mxu0 0.0
    %3817 = vmatpush2.msra.mxu0 0.0
    %3818 = vmatprep.subr.mxu0 0.0
    %3819 = vmatpush2.msra.mxu0 0.0
    %3820 = vmatprep.subr.mxu0 0.0
    %3821 = vmatpush2.msra.mxu0 0.0
    %3822 = vmatprep.subr.mxu0 0.0
    %3823 = vmatpush2.msra.mxu0 0.0
    %3824 = vmatprep.subr.mxu0 0.0
    %3825 = vmatpush2.msra.mxu0 0.0
    %3826 = vmatprep.subr.mxu0 0.0
    %3827 = vmatpush2.msra.mxu0 0.0
    %3828 = vmatprep.mubr.f32.mxu0 0.0
    %3829 = vmatmul.mubr.f32.gmra.mxu0 %v3740
    %v3830 = vpop.f32.mrf.mxu0
    %v3831 = vadd.f32 %v3762, %v3830
    %v3832 = vpop.f32.mrf.mxu0
    %3833 = vdwg.mxu0
    %3834 = vst [vmem:[%s11] sm:$0xff] %v3831
    // Predicated region
    $region62: #{lenet_forward.1} parent=1 // pred_check
      _
    $region63: #{lenet_forward.1} parent=1 // pred_check_branch
      %3836 = sbr.rel (0) target = $region65
    $region64: #{lenet_forward.1} parent=1 // pred_region
      _
    $region65: #{lenet_forward.1} parent=1 // pred_fallthru
      _
    // Predicated region
    $region66: #{lenet_forward.1} parent=1 // pred_check
      _
    $region67: #{lenet_forward.1} parent=1 // pred_check_branch
      %3838 = sbr.rel (0) target = $region69
    $region68: #{lenet_forward.1} parent=1 // pred_region
      _
    $region69: #{lenet_forward.1} parent=1 // pred_fallthru
      _
    %3839 = vsyncpa [#allocation5], 1
    %3840 = vsyncpa [#allocation7], 1
    %3841 = vsyncpa [#allocation10], 1

</llo_original>
